<compile_context>
chip_gen: v6e
topology: v6e:2x2x1
jax: 0.10.0
libtpu: 0.0.40
codegen_flags: <defaults>
</compile_context>

<pallas_src>
import functools
import math

import numpy as np
import jax
import jax.numpy as jnp
from jax import lax
from jax.experimental import pallas as pl
from jax.experimental.pallas import tpu as pltpu


# ----------------------------- host-side helpers -----------------------------

def _odd_kernel_size(c, gamma=2, bias=1):
    k = int(abs((math.log(c, 2) + bias) / gamma))
    return k if k % 2 else k + 1


def _toeplitz(w, n):
    """Banded matrix T s.t. (vec @ T) == Conv1d(1,1,k,pad=(k-1)//2,bias=False)(vec)."""
    w = np.asarray(w, dtype=np.float64)
    k = w.shape[0]
    pad = (k - 1) // 2
    j = np.arange(n)[:, None]
    i = np.arange(n)[None, :]
    idx = j - i + pad
    mask = (idx >= 0) & (idx < k)
    return np.where(mask, w[np.clip(idx, 0, k - 1)], 0.0)


def _pick_tile(n, cap):
    """Largest divisor of n that is <= cap and a multiple of 8 (else n)."""
    if n <= cap:
        return n
    d = cap - cap % 8
    while d >= 8:
        if n % d == 0:
            return d
        d -= 8
    return n


def _pick_h_tile(H, W, row_cap):
    """Largest divisor th of H with th*W <= row_cap and th*W % 8 == 0 (else H)."""
    if H * W <= row_cap:
        return H
    for th in range(H, 0, -1):
        if H % th == 0 and th * W <= row_cap and (th * W) % 8 == 0:
            return th
    return H


# ----------------------------- Pallas kernels -----------------------------

def _gap_kernel(x_ref, o_ref, acc_ref, *, inv_n):
    # x_ref: (1, tile, C) ; o_ref: (1, 1, C) ; acc_ref: (1, C) f32 scratch
    r = pl.program_id(1)

    @pl.when(r == 0)
    def _():
        acc_ref[...] = jnp.zeros_like(acc_ref)

    # accumulate the spatial sum in f32 (safe even if activations are bf16)
    acc_ref[...] += jnp.sum(x_ref[0].astype(jnp.float32), axis=0, keepdims=True)

    @pl.when(r == pl.num_programs(1) - 1)
    def _():
        o_ref[0] = acc_ref[...] * inv_n


def global_avg_pool(x, cap=2048):
    # x: (B, N, C) -> (B, 1, C) f32 mean over N, tiled reduction over N.
    B, N, C = x.shape
    tn = _pick_tile(N, cap)
    kernel = functools.partial(_gap_kernel, inv_n=1.0 / N)
    return pl.pallas_call(
        kernel,
        out_shape=jax.ShapeDtypeStruct((B, 1, C), jnp.float32),
        grid=(B, N // tn),
        in_specs=[pl.BlockSpec((1, tn, C), lambda b, r: (b, r, 0))],
        out_specs=pl.BlockSpec((1, 1, C), lambda b, r: (b, 0, 0)),
        scratch_shapes=[pltpu.VMEM((1, C), jnp.float32)],
        compiler_params=pltpu.CompilerParams(
            dimension_semantics=("parallel", "arbitrary")),
    )(x)


def _attn_kernel(m1_ref, m2_ref, M1_ref, M2_ref, o_ref):
    # sigmoid(m1 @ M1 + m2 @ M2)  where M1/M2 already fold conv1/conv2 with conv3
    z = (jnp.dot(m1_ref[...], M1_ref[...], preferred_element_type=jnp.float32)
         + jnp.dot(m2_ref[...], M2_ref[...], preferred_element_type=jnp.float32))
    o_ref[...] = jax.nn.sigmoid(z).astype(o_ref.dtype)


def channel_attention(m1, m2, M1, M2):
    B = m1.shape[0]
    C = M1.shape[1]
    return pl.pallas_call(
        _attn_kernel,
        out_shape=jax.ShapeDtypeStruct((B, C), jnp.float32),
    )(m1, m2, M1, M2)


def _fused_kernel(x1_ref, ee_ref, oes_ref, eop_ref, oem_ref, oos_ref, oom_ref,
                  a1_ref, a2_ref, w_ref, b_ref, o_ref):
    # x1_ref : (1, th*W, C1)                 ee/oes : (1, 1, th, W, C2)
    # eop/oos/oom : (1, th, W+1, C2)         oem    : (1, th, W, C2)
    # a1 : (1, 1, C1)   a2 : (1, C2, 1)      w : (9, C2, C1)   b : (1, C1)
    hw = x1_ref.shape[1]
    c2 = w_ref.shape[1]
    W = ee_ref.shape[3]
    a1 = a1_ref[0]                       # (1, C1)
    a2 = a2_ref[0]                       # (C2, 1) -> broadcasts over C1 (lanes)

    def tap(src, t):
        # src: (th, W, C2). Fold the a2 gate into the weights (cheap: C2*C1),
        # then one MXU matmul at default precision with f32 accumulation.
        lhs = src.reshape(hw, c2)
        return jnp.dot(lhs, w_ref[t] * a2, preferred_element_type=jnp.float32)

    # Output dtype is f32 here, so accumulating straight into o_ref keeps the
    # running sum in VMEM without extra copies.
    o_ref[0] = x1_ref[0] * a1 + b_ref[...]
    o_ref[0] += tap(ee_ref[0, 0], 4)                 # (kh=1, kw=1)
    o_ref[0] += tap(oes_ref[0, 0], 7)                # (2, 1)
    o_ref[0] += tap(eop_ref[0, :, 0:W, :], 3)        # (1, 0)
    o_ref[0] += tap(eop_ref[0, :, 1:W + 1, :], 5)    # (1, 2)
    o_ref[0] += tap(oem_ref[0], 1)                   # (0, 1)
    o_ref[0] += tap(oom_ref[0, :, 0:W, :], 0)        # (0, 0)
    o_ref[0] += tap(oom_ref[0, :, 1:W + 1, :], 2)    # (0, 2)
    o_ref[0] += tap(oos_ref[0, :, 0:W, :], 6)        # (2, 0)
    o_ref[0] += tap(oos_ref[0, :, 1:W + 1, :], 8)    # (2, 2)


def fused_scale_down_add(x1_flat, x2_ph4, eop, oem, oos, oom, a1, a2c, w9, bias, th):
    B, HW, C1 = x1_flat.shape
    _, H, Wp, C2 = eop.shape
    W = Wp - 1
    row_blk = th * W
    return pl.pallas_call(
        _fused_kernel,
        out_shape=jax.ShapeDtypeStruct((B, HW, C1), x1_flat.dtype),
        grid=(B, H // th),
        in_specs=[
            pl.BlockSpec((1, row_blk, C1), lambda b, h: (b, h, 0)),              # x1
            pl.BlockSpec((1, 1, th, W, C2), lambda b, h: (b, 0, h, 0, 0)),       # EE  phase
            pl.BlockSpec((1, 1, th, W, C2), lambda b, h: (b, 2, h, 0, 0)),       # OE  phase
            pl.BlockSpec((1, th, Wp, C2), lambda b, h: (b, h, 0, 0)),            # EO shifted
            pl.BlockSpec((1, th, W, C2), lambda b, h: (b, h, 0, 0)),             # OE row-1
            pl.BlockSpec((1, th, Wp, C2), lambda b, h: (b, h, 0, 0)),            # OO col-1
            pl.BlockSpec((1, th, Wp, C2), lambda b, h: (b, h, 0, 0)),            # OO row-1,col-1
            pl.BlockSpec((1, 1, C1), lambda b, h: (b, 0, 0)),                    # a1
            pl.BlockSpec((1, C2, 1), lambda b, h: (b, 0, 0)),                    # a2 (column)
            pl.BlockSpec((9, C2, C1), lambda b, h: (0, 0, 0)),                   # conv weights
            pl.BlockSpec((1, C1), lambda b, h: (0, 0)),                          # bias
        ],
        out_specs=pl.BlockSpec((1, row_blk, C1), lambda b, h: (b, h, 0)),
        compiler_params=pltpu.CompilerParams(
            dimension_semantics=("parallel", "parallel"),
            vmem_limit_bytes=64 * 1024 * 1024),
    )(x1_flat, x2_ph4, x2_ph4, eop, oem, oos, oom, a1, a2c, w9, bias)


# ----------------------------- params / prep -----------------------------

def init_params(C1, C2, key):
    k1 = _odd_kernel_size(C1)
    k2 = _odd_kernel_size(C2)
    k3 = _odd_kernel_size(C1 + C2)
    ks = jax.random.split(key, 5)
    return dict(
        w1=jax.random.normal(ks[0], (k1,), jnp.float32) * 0.5,   # Conv1d(1,1,k1)
        w2=jax.random.normal(ks[1], (k2,), jnp.float32) * 0.5,   # Conv1d(1,1,k2)
        w3=jax.random.normal(ks[2], (k3,), jnp.float32) * 0.5,   # Conv1d(1,1,k3)
        w_down=jax.random.normal(ks[3], (C1, C2, 3, 3), jnp.float32) * 0.1,  # OIHW
        b_down=jax.random.normal(ks[4], (C1,), jnp.float32) * 0.1,
    )


def prepare_params(params):
    """One-time host-side preparation (NOT per forward call):
    Toeplitz forms of the three 1D channel convs, pre-combined conv1*conv3 /
    conv2*conv3 matrices, and the down-conv weight in (tap, C2, C1) layout."""
    C1, C2 = params["w_down"].shape[0], params["w_down"].shape[1]
    C = C1 + C2
    T1 = _toeplitz(np.asarray(params["w1"]), C1)
    T2 = _toeplitz(np.asarray(params["w2"]), C2)
    T3 = _toeplitz(np.asarray(params["w3"]), C)
    M1 = jnp.asarray((T1 @ T3[:C1, :]).astype(np.float32))   # (C1, C1+C2)
    M2 = jnp.asarray((T2 @ T3[C1:, :]).astype(np.float32))   # (C2, C1+C2)
    w9 = jnp.transpose(params["w_down"], (2, 3, 1, 0)).reshape(9, C2, C1)
    bias = params["b_down"].reshape(1, C1)
    return dict(M1=M1, M2=M2, w9=w9, bias=bias)


# ----------------------------- module wrapper -----------------------------

def multi_scale_pca_down(x1, x2, prep, *, row_cap=1024, gap_cap=2048):
    # x1: (B, C1, H, W) ; x2: (B, C2, 2H, 2W) ; returns (B, C1, H, W)
    B, C1, H, W = x1.shape
    _, C2, H2, W2 = x2.shape
    assert H2 == 2 * H and W2 == 2 * W

    # ---- layout glue (NCHW -> channels-last) ----
    x1_flat = jnp.transpose(x1, (0, 2, 3, 1)).reshape(B, H * W, C1)
    # One transpose exposing the four stride-2 phases of x2:
    #   x2_ph4[b, 2*s + t, i, j, c] = x2[b, c, 2*i + s, 2*j + t]
    x2_ph4 = jnp.transpose(x2.reshape(B, C2, H, 2, W, 2),
                           (0, 3, 5, 2, 4, 1)).reshape(B, 4, H, W, C2)

    # Zero-shifted phase variants for the off-center conv taps (total ~1x of x2,
    # versus the 9x/2.25x im2col materialization).
    eo = x2_ph4[:, 1]
    oe = x2_ph4[:, 2]
    oo = x2_ph4[:, 3]
    eop = jnp.pad(eo, ((0, 0), (0, 0), (1, 0), (0, 0)))            # EO[i, j-1]
    oem = jnp.pad(oe, ((0, 0), (1, 0), (0, 0), (0, 0)))[:, :H]     # OE[i-1, j]
    oos = jnp.pad(oo, ((0, 0), (0, 0), (1, 0), (0, 0)))            # OO[i, j-1]
    oom = jnp.pad(oo, ((0, 0), (1, 0), (1, 0), (0, 0)))[:, :H]     # OO[i-1, j-1]

    # ---- global average pooling + channel attention ----
    m1 = global_avg_pool(x1_flat, gap_cap)[:, 0, :]                         # (B, C1)
    m2 = global_avg_pool(x2_ph4.reshape(B, 4 * H * W, C2), gap_cap)[:, 0, :]  # (B, C2)
    attn = channel_attention(m1, m2, prep["M1"], prep["M2"])                # (B, C1+C2)
    a1 = attn[:, :C1].reshape(B, 1, C1)
    a2c = attn[:, C1:].reshape(B, C2, 1)

    # ---- fused x1*a1 + Conv2d(3x3, s=2, p=1)(x2*a2) + bias ----
    # Note: the in-kernel (th, W, C2)->(th*W, C2) reshape is layout-free when
    # W % 8 == 0 (typical YOLO feature maps); otherwise Mosaic relayouts.
    th = _pick_h_tile(H, W, row_cap)
    out_flat = fused_scale_down_add(x1_flat, x2_ph4, eop, oem, oos, oom,
                                    a1, a2c, prep["w9"], prep["bias"], th)
    return jnp.transpose(out_flat.reshape(B, H, W, C1), (0, 3, 1, 2))


# ----------------------------- pure-JAX reference -----------------------------

def _conv1d_ref(m, w):
    k = w.shape[0]
    pad = (k - 1) // 2
    mp = jnp.pad(m, ((0, 0), (pad, pad)))
    out = jnp.zeros_like(m)
    for t in range(k):
        out = out + w[t] * mp[:, t:t + m.shape[1]]
    return out


def reference(x1, x2, params):
    C1 = x1.shape[1]
    m1 = x1.mean(axis=(2, 3))
    m2 = x2.mean(axis=(2, 3))
    y1 = _conv1d_ref(m1, params["w1"])
    y2 = _conv1d_ref(m2, params["w2"])
    z = jax.nn.sigmoid(_conv1d_ref(jnp.concatenate([y1, y2], axis=1), params["w3"]))
    a1 = z[:, :C1][:, :, None, None]
    a2 = z[:, C1:][:, :, None, None]
    x1_out = x1 * a1
    x2_out = x2 * a2
    down = lax.conv_general_dilated(
        x2_out, params["w_down"], window_strides=(2, 2),
        padding=((1, 1), (1, 1)),
        dimension_numbers=("NCHW", "OIHW", "NCHW"))
    down = down + params["b_down"][None, :, None, None]
    return x1_out + down


if __name__ == "__main__":
    key = jax.random.PRNGKey(0)
    k_x1, k_x2, k_p = jax.random.split(key, 3)
    B, C1, C2, H, W = 2, 4, 8, 8, 8
    x1 = jax.random.normal(k_x1, (B, C1, H, W), jnp.float32)
    x2 = jax.random.normal(k_x2, (B, C2, 2 * H, 2 * W), jnp.float32)
    params = init_params(C1, C2, k_p)
    prep = prepare_params(params)   # one-time host prep (no per-call Toeplitz)

    # Small tile caps so the toy shapes still exercise the tiled/pipelined grids.
    fwd = jax.jit(functools.partial(multi_scale_pca_down, row_cap=32, gap_cap=32))
    out = jax.block_until_ready(fwd(x1, x2, prep))

    ref = reference(x1, x2, params)
    # Default (non-HIGHEST) MXU matmul precision on both sides -> loose tolerance.
    np.testing.assert_allclose(np.asarray(out), np.asarray(ref), rtol=2e-2, atol=2e-2)
    print("KERNEL_OK")
</pallas_src>

<mosaic_0001>
module attributes {stable_mosaic.version = 11 : i64} {
  func.func @_gap_kernel(%arg0: i32, %arg1: i32, %arg2: memref<1x32x4xf32, #tpu.memory_space<vmem>>, %arg3: memref<1x1x4xf32, #tpu.memory_space<vmem>>, %arg4: memref<1x4xf32, #tpu.memory_space<vmem>>) attributes {dimension_semantics = [#tpu.dimension_semantics<parallel>, #tpu.dimension_semantics<arbitrary>], iteration_bounds = array<i64: 2, 2>, scalar_prefetch = 0 : i64, scratch_operands = 1 : i64, tpu.core_type = #tpu.core_type<tc>, window_params = [{transform_indices = @transform_0, window_bounds = array<i64: 1, 32, 4>}, {transform_indices = @transform_1, window_bounds = array<i64: 1, 1, 4>}]} {
    %c0_i32 = arith.constant 0 : i32
    %0 = arith.cmpi eq, %arg1, %c0_i32 : i32
    %1 = arith.extui %0 : i1 to i32
    %c0_i32_0 = arith.constant 0 : i32
    %2 = arith.cmpi ne, %1, %c0_i32_0 : i32
    scf.if %2 {
      %cst_8 = arith.constant 0.000000e+00 : f32
      %13 = vector.broadcast %cst_8 : f32 to vector<1x4xf32>
      %c0_9 = arith.constant 0 : index
      %c0_10 = arith.constant 0 : index
      %14 = vector.load %arg4[%c0_9, %c0_10] : memref<1x4xf32, #tpu.memory_space<vmem>>, vector<1x4xf32>
      tpu.vector_store %arg4[%c0_9, %c0_10], %13 {strides = array<i32>} : memref<1x4xf32, #tpu.memory_space<vmem>>, vector<1x4xf32>,
    } else {
    }
    %c0 = arith.constant 0 : index
    %c0_1 = arith.constant 0 : index
    %3 = vector.load %arg4[%c0, %c0_1] : memref<1x4xf32, #tpu.memory_space<vmem>>, vector<1x4xf32>
    %c0_2 = arith.constant 0 : index
    %c0_3 = arith.constant 0 : index
    %c0_4 = arith.constant 0 : index
    %4 = vector.load %arg2[%c0_2, %c0_3, %c0_4] : memref<1x32x4xf32, #tpu.memory_space<vmem>>, vector<1x32x4xf32>
    %5 = vector.shape_cast %4 : vector<1x32x4xf32> to vector<32x4xf32>
    %cst = arith.constant dense<0.000000e+00> : vector<4xf32>
    %6 = vector.multi_reduction <add>, %5, %cst [0] : vector<32x4xf32> to vector<4xf32>
    %7 = vector.shape_cast %6 : vector<4xf32> to vector<1x4xf32>
    %8 = arith.addf %3, %7 : vector<1x4xf32>
    %c0_5 = arith.constant 0 : index
    %c0_6 = arith.constant 0 : index
    %9 = vector.load %arg4[%c0_5, %c0_6] : memref<1x4xf32, #tpu.memory_space<vmem>>, vector<1x4xf32>
    tpu.vector_store %arg4[%c0_5, %c0_6], %8 {strides = array<i32>} : memref<1x4xf32, #tpu.memory_space<vmem>>, vector<1x4xf32>,
    %c1_i32 = arith.constant 1 : i32
    %10 = arith.cmpi eq, %arg1, %c1_i32 : i32
    %11 = arith.extui %10 : i1 to i32
    %c0_i32_7 = arith.constant 0 : i32
    %12 = arith.cmpi ne, %11, %c0_i32_7 : i32
    scf.if %12 {
      %c0_8 = arith.constant 0 : index
      %c0_9 = arith.constant 0 : index
      %13 = vector.load %arg4[%c0_8, %c0_9] : memref<1x4xf32, #tpu.memory_space<vmem>>, vector<1x4xf32>
      %cst_10 = arith.constant 1.562500e-02 : f32
      %14 = vector.broadcast %cst_10 : f32 to vector<1x4xf32>
      %15 = arith.mulf %13, %14 : vector<1x4xf32>
      %c0_11 = arith.constant 0 : index
      %c0_12 = arith.constant 0 : index
      %c0_13 = arith.constant 0 : index
      %16 = vector.load %arg3[%c0_11, %c0_12, %c0_13] : memref<1x1x4xf32, #tpu.memory_space<vmem>>, vector<1x1x4xf32>
      %17 = vector.shape_cast %16 : vector<1x1x4xf32> to vector<1x4xf32>
      %18 = vector.shape_cast %15 : vector<1x4xf32> to vector<1x1x4xf32>
      tpu.vector_store %arg3[%c0_11, %c0_12, %c0_13], %18 {strides = array<i32>} : memref<1x1x4xf32, #tpu.memory_space<vmem>>, vector<1x1x4xf32>,
    } else {
    }
    return
  }
  func.func @transform_0(%arg0: i32, %arg1: i32) -> (i32, i32, i32) {
    %c0_i32 = arith.constant 0 : i32
    %c0_i32_0 = arith.constant 0 : i32
    return %arg0, %arg1, %c0_i32 : i32, i32, i32
  }
  func.func @transform_1(%arg0: i32, %arg1: i32) -> (i32, i32, i32) {
    %c0_i32 = arith.constant 0 : i32
    %c0_i32_0 = arith.constant 0 : i32
    %c0_i32_1 = arith.constant 0 : i32
    return %arg0, %c0_i32, %c0_i32_0 : i32, i32, i32
  }
}

module attributes {stable_mosaic.version = 11 : i64} {
  func.func @_gap_kernel(%arg0: i32, %arg1: i32, %arg2: memref<1x32x8xf32, #tpu.memory_space<vmem>>, %arg3: memref<1x1x8xf32, #tpu.memory_space<vmem>>, %arg4: memref<1x8xf32, #tpu.memory_space<vmem>>) attributes {dimension_semantics = [#tpu.dimension_semantics<parallel>, #tpu.dimension_semantics<arbitrary>], iteration_bounds = array<i64: 2, 8>, scalar_prefetch = 0 : i64, scratch_operands = 1 : i64, tpu.core_type = #tpu.core_type<tc>, window_params = [{transform_indices = @transform_0, window_bounds = array<i64: 1, 32, 8>}, {transform_indices = @transform_1, window_bounds = array<i64: 1, 1, 8>}]} {
    %c0_i32 = arith.constant 0 : i32
    %0 = arith.cmpi eq, %arg1, %c0_i32 : i32
    %1 = arith.extui %0 : i1 to i32
    %c0_i32_0 = arith.constant 0 : i32
    %2 = arith.cmpi ne, %1, %c0_i32_0 : i32
    scf.if %2 {
      %cst_8 = arith.constant 0.000000e+00 : f32
      %13 = vector.broadcast %cst_8 : f32 to vector<1x8xf32>
      %c0_9 = arith.constant 0 : index
      %c0_10 = arith.constant 0 : index
      %14 = vector.load %arg4[%c0_9, %c0_10] : memref<1x8xf32, #tpu.memory_space<vmem>>, vector<1x8xf32>
      tpu.vector_store %arg4[%c0_9, %c0_10], %13 {strides = array<i32>} : memref<1x8xf32, #tpu.memory_space<vmem>>, vector<1x8xf32>,
    } else {
    }
    %c0 = arith.constant 0 : index
    %c0_1 = arith.constant 0 : index
    %3 = vector.load %arg4[%c0, %c0_1] : memref<1x8xf32, #tpu.memory_space<vmem>>, vector<1x8xf32>
    %c0_2 = arith.constant 0 : index
    %c0_3 = arith.constant 0 : index
    %c0_4 = arith.constant 0 : index
    %4 = vector.load %arg2[%c0_2, %c0_3, %c0_4] : memref<1x32x8xf32, #tpu.memory_space<vmem>>, vector<1x32x8xf32>
    %5 = vector.shape_cast %4 : vector<1x32x8xf32> to vector<32x8xf32>
    %cst = arith.constant dense<0.000000e+00> : vector<8xf32>
    %6 = vector.multi_reduction <add>, %5, %cst [0] : vector<32x8xf32> to vector<8xf32>
    %7 = vector.shape_cast %6 : vector<8xf32> to vector<1x8xf32>
    %8 = arith.addf %3, %7 : vector<1x8xf32>
    %c0_5 = arith.constant 0 : index
    %c0_6 = arith.constant 0 : index
    %9 = vector.load %arg4[%c0_5, %c0_6] : memref<1x8xf32, #tpu.memory_space<vmem>>, vector<1x8xf32>
    tpu.vector_store %arg4[%c0_5, %c0_6], %8 {strides = array<i32>} : memref<1x8xf32, #tpu.memory_space<vmem>>, vector<1x8xf32>,
    %c7_i32 = arith.constant 7 : i32
    %10 = arith.cmpi eq, %arg1, %c7_i32 : i32
    %11 = arith.extui %10 : i1 to i32
    %c0_i32_7 = arith.constant 0 : i32
    %12 = arith.cmpi ne, %11, %c0_i32_7 : i32
    scf.if %12 {
      %c0_8 = arith.constant 0 : index
      %c0_9 = arith.constant 0 : index
      %13 = vector.load %arg4[%c0_8, %c0_9] : memref<1x8xf32, #tpu.memory_space<vmem>>, vector<1x8xf32>
      %cst_10 = arith.constant 3.906250e-03 : f32
      %14 = vector.broadcast %cst_10 : f32 to vector<1x8xf32>
      %15 = arith.mulf %13, %14 : vector<1x8xf32>
      %c0_11 = arith.constant 0 : index
      %c0_12 = arith.constant 0 : index
      %c0_13 = arith.constant 0 : index
      %16 = vector.load %arg3[%c0_11, %c0_12, %c0_13] : memref<1x1x8xf32, #tpu.memory_space<vmem>>, vector<1x1x8xf32>
      %17 = vector.shape_cast %16 : vector<1x1x8xf32> to vector<1x8xf32>
      %18 = vector.shape_cast %15 : vector<1x8xf32> to vector<1x1x8xf32>
      tpu.vector_store %arg3[%c0_11, %c0_12, %c0_13], %18 {strides = array<i32>} : memref<1x1x8xf32, #tpu.memory_space<vmem>>, vector<1x1x8xf32>,
    } else {
    }
    return
  }
  func.func @transform_0(%arg0: i32, %arg1: i32) -> (i32, i32, i32) {
    %c0_i32 = arith.constant 0 : i32
    %c0_i32_0 = arith.constant 0 : i32
    return %arg0, %arg1, %c0_i32 : i32, i32, i32
  }
  func.func @transform_1(%arg0: i32, %arg1: i32) -> (i32, i32, i32) {
    %c0_i32 = arith.constant 0 : i32
    %c0_i32_0 = arith.constant 0 : i32
    %c0_i32_1 = arith.constant 0 : i32
    return %arg0, %c0_i32, %c0_i32_0 : i32, i32, i32
  }
}

module attributes {stable_mosaic.version = 11 : i64} {
  func.func @_attn_kernel(%arg0: memref<2x4xf32, #tpu.memory_space<vmem>>, %arg1: memref<2x8xf32, #tpu.memory_space<vmem>>, %arg2: memref<4x12xf32, #tpu.memory_space<vmem>>, %arg3: memref<8x12xf32, #tpu.memory_space<vmem>>, %arg4: memref<2x12xf32, #tpu.memory_space<vmem>>) attributes {dimension_semantics = [], scalar_prefetch = 0 : i64, scratch_operands = 0 : i64, tpu.core_type = #tpu.core_type<tc>} {
    %c0 = arith.constant 0 : index
    %c0_0 = arith.constant 0 : index
    %0 = vector.load %arg0[%c0, %c0_0] : memref<2x4xf32, #tpu.memory_space<vmem>>, vector<2x4xf32>
    %c0_1 = arith.constant 0 : index
    %c0_2 = arith.constant 0 : index
    %1 = vector.load %arg2[%c0_1, %c0_2] : memref<4x12xf32, #tpu.memory_space<vmem>>, vector<4x12xf32>
    %cst = arith.constant dense<0.000000e+00> : vector<2x12xf32>
    %2 = tpu.matmul %0, %1, %cst {dimension_numbers = #tpu.dot_dimension_numbers<[1], [0], [0], [1], [0, 0, 1, 1], [], []>} : vector<2x4xf32>, vector<4x12xf32>, vector<2x12xf32> -> vector<2x12xf32>
    %c0_3 = arith.constant 0 : index
    %c0_4 = arith.constant 0 : index
    %3 = vector.load %arg1[%c0_3, %c0_4] : memref<2x8xf32, #tpu.memory_space<vmem>>, vector<2x8xf32>
    %c0_5 = arith.constant 0 : index
    %c0_6 = arith.constant 0 : index
    %4 = vector.load %arg3[%c0_5, %c0_6] : memref<8x12xf32, #tpu.memory_space<vmem>>, vector<8x12xf32>
    %cst_7 = arith.constant dense<0.000000e+00> : vector<2x12xf32>
    %5 = tpu.matmul %3, %4, %cst_7 {dimension_numbers = #tpu.dot_dimension_numbers<[1], [0], [0], [1], [0, 0, 1, 1], [], []>} : vector<2x8xf32>, vector<8x12xf32>, vector<2x12xf32> -> vector<2x12xf32>
    %6 = arith.addf %2, %5 : vector<2x12xf32>
    %7 = arith.negf %6 : vector<2x12xf32>
    %8 = math.exp %7 : vector<2x12xf32>
    %cst_8 = arith.constant 1.000000e+00 : f32
    %9 = vector.broadcast %cst_8 : f32 to vector<2x12xf32>
    %10 = arith.addf %9, %8 : vector<2x12xf32>
    %11 = arith.divf %9, %10 : vector<2x12xf32>
    %c0_9 = arith.constant 0 : index
    %c0_10 = arith.constant 0 : index
    %12 = vector.load %arg4[%c0_9, %c0_10] : memref<2x12xf32, #tpu.memory_space<vmem>>, vector<2x12xf32>
    tpu.vector_store %arg4[%c0_9, %c0_10], %11 {strides = array<i32>} : memref<2x12xf32, #tpu.memory_space<vmem>>, vector<2x12xf32>,
    return
  }
}

module attributes {stable_mosaic.version = 11 : i64} {
  func.func @_fused_kernel(%arg0: i32, %arg1: i32, %arg2: memref<1x32x4xf32, #tpu.memory_space<vmem>>, %arg3: memref<1x1x4x8x8xf32, #tpu.memory_space<vmem>>, %arg4: memref<1x1x4x8x8xf32, #tpu.memory_space<vmem>>, %arg5: memref<1x4x9x8xf32, #tpu.memory_space<vmem>>, %arg6: memref<1x4x8x8xf32, #tpu.memory_space<vmem>>, %arg7: memref<1x4x9x8xf32, #tpu.memory_space<vmem>>, %arg8: memref<1x4x9x8xf32, #tpu.memory_space<vmem>>, %arg9: memref<1x1x4xf32, #tpu.memory_space<vmem>>, %arg10: memref<1x8x1xf32, #tpu.memory_space<vmem>>, %arg11: memref<9x8x4xf32, #tpu.memory_space<vmem>>, %arg12: memref<1x4xf32, #tpu.memory_space<vmem>>, %arg13: memref<1x32x4xf32, #tpu.memory_space<vmem>>) attributes {dimension_semantics = [#tpu.dimension_semantics<parallel>, #tpu.dimension_semantics<parallel>], iteration_bounds = array<i64: 2, 2>, scalar_prefetch = 0 : i64, scratch_operands = 0 : i64, tpu.core_type = #tpu.core_type<tc>, window_params = [{transform_indices = @transform_0, window_bounds = array<i64: 1, 32, 4>}, {transform_indices = @transform_1, window_bounds = array<i64: 1, 1, 4, 8, 8>}, {transform_indices = @transform_2, window_bounds = array<i64: 1, 1, 4, 8, 8>}, {transform_indices = @transform_3, window_bounds = array<i64: 1, 4, 9, 8>}, {transform_indices = @transform_4, window_bounds = array<i64: 1, 4, 8, 8>}, {transform_indices = @transform_5, window_bounds = array<i64: 1, 4, 9, 8>}, {transform_indices = @transform_6, window_bounds = array<i64: 1, 4, 9, 8>}, {transform_indices = @transform_7, window_bounds = array<i64: 1, 1, 4>}, {transform_indices = @transform_8, window_bounds = array<i64: 1, 8, 1>}, {pipeline_mode = #tpu.pipeline_mode<synchronous>, transform_indices = @transform_9, window_bounds = array<i64: 9, 8, 4>}, {pipeline_mode = #tpu.pipeline_mode<synchronous>, transform_indices = @transform_10, window_bounds = array<i64: 1, 4>}, {transform_indices = @transform_11, window_bounds = array<i64: 1, 32, 4>}]} {
    %c0 = arith.constant 0 : index
    %c0_0 = arith.constant 0 : index
    %c0_1 = arith.constant 0 : index
    %0 = vector.load %arg9[%c0, %c0_0, %c0_1] : memref<1x1x4xf32, #tpu.memory_space<vmem>>, vector<1x1x4xf32>
    %1 = vector.shape_cast %0 : vector<1x1x4xf32> to vector<1x4xf32>
    %c0_2 = arith.constant 0 : index
    %c0_3 = arith.constant 0 : index
    %c0_4 = arith.constant 0 : index
    %2 = vector.load %arg10[%c0_2, %c0_3, %c0_4] : memref<1x8x1xf32, #tpu.memory_space<vmem>>, vector<1x8x1xf32>
    %3 = vector.shape_cast %2 : vector<1x8x1xf32> to vector<8x1xf32>
    %c0_5 = arith.constant 0 : index
    %c0_6 = arith.constant 0 : index
    %c0_7 = arith.constant 0 : index
    %4 = vector.load %arg2[%c0_5, %c0_6, %c0_7] : memref<1x32x4xf32, #tpu.memory_space<vmem>>, vector<1x32x4xf32>
    %5 = vector.shape_cast %4 : vector<1x32x4xf32> to vector<32x4xf32>
    %6 = vector.broadcast %1 : vector<1x4xf32> to vector<32x4xf32>
    %7 = arith.mulf %5, %6 : vector<32x4xf32>
    %c0_8 = arith.constant 0 : index
    %c0_9 = arith.constant 0 : index
    %8 = vector.load %arg12[%c0_8, %c0_9] : memref<1x4xf32, #tpu.memory_space<vmem>>, vector<1x4xf32>
    %9 = vector.broadcast %8 : vector<1x4xf32> to vector<32x4xf32>
    %10 = arith.addf %7, %9 : vector<32x4xf32>
    %c0_10 = arith.constant 0 : index
    %c0_11 = arith.constant 0 : index
    %c0_12 = arith.constant 0 : index
    %11 = vector.load %arg13[%c0_10, %c0_11, %c0_12] : memref<1x32x4xf32, #tpu.memory_space<vmem>>, vector<1x32x4xf32>
    %12 = vector.shape_cast %11 : vector<1x32x4xf32> to vector<32x4xf32>
    %13 = vector.shape_cast %10 : vector<32x4xf32> to vector<1x32x4xf32>
    tpu.vector_store %arg13[%c0_10, %c0_11, %c0_12], %13 {strides = array<i32>} : memref<1x32x4xf32, #tpu.memory_space<vmem>>, vector<1x32x4xf32>,
    %c0_13 = arith.constant 0 : index
    %c0_14 = arith.constant 0 : index
    %c0_15 = arith.constant 0 : index
    %14 = vector.load %arg13[%c0_13, %c0_14, %c0_15] : memref<1x32x4xf32, #tpu.memory_space<vmem>>, vector<1x32x4xf32>
    %15 = vector.shape_cast %14 : vector<1x32x4xf32> to vector<32x4xf32>
    %c0_16 = arith.constant 0 : index
    %c0_17 = arith.constant 0 : index
    %c0_18 = arith.constant 0 : index
    %c0_19 = arith.constant 0 : index
    %c0_20 = arith.constant 0 : index
    %16 = vector.load %arg3[%c0_16, %c0_17, %c0_18, %c0_19, %c0_20] : memref<1x1x4x8x8xf32, #tpu.memory_space<vmem>>, vector<1x1x4x8x8xf32>
    %17 = vector.shape_cast %16 : vector<1x1x4x8x8xf32> to vector<4x8x8xf32>
    %18 = vector.shape_cast %17 : vector<4x8x8xf32> to vector<32x8xf32>
    %c4 = arith.constant 4 : index
    %c0_21 = arith.constant 0 : index
    %c0_22 = arith.constant 0 : index
    %19 = vector.load %arg11[%c4, %c0_21, %c0_22] : memref<9x8x4xf32, #tpu.memory_space<vmem>>, vector<1x8x4xf32>
    %20 = vector.shape_cast %19 : vector<1x8x4xf32> to vector<8x4xf32>
    %21 = vector.broadcast %3 : vector<8x1xf32> to vector<8x4xf32>
    %22 = arith.mulf %20, %21 : vector<8x4xf32>
    %cst = arith.constant dense<0.000000e+00> : vector<32x4xf32>
    %23 = tpu.matmul %18, %22, %cst {dimension_numbers = #tpu.dot_dimension_numbers<[1], [0], [0], [1], [0, 0, 1, 1], [], []>} : vector<32x8xf32>, vector<8x4xf32>, vector<32x4xf32> -> vector<32x4xf32>
    %24 = arith.addf %15, %23 : vector<32x4xf32>
    %c0_23 = arith.constant 0 : index
    %c0_24 = arith.constant 0 : index
    %c0_25 = arith.constant 0 : index
    %25 = vector.load %arg13[%c0_23, %c0_24, %c0_25] : memref<1x32x4xf32, #tpu.memory_space<vmem>>, vector<1x32x4xf32>
    %26 = vector.shape_cast %25 : vector<1x32x4xf32> to vector<32x4xf32>
    %27 = vector.shape_cast %24 : vector<32x4xf32> to vector<1x32x4xf32>
    tpu.vector_store %arg13[%c0_23, %c0_24, %c0_25], %27 {strides = array<i32>} : memref<1x32x4xf32, #tpu.memory_space<vmem>>, vector<1x32x4xf32>,
    %c0_26 = arith.constant 0 : index
    %c0_27 = arith.constant 0 : index
    %c0_28 = arith.constant 0 : index
    %28 = vector.load %arg13[%c0_26, %c0_27, %c0_28] : memref<1x32x4xf32, #tpu.memory_space<vmem>>, vector<1x32x4xf32>
    %29 = vector.shape_cast %28 : vector<1x32x4xf32> to vector<32x4xf32>
    %c0_29 = arith.constant 0 : index
    %c0_30 = arith.constant 0 : index
    %c0_31 = arith.constant 0 : index
    %c0_32 = arith.constant 0 : index
    %c0_33 = arith.constant 0 : index
    %30 = vector.load %arg4[%c0_29, %c0_30, %c0_31, %c0_32, %c0_33] : memref<1x1x4x8x8xf32, #tpu.memory_space<vmem>>, vector<1x1x4x8x8xf32>
    %31 = vector.shape_cast %30 : vector<1x1x4x8x8xf32> to vector<4x8x8xf32>
    %32 = vector.shape_cast %31 : vector<4x8x8xf32> to vector<32x8xf32>
    %c7 = arith.constant 7 : index
    %c0_34 = arith.constant 0 : index
    %c0_35 = arith.constant 0 : index
    %33 = vector.load %arg11[%c7, %c0_34, %c0_35] : memref<9x8x4xf32, #tpu.memory_space<vmem>>, vector<1x8x4xf32>
    %34 = vector.shape_cast %33 : vector<1x8x4xf32> to vector<8x4xf32>
    %35 = vector.broadcast %3 : vector<8x1xf32> to vector<8x4xf32>
    %36 = arith.mulf %34, %35 : vector<8x4xf32>
    %cst_36 = arith.constant dense<0.000000e+00> : vector<32x4xf32>
    %37 = tpu.matmul %32, %36, %cst_36 {dimension_numbers = #tpu.dot_dimension_numbers<[1], [0], [0], [1], [0, 0, 1, 1], [], []>} : vector<32x8xf32>, vector<8x4xf32>, vector<32x4xf32> -> vector<32x4xf32>
    %38 = arith.addf %29, %37 : vector<32x4xf32>
    %c0_37 = arith.constant 0 : index
    %c0_38 = arith.constant 0 : index
    %c0_39 = arith.constant 0 : index
    %39 = vector.load %arg13[%c0_37, %c0_38, %c0_39] : memref<1x32x4xf32, #tpu.memory_space<vmem>>, vector<1x32x4xf32>
    %40 = vector.shape_cast %39 : vector<1x32x4xf32> to vector<32x4xf32>
    %41 = vector.shape_cast %38 : vector<32x4xf32> to vector<1x32x4xf32>
    tpu.vector_store %arg13[%c0_37, %c0_38, %c0_39], %41 {strides = array<i32>} : memref<1x32x4xf32, #tpu.memory_space<vmem>>, vector<1x32x4xf32>,
    %c0_40 = arith.constant 0 : index
    %c0_41 = arith.constant 0 : index
    %c0_42 = arith.constant 0 : index
    %42 = vector.load %arg13[%c0_40, %c0_41, %c0_42] : memref<1x32x4xf32, #tpu.memory_space<vmem>>, vector<1x32x4xf32>
    %43 = vector.shape_cast %42 : vector<1x32x4xf32> to vector<32x4xf32>
    %c0_43 = arith.constant 0 : index
    %c0_44 = arith.constant 0 : index
    %c0_45 = arith.constant 0 : index
    %c0_46 = arith.constant 0 : index
    %44 = vector.load %arg5[%c0_43, %c0_44, %c0_45, %c0_46] : memref<1x4x9x8xf32, #tpu.memory_space<vmem>>, vector<1x4x8x8xf32>
    %45 = vector.shape_cast %44 : vector<1x4x8x8xf32> to vector<4x8x8xf32>
    %46 = vector.shape_cast %45 : vector<4x8x8xf32> to vector<32x8xf32>
    %c3 = arith.constant 3 : index
    %c0_47 = arith.constant 0 : index
    %c0_48 = arith.constant 0 : index
    %47 = vector.load %arg11[%c3, %c0_47, %c0_48] : memref<9x8x4xf32, #tpu.memory_space<vmem>>, vector<1x8x4xf32>
    %48 = vector.shape_cast %47 : vector<1x8x4xf32> to vector<8x4xf32>
    %49 = vector.broadcast %3 : vector<8x1xf32> to vector<8x4xf32>
    %50 = arith.mulf %48, %49 : vector<8x4xf32>
    %cst_49 = arith.constant dense<0.000000e+00> : vector<32x4xf32>
    %51 = tpu.matmul %46, %50, %cst_49 {dimension_numbers = #tpu.dot_dimension_numbers<[1], [0], [0], [1], [0, 0, 1, 1], [], []>} : vector<32x8xf32>, vector<8x4xf32>, vector<32x4xf32> -> vector<32x4xf32>
    %52 = arith.addf %43, %51 : vector<32x4xf32>
    %c0_50 = arith.constant 0 : index
    %c0_51 = arith.constant 0 : index
    %c0_52 = arith.constant 0 : index
    %53 = vector.load %arg13[%c0_50, %c0_51, %c0_52] : memref<1x32x4xf32, #tpu.memory_space<vmem>>, vector<1x32x4xf32>
    %54 = vector.shape_cast %53 : vector<1x32x4xf32> to vector<32x4xf32>
    %55 = vector.shape_cast %52 : vector<32x4xf32> to vector<1x32x4xf32>
    tpu.vector_store %arg13[%c0_50, %c0_51, %c0_52], %55 {strides = array<i32>} : memref<1x32x4xf32, #tpu.memory_space<vmem>>, vector<1x32x4xf32>,
    %c0_53 = arith.constant 0 : index
    %c0_54 = arith.constant 0 : index
    %c0_55 = arith.constant 0 : index
    %56 = vector.load %arg13[%c0_53, %c0_54, %c0_55] : memref<1x32x4xf32, #tpu.memory_space<vmem>>, vector<1x32x4xf32>
    %57 = vector.shape_cast %56 : vector<1x32x4xf32> to vector<32x4xf32>
    %c0_56 = arith.constant 0 : index
    %c0_57 = arith.constant 0 : index
    %c1 = arith.constant 1 : index
    %c0_58 = arith.constant 0 : index
    %58 = vector.load %arg5[%c0_56, %c0_57, %c1, %c0_58] : memref<1x4x9x8xf32, #tpu.memory_space<vmem>>, vector<1x4x8x8xf32>
    %59 = vector.shape_cast %58 : vector<1x4x8x8xf32> to vector<4x8x8xf32>
    %60 = vector.shape_cast %59 : vector<4x8x8xf32> to vector<32x8xf32>
    %c5 = arith.constant 5 : index
    %c0_59 = arith.constant 0 : index
    %c0_60 = arith.constant 0 : index
    %61 = vector.load %arg11[%c5, %c0_59, %c0_60] : memref<9x8x4xf32, #tpu.memory_space<vmem>>, vector<1x8x4xf32>
    %62 = vector.shape_cast %61 : vector<1x8x4xf32> to vector<8x4xf32>
    %63 = vector.broadcast %3 : vector<8x1xf32> to vector<8x4xf32>
    %64 = arith.mulf %62, %63 : vector<8x4xf32>
    %cst_61 = arith.constant dense<0.000000e+00> : vector<32x4xf32>
    %65 = tpu.matmul %60, %64, %cst_61 {dimension_numbers = #tpu.dot_dimension_numbers<[1], [0], [0], [1], [0, 0, 1, 1], [], []>} : vector<32x8xf32>, vector<8x4xf32>, vector<32x4xf32> -> vector<32x4xf32>
    %66 = arith.addf %57, %65 : vector<32x4xf32>
    %c0_62 = arith.constant 0 : index
    %c0_63 = arith.constant 0 : index
    %c0_64 = arith.constant 0 : index
    %67 = vector.load %arg13[%c0_62, %c0_63, %c0_64] : memref<1x32x4xf32, #tpu.memory_space<vmem>>, vector<1x32x4xf32>
    %68 = vector.shape_cast %67 : vector<1x32x4xf32> to vector<32x4xf32>
    %69 = vector.shape_cast %66 : vector<32x4xf32> to vector<1x32x4xf32>
    tpu.vector_store %arg13[%c0_62, %c0_63, %c0_64], %69 {strides = array<i32>} : memref<1x32x4xf32, #tpu.memory_space<vmem>>, vector<1x32x4xf32>,
    %c0_65 = arith.constant 0 : index
    %c0_66 = arith.constant 0 : index
    %c0_67 = arith.constant 0 : index
    %70 = vector.load %arg13[%c0_65, %c0_66, %c0_67] : memref<1x32x4xf32, #tpu.memory_space<vmem>>, vector<1x32x4xf32>
    %71 = vector.shape_cast %70 : vector<1x32x4xf32> to vector<32x4xf32>
    %c0_68 = arith.constant 0 : index
    %c0_69 = arith.constant 0 : index
    %c0_70 = arith.constant 0 : index
    %c0_71 = arith.constant 0 : index
    %72 = vector.load %arg6[%c0_68, %c0_69, %c0_70, %c0_71] : memref<1x4x8x8xf32, #tpu.memory_space<vmem>>, vector<1x4x8x8xf32>
    %73 = vector.shape_cast %72 : vector<1x4x8x8xf32> to vector<4x8x8xf32>
    %74 = vector.shape_cast %73 : vector<4x8x8xf32> to vector<32x8xf32>
    %c1_72 = arith.constant 1 : index
    %c0_73 = arith.constant 0 : index
    %c0_74 = arith.constant 0 : index
    %75 = vector.load %arg11[%c1_72, %c0_73, %c0_74] : memref<9x8x4xf32, #tpu.memory_space<vmem>>, vector<1x8x4xf32>
    %76 = vector.shape_cast %75 : vector<1x8x4xf32> to vector<8x4xf32>
    %77 = vector.broadcast %3 : vector<8x1xf32> to vector<8x4xf32>
    %78 = arith.mulf %76, %77 : vector<8x4xf32>
    %cst_75 = arith.constant dense<0.000000e+00> : vector<32x4xf32>
    %79 = tpu.matmul %74, %78, %cst_75 {dimension_numbers = #tpu.dot_dimension_numbers<[1], [0], [0], [1], [0, 0, 1, 1], [], []>} : vector<32x8xf32>, vector<8x4xf32>, vector<32x4xf32> -> vector<32x4xf32>
    %80 = arith.addf %71, %79 : vector<32x4xf32>
    %c0_76 = arith.constant 0 : index
    %c0_77 = arith.constant 0 : index
    %c0_78 = arith.constant 0 : index
    %81 = vector.load %arg13[%c0_76, %c0_77, %c0_78] : memref<1x32x4xf32, #tpu.memory_space<vmem>>, vector<1x32x4xf32>
    %82 = vector.shape_cast %81 : vector<1x32x4xf32> to vector<32x4xf32>
    %83 = vector.shape_cast %80 : vector<32x4xf32> to vector<1x32x4xf32>
    tpu.vector_store %arg13[%c0_76, %c0_77, %c0_78], %83 {strides = array<i32>} : memref<1x32x4xf32, #tpu.memory_space<vmem>>, vector<1x32x4xf32>,
    %c0_79 = arith.constant 0 : index
    %c0_80 = arith.constant 0 : index
    %c0_81 = arith.constant 0 : index
    %84 = vector.load %arg13[%c0_79, %c0_80, %c0_81] : memref<1x32x4xf32, #tpu.memory_space<vmem>>, vector<1x32x4xf32>
    %85 = vector.shape_cast %84 : vector<1x32x4xf32> to vector<32x4xf32>
    %c0_82 = arith.constant 0 : index
    %c0_83 = arith.constant 0 : index
    %c0_84 = arith.constant 0 : index
    %c0_85 = arith.constant 0 : index
    %86 = vector.load %arg8[%c0_82, %c0_83, %c0_84, %c0_85] : memref<1x4x9x8xf32, #tpu.memory_space<vmem>>, vector<1x4x8x8xf32>
    %87 = vector.shape_cast %86 : vector<1x4x8x8xf32> to vector<4x8x8xf32>
    %88 = vector.shape_cast %87 : vector<4x8x8xf32> to vector<32x8xf32>
    %c0_86 = arith.constant 0 : index
    %c0_87 = arith.constant 0 : index
    %c0_88 = arith.constant 0 : index
    %89 = vector.load %arg11[%c0_86, %c0_87, %c0_88] : memref<9x8x4xf32, #tpu.memory_space<vmem>>, vector<1x8x4xf32>
    %90 = vector.shape_cast %89 : vector<1x8x4xf32> to vector<8x4xf32>
    %91 = vector.broadcast %3 : vector<8x1xf32> to vector<8x4xf32>
    %92 = arith.mulf %90, %91 : vector<8x4xf32>
    %cst_89 = arith.constant dense<0.000000e+00> : vector<32x4xf32>
    %93 = tpu.matmul %88, %92, %cst_89 {dimension_numbers = #tpu.dot_dimension_numbers<[1], [0], [0], [1], [0, 0, 1, 1], [], []>} : vector<32x8xf32>, vector<8x4xf32>, vector<32x4xf32> -> vector<32x4xf32>
    %94 = arith.addf %85, %93 : vector<32x4xf32>
    %c0_90 = arith.constant 0 : index
    %c0_91 = arith.constant 0 : index
    %c0_92 = arith.constant 0 : index
    %95 = vector.load %arg13[%c0_90, %c0_91, %c0_92] : memref<1x32x4xf32, #tpu.memory_space<vmem>>, vector<1x32x4xf32>
    %96 = vector.shape_cast %95 : vector<1x32x4xf32> to vector<32x4xf32>
    %97 = vector.shape_cast %94 : vector<32x4xf32> to vector<1x32x4xf32>
    tpu.vector_store %arg13[%c0_90, %c0_91, %c0_92], %97 {strides = array<i32>} : memref<1x32x4xf32, #tpu.memory_space<vmem>>, vector<1x32x4xf32>,
    %c0_93 = arith.constant 0 : index
    %c0_94 = arith.constant 0 : index
    %c0_95 = arith.constant 0 : index
    %98 = vector.load %arg13[%c0_93, %c0_94, %c0_95] : memref<1x32x4xf32, #tpu.memory_space<vmem>>, vector<1x32x4xf32>
    %99 = vector.shape_cast %98 : vector<1x32x4xf32> to vector<32x4xf32>
    %c0_96 = arith.constant 0 : index
    %c0_97 = arith.constant 0 : index
    %c1_98 = arith.constant 1 : index
    %c0_99 = arith.constant 0 : index
    %100 = vector.load %arg8[%c0_96, %c0_97, %c1_98, %c0_99] : memref<1x4x9x8xf32, #tpu.memory_space<vmem>>, vector<1x4x8x8xf32>
    %101 = vector.shape_cast %100 : vector<1x4x8x8xf32> to vector<4x8x8xf32>
    %102 = vector.shape_cast %101 : vector<4x8x8xf32> to vector<32x8xf32>
    %c2 = arith.constant 2 : index
    %c0_100 = arith.constant 0 : index
    %c0_101 = arith.constant 0 : index
    %103 = vector.load %arg11[%c2, %c0_100, %c0_101] : memref<9x8x4xf32, #tpu.memory_space<vmem>>, vector<1x8x4xf32>
    %104 = vector.shape_cast %103 : vector<1x8x4xf32> to vector<8x4xf32>
    %105 = vector.broadcast %3 : vector<8x1xf32> to vector<8x4xf32>
    %106 = arith.mulf %104, %105 : vector<8x4xf32>
    %cst_102 = arith.constant dense<0.000000e+00> : vector<32x4xf32>
    %107 = tpu.matmul %102, %106, %cst_102 {dimension_numbers = #tpu.dot_dimension_numbers<[1], [0], [0], [1], [0, 0, 1, 1], [], []>} : vector<32x8xf32>, vector<8x4xf32>, vector<32x4xf32> -> vector<32x4xf32>
    %108 = arith.addf %99, %107 : vector<32x4xf32>
    %c0_103 = arith.constant 0 : index
    %c0_104 = arith.constant 0 : index
    %c0_105 = arith.constant 0 : index
    %109 = vector.load %arg13[%c0_103, %c0_104, %c0_105] : memref<1x32x4xf32, #tpu.memory_space<vmem>>, vector<1x32x4xf32>
    %110 = vector.shape_cast %109 : vector<1x32x4xf32> to vector<32x4xf32>
    %111 = vector.shape_cast %108 : vector<32x4xf32> to vector<1x32x4xf32>
    tpu.vector_store %arg13[%c0_103, %c0_104, %c0_105], %111 {strides = array<i32>} : memref<1x32x4xf32, #tpu.memory_space<vmem>>, vector<1x32x4xf32>,
    %c0_106 = arith.constant 0 : index
    %c0_107 = arith.constant 0 : index
    %c0_108 = arith.constant 0 : index
    %112 = vector.load %arg13[%c0_106, %c0_107, %c0_108] : memref<1x32x4xf32, #tpu.memory_space<vmem>>, vector<1x32x4xf32>
    %113 = vector.shape_cast %112 : vector<1x32x4xf32> to vector<32x4xf32>
    %c0_109 = arith.constant 0 : index
    %c0_110 = arith.constant 0 : index
    %c0_111 = arith.constant 0 : index
    %c0_112 = arith.constant 0 : index
    %114 = vector.load %arg7[%c0_109, %c0_110, %c0_111, %c0_112] : memref<1x4x9x8xf32, #tpu.memory_space<vmem>>, vector<1x4x8x8xf32>
    %115 = vector.shape_cast %114 : vector<1x4x8x8xf32> to vector<4x8x8xf32>
    %116 = vector.shape_cast %115 : vector<4x8x8xf32> to vector<32x8xf32>
    %c6 = arith.constant 6 : index
    %c0_113 = arith.constant 0 : index
    %c0_114 = arith.constant 0 : index
    %117 = vector.load %arg11[%c6, %c0_113, %c0_114] : memref<9x8x4xf32, #tpu.memory_space<vmem>>, vector<1x8x4xf32>
    %118 = vector.shape_cast %117 : vector<1x8x4xf32> to vector<8x4xf32>
    %119 = vector.broadcast %3 : vector<8x1xf32> to vector<8x4xf32>
    %120 = arith.mulf %118, %119 : vector<8x4xf32>
    %cst_115 = arith.constant dense<0.000000e+00> : vector<32x4xf32>
    %121 = tpu.matmul %116, %120, %cst_115 {dimension_numbers = #tpu.dot_dimension_numbers<[1], [0], [0], [1], [0, 0, 1, 1], [], []>} : vector<32x8xf32>, vector<8x4xf32>, vector<32x4xf32> -> vector<32x4xf32>
    %122 = arith.addf %113, %121 : vector<32x4xf32>
    %c0_116 = arith.constant 0 : index
    %c0_117 = arith.constant 0 : index
    %c0_118 = arith.constant 0 : index
    %123 = vector.load %arg13[%c0_116, %c0_117, %c0_118] : memref<1x32x4xf32, #tpu.memory_space<vmem>>, vector<1x32x4xf32>
    %124 = vector.shape_cast %123 : vector<1x32x4xf32> to vector<32x4xf32>
    %125 = vector.shape_cast %122 : vector<32x4xf32> to vector<1x32x4xf32>
    tpu.vector_store %arg13[%c0_116, %c0_117, %c0_118], %125 {strides = array<i32>} : memref<1x32x4xf32, #tpu.memory_space<vmem>>, vector<1x32x4xf32>,
    %c0_119 = arith.constant 0 : index
    %c0_120 = arith.constant 0 : index
    %c0_121 = arith.constant 0 : index
    %126 = vector.load %arg13[%c0_119, %c0_120, %c0_121] : memref<1x32x4xf32, #tpu.memory_space<vmem>>, vector<1x32x4xf32>
    %127 = vector.shape_cast %126 : vector<1x32x4xf32> to vector<32x4xf32>
    %c0_122 = arith.constant 0 : index
    %c0_123 = arith.constant 0 : index
    %c1_124 = arith.constant 1 : index
    %c0_125 = arith.constant 0 : index
    %128 = vector.load %arg7[%c0_122, %c0_123, %c1_124, %c0_125] : memref<1x4x9x8xf32, #tpu.memory_space<vmem>>, vector<1x4x8x8xf32>
    %129 = vector.shape_cast %128 : vector<1x4x8x8xf32> to vector<4x8x8xf32>
    %130 = vector.shape_cast %129 : vector<4x8x8xf32> to vector<32x8xf32>
    %c8 = arith.constant 8 : index
    %c0_126 = arith.constant 0 : index
    %c0_127 = arith.constant 0 : index
    %131 = vector.load %arg11[%c8, %c0_126, %c0_127] : memref<9x8x4xf32, #tpu.memory_space<vmem>>, vector<1x8x4xf32>
    %132 = vector.shape_cast %131 : vector<1x8x4xf32> to vector<8x4xf32>
    %133 = vector.broadcast %3 : vector<8x1xf32> to vector<8x4xf32>
    %134 = arith.mulf %132, %133 : vector<8x4xf32>
    %cst_128 = arith.constant dense<0.000000e+00> : vector<32x4xf32>
    %135 = tpu.matmul %130, %134, %cst_128 {dimension_numbers = #tpu.dot_dimension_numbers<[1], [0], [0], [1], [0, 0, 1, 1], [], []>} : vector<32x8xf32>, vector<8x4xf32>, vector<32x4xf32> -> vector<32x4xf32>
    %136 = arith.addf %127, %135 : vector<32x4xf32>
    %c0_129 = arith.constant 0 : index
    %c0_130 = arith.constant 0 : index
    %c0_131 = arith.constant 0 : index
    %137 = vector.load %arg13[%c0_129, %c0_130, %c0_131] : memref<1x32x4xf32, #tpu.memory_space<vmem>>, vector<1x32x4xf32>
    %138 = vector.shape_cast %137 : vector<1x32x4xf32> to vector<32x4xf32>
    %139 = vector.shape_cast %136 : vector<32x4xf32> to vector<1x32x4xf32>
    tpu.vector_store %arg13[%c0_129, %c0_130, %c0_131], %139 {strides = array<i32>} : memref<1x32x4xf32, #tpu.memory_space<vmem>>, vector<1x32x4xf32>,
    return
  }
  func.func @transform_0(%arg0: i32, %arg1: i32) -> (i32, i32, i32) {
    %c0_i32 = arith.constant 0 : i32
    %c0_i32_0 = arith.constant 0 : i32
    return %arg0, %arg1, %c0_i32 : i32, i32, i32
  }
  func.func @transform_1(%arg0: i32, %arg1: i32) -> (i32, i32, i32, i32, i32) {
    %c0_i32 = arith.constant 0 : i32
    %c0_i32_0 = arith.constant 0 : i32
    %c0_i32_1 = arith.constant 0 : i32
    %c0_i32_2 = arith.constant 0 : i32
    return %arg0, %c0_i32, %arg1, %c0_i32_0, %c0_i32_1 : i32, i32, i32, i32, i32
  }
  func.func @transform_2(%arg0: i32, %arg1: i32) -> (i32, i32, i32, i32, i32) {
    %c2_i32 = arith.constant 2 : i32
    %c0_i32 = arith.constant 0 : i32
    %c0_i32_0 = arith.constant 0 : i32
    %c0_i32_1 = arith.constant 0 : i32
    return %arg0, %c2_i32, %arg1, %c0_i32, %c0_i32_0 : i32, i32, i32, i32, i32
  }
  func.func @transform_3(%arg0: i32, %arg1: i32) -> (i32, i32, i32, i32) {
    %c0_i32 = arith.constant 0 : i32
    %c0_i32_0 = arith.constant 0 : i32
    %c0_i32_1 = arith.constant 0 : i32
    return %arg0, %arg1, %c0_i32, %c0_i32_0 : i32, i32, i32, i32
  }
  func.func @transform_4(%arg0: i32, %arg1: i32) -> (i32, i32, i32, i32) {
    %c0_i32 = arith.constant 0 : i32
    %c0_i32_0 = arith.constant 0 : i32
    %c0_i32_1 = arith.constant 0 : i32
    return %arg0, %arg1, %c0_i32, %c0_i32_0 : i32, i32, i32, i32
  }
  func.func @transform_5(%arg0: i32, %arg1: i32) -> (i32, i32, i32, i32) {
    %c0_i32 = arith.constant 0 : i32
    %c0_i32_0 = arith.constant 0 : i32
    %c0_i32_1 = arith.constant 0 : i32
    return %arg0, %arg1, %c0_i32, %c0_i32_0 : i32, i32, i32, i32
  }
  func.func @transform_6(%arg0: i32, %arg1: i32) -> (i32, i32, i32, i32) {
    %c0_i32 = arith.constant 0 : i32
    %c0_i32_0 = arith.constant 0 : i32
    %c0_i32_1 = arith.constant 0 : i32
    return %arg0, %arg1, %c0_i32, %c0_i32_0 : i32, i32, i32, i32
  }
  func.func @transform_7(%arg0: i32, %arg1: i32) -> (i32, i32, i32) {
    %c0_i32 = arith.constant 0 : i32
    %c0_i32_0 = arith.constant 0 : i32
    %c0_i32_1 = arith.constant 0 : i32
    return %arg0, %c0_i32, %c0_i32_0 : i32, i32, i32
  }
  func.func @transform_8(%arg0: i32, %arg1: i32) -> (i32, i32, i32) {
    %c0_i32 = arith.constant 0 : i32
    %c0_i32_0 = arith.constant 0 : i32
    %c0_i32_1 = arith.constant 0 : i32
    return %arg0, %c0_i32, %c0_i32_0 : i32, i32, i32
  }
  func.func @transform_9(%arg0: i32, %arg1: i32) -> (i32, i32, i32) {
    %c0_i32 = arith.constant 0 : i32
    %c0_i32_0 = arith.constant 0 : i32
    %c0_i32_1 = arith.constant 0 : i32
    %c0_i32_2 = arith.constant 0 : i32
    return %c0_i32, %c0_i32_0, %c0_i32_1 : i32, i32, i32
  }
  func.func @transform_10(%arg0: i32, %arg1: i32) -> (i32, i32) {
    %c0_i32 = arith.constant 0 : i32
    %c0_i32_0 = arith.constant 0 : i32
    %c0_i32_1 = arith.constant 0 : i32
    return %c0_i32, %c0_i32_0 : i32, i32
  }
  func.func @transform_11(%arg0: i32, %arg1: i32) -> (i32, i32, i32) {
    %c0_i32 = arith.constant 0 : i32
    %c0_i32_0 = arith.constant 0 : i32
    return %arg0, %arg1, %c0_i32 : i32, i32, i32
  }
}

</mosaic_0001>

<llo_original>
// kernel: multi_scale_pca_down.5
$region0: #{multi_scale_pca_down.5}
  #allocation0 [shape = 'u32[]', space=smem, size = 0x4, offset = 0x4, fixed_abs, tag = 'smem constant byte address 0x4 - core index']
  #allocation1 [shape = 'u32[144,128]{1,0:T(1,128)}', space=vmem, size = 0x12000, scoped, tag = 'internal scratch']
  #allocation2 [shape = 'f32[1,8]{1,0:T(1,128)}', space=vmem, size = 0x200, scoped, tag = 'scratch operand']
  %s0 = inlined_call_operand.vmem [shape: f32[2,256,8], index: 0, kind: input, shape index: {}]
  %s1 = inlined_call_operand.vmem [shape: f32[2,1,8], index: 1, kind: output, shape index: {}]
  %s2 = sld [smem:[#allocation0]]
  $region45: #{multi_scale_pca_down.5} parent=0
    _
  %s4 = ssub.s32 1, %s2
  %s5 = scalar_select 0, %s4, %s2
  loop: start=0, step=1, limit=18
  $region2: #{multi_scale_pca_down.5} parent=0 // loop_pre_header
    _
  $region3: #{multi_scale_pca_down.5} parent=0 // loop_header
    %s7 = sphi 0, %s11
    %p8 = scmp.ge.s32.totalorder %s7, 18
    %s14 = sphi 0, %s26
    %s15 = sphi 0, %s22
    %s16 = sphi 0, %s14
    %s17 = sphi 0, %s15
    %s18 = sphi 0, %s16
    %s19 = sphi 0, %s17
    %s31 = sphi 0, %s33
    %s34 = sphi 0, %s31
    %s35 = sphi 0, %s34
    %s51 = sphi 0, %s35
    %s57 = sphi 0, %s59
    %s60 = sphi 0, %s57
    %s61 = sphi 0, %s60
    %s77 = sphi 0, %s61
  $region4: #{multi_scale_pca_down.5} parent=0 // loop_header_branch
    %10 = sbr.rel (%p8) target = $region8
  $region5: #{multi_scale_pca_down.5} parent=0 // loop_body
    %s12 = ssub.s32 %s7, 1
    %s13 = ssub.s32 %s7, 2
    %s20 = sadd.s32 1, %s15
    %p21 = scmp.ge.s32.totalorder %s20, 8
    %s22 = scalar_select %p21, 0, %s20
    %s23 = sadd.s32 1, %s14
    %s24 = scalar_select %p21, %s23, %s14
    %p25 = scmp.ge.s32.totalorder %s24, 2
    %s26 = scalar_select %p25, 0, %s24
    %s27 = ssub.s32 %s14, %s26
    %s28 = ssub.s32 %s15, %s22
    %s29 = sor.u32 %s27, %s28
    %p30 = scmp.eq.s32.totalorder %s29, 0
    %s32 = sadd.s32 %s31, 1
    %s33 = scalar_select %p30, %s31, %s32
    %p36 = pneg %p30
    %p37 = scmp.eq.s32.totalorder %s7, 15
    %p38 = por %p36, %p37
    %p39 = scmp.ne.s32.totalorder %s31, %s34
    %p40 = scmp.eq.s32.totalorder %s7, 0
    %p41 = por %p39, %p40
    %p42 = scmp.ne.s32.totalorder %s31, %s34
    %p43 = scmp.eq.s32.totalorder %s12, 15
    %p44 = por %p42, %p43
    %p45 = scmp.ne.s32.totalorder %s34, %s35
    %p46 = scmp.eq.s32.totalorder %s12, 0
    %p47 = por %p45, %p46
    %p48 = scmp.ne.s32.totalorder %s34, %s35
    %p49 = scmp.eq.s32.totalorder %s13, 15
    %p50 = por %p48, %p49
    %p52 = scmp.ne.s32.totalorder %s35, %s51
    %p53 = scmp.eq.s32.totalorder %s13, 0
    %p54 = por %p52, %p53
    %s55 = ssub.s32 %s14, %s26
    %p56 = scmp.eq.s32.totalorder %s55, 0
    %s58 = sadd.s32 %s57, 1
    %s59 = scalar_select %p56, %s57, %s58
    %p62 = pneg %p56
    %p63 = scmp.eq.s32.totalorder %s7, 15
    %p64 = por %p62, %p63
    %p65 = scmp.ne.s32.totalorder %s57, %s60
    %p66 = scmp.eq.s32.totalorder %s7, 0
    %p67 = por %p65, %p66
    %p68 = scmp.ne.s32.totalorder %s57, %s60
    %p69 = scmp.eq.s32.totalorder %s12, 15
    %p70 = por %p68, %p69
    %p71 = scmp.ne.s32.totalorder %s60, %s61
    %p72 = scmp.eq.s32.totalorder %s12, 0
    %p73 = por %p71, %p72
    %p74 = scmp.ne.s32.totalorder %s60, %s61
    %p75 = scmp.eq.s32.totalorder %s13, 15
    %p76 = por %p74, %p75
    %p78 = scmp.ne.s32.totalorder %s61, %s77
    %p79 = scmp.eq.s32.totalorder %s13, 0
    %p80 = por %p78, %p79
    %p81 = scmp.le.s32.totalorder 1, %s7
    %p82 = scmp.lt.s32.totalorder %s7, 17
    %p83 = pnand %p81, %p82
    %p84 = pneg %p83
    // Predicated region
    $region9: #{multi_scale_pca_down.5} parent=5 // pred_check
      _
    $region10: #{multi_scale_pca_down.5} parent=5 // pred_check_branch
      %86 = sbr.rel (%p83) target = $region12
    $region11: #{multi_scale_pca_down.5} parent=5 // pred_region
      %s87 = ssub.s32 %s7, 1
    $region12: #{multi_scale_pca_down.5} parent=5 // pred_fallthru
      _
    %p88 = scmp.lt.s32.totalorder %s7, 16
    // Predicated region
    $region13: #{multi_scale_pca_down.5} parent=5 // pred_check
      %p89 = pneg %p88
    $region14: #{multi_scale_pca_down.5} parent=5 // pred_check_branch
      %91 = sbr.rel (%p89) target = $region16
    $region15: #{multi_scale_pca_down.5} parent=5 // pred_region
      // Predicated region
      $region17: #{multi_scale_pca_down.5} parent=15 // pred_check
        %p92 = pneg %p41
      $region18: #{multi_scale_pca_down.5} parent=15 // pred_check_branch
        %94 = sbr.rel (%p92) target = $region20
      $region19: #{multi_scale_pca_down.5} parent=15 // pred_region
        %s95 = smul.u32 4, %s15
        %p96 = scmp.lt.s32.totalorder %s14, 1
        %s97 = scalar_select %p96, %s14, 1
        %p98 = scmp.lt.s32.totalorder %s95, 31
        %s99 = scalar_select %p98, %s95, 31
        %s100 = smul.addr %s97, 32
        %s101 = sadd.s32 %s99, %s100
        %s102 = smul.addr %s101, 8
        %s103 = scalar_lea.vmem %s0, %s102
        %s104 = smul.u32 4, %s15
      $region20: #{multi_scale_pca_down.5} parent=15 // pred_fallthru
        _
    $region16: #{multi_scale_pca_down.5} parent=5 // pred_fallthru
      _
    %p105 = scmp.le.s32.totalorder 1, %s7
    %p106 = scmp.lt.s32.totalorder %s7, 17
    %p107 = pnand %p105, %p106
    %p108 = pneg %p107
    // Predicated region
    $region21: #{multi_scale_pca_down.5} parent=5 // pred_check
      _
    $region22: #{multi_scale_pca_down.5} parent=5 // pred_check_branch
      %110 = sbr.rel (%p107) target = $region24
    $region23: #{multi_scale_pca_down.5} parent=5 // pred_region
      %s111 = ssub.s32 %s7, 1
      %s112 = smul.u32 4, %s17
      %p113 = scmp.lt.s32.totalorder %s16, 1
      %s114 = scalar_select %p113, %s16, 1
      %p115 = scmp.lt.s32.totalorder %s112, 31
      %s116 = scalar_select %p115, %s112, 31
      %s117 = smul.addr %s114, 32
      %s118 = sadd.s32 %s116, %s117
      %s119 = smul.addr %s118, 8
      %s120 = scalar_lea.vmem %s0, %s119
      %p121 = pneg %p47
      %p122 = pneg %p44
      %p123 = pneg %p73
      %p124 = pneg %p70
      %p125 = scmp.lt.s32.totalorder %s16, 1
      %s126 = scalar_select %p125, %s16, 1
      %s127 = scalar_lea.vmem %s1, %s126
      %s128 = smul.u32 4, %s17
      %p129 = scmp.lt.s32.totalorder %s16, 1
      %s130 = scalar_select %p129, %s16, 1
      %p131 = scmp.lt.s32.totalorder %s128, 31
      %s132 = scalar_select %p131, %s128, 31
      %s133 = smul.addr %s130, 32
      %s134 = sadd.s32 %s132, %s133
      %s135 = smul.addr %s134, 8
      %s136 = scalar_lea.vmem %s0, %s135
      %s137 = smul.u32 4, %s17
      %p138 = scmp.lt.s32.totalorder %s16, 1
      %s139 = scalar_select %p138, %s16, 1
      %s140 = scalar_lea.vmem %s1, %s139
      %p141 = scmp.eq.s32.totalorder %s17, 0
      // Predicated region
      $region25: #{multi_scale_pca_down.5} parent=23 // pred_check
        %p142 = pneg %p141
      $region26: #{multi_scale_pca_down.5} parent=23 // pred_check_branch
        %144 = sbr.rel (%p142) target = $region28
      $region27: #{multi_scale_pca_down.5} parent=23 // pred_region
        %vm145 = vcmask 57344
        %146 = vst.msk [vmem:[#allocation2] sm:$0x1] %vm145, 0.0
      $region28: #{multi_scale_pca_down.5} parent=23 // pred_fallthru
        _
      %v147 = vld [vmem:[#allocation2] sm:$0x1]
      %v148 = vld [vmem:[%s136] sm:$0xff]
      %v149 = vld [vmem:[%s136 + $0x8] sm:$0xff]
      %v150 = vld [vmem:[%s136 + $0x10] sm:$0xff]
      %v151 = vld [vmem:[%s136 + $0x18] sm:$0xff]
      %vm152 = vcmask 64512
      %v153 = vsel %vm152, %v148, 0.0
      %v154 = vsel %vm152, %v149, 0.0
      %v155 = vadd.f32 %v153, %v154
      %v156 = vsel %vm152, %v150, 0.0
      %v157 = vadd.f32 %v155, %v156
      %v158 = vsel %vm152, %v151, 0.0
      %v159 = vadd.f32 %v157, %v158
      %v160 = vrot.slane %v159, 4
      %v161 = vadd.f32 %v159, %v160
      %v162 = vrot.slane %v161, 2
      %v163 = vadd.f32 %v161, %v162
      %v164 = vrot.slane %v163, 1
      %v165 = vadd.f32 %v163, %v164
      %v166 = vadd.f32 %v147, %v165
      %vm167 = vcmask 57344
      %168 = vst.msk [vmem:[#allocation2] sm:$0x1] %vm167, %v166
      %p169 = scmp.eq.s32.totalorder %s17, 7
      // Predicated region
      $region29: #{multi_scale_pca_down.5} parent=23 // pred_check
        %p170 = pneg %p169
      $region30: #{multi_scale_pca_down.5} parent=23 // pred_check_branch
        %172 = sbr.rel (%p170) target = $region32
      $region31: #{multi_scale_pca_down.5} parent=23 // pred_region
        %v173 = vld [vmem:[#allocation2] sm:$0x1]
        %v174 = vmul.f32 %v173, 0.00390625
        %175 = vst.msk [vmem:[%s140] sm:$0x1] %vm167, %v174
      $region32: #{multi_scale_pca_down.5} parent=23 // pred_fallthru
        _
      %p176 = scmp.lt.s32.totalorder %s16, 1
      %s177 = scalar_select %p176, %s16, 1
      %s178 = scalar_lea.vmem %s1, %s177
      // Predicated region
      $region33: #{multi_scale_pca_down.5} parent=23 // pred_check
        %p179 = pneg %p70
      $region34: #{multi_scale_pca_down.5} parent=23 // pred_check_branch
        %181 = sbr.rel (%p179) target = $region36
      $region35: #{multi_scale_pca_down.5} parent=23 // pred_region
        _
      $region36: #{multi_scale_pca_down.5} parent=23 // pred_fallthru
        _
    $region24: #{multi_scale_pca_down.5} parent=5 // pred_fallthru
      _
    %p182 = scmp.le.s32.totalorder 2, %s7
    // Predicated region
    $region37: #{multi_scale_pca_down.5} parent=5 // pred_check
      %p183 = pneg %p182
    $region38: #{multi_scale_pca_down.5} parent=5 // pred_check_branch
      %185 = sbr.rel (%p183) target = $region40
    $region39: #{multi_scale_pca_down.5} parent=5 // pred_region
      %s186 = ssub.s32 %s7, 2
      // Predicated region
      $region41: #{multi_scale_pca_down.5} parent=39 // pred_check
        %p187 = pneg %p76
      $region42: #{multi_scale_pca_down.5} parent=39 // pred_check_branch
        %189 = sbr.rel (%p187) target = $region44
      $region43: #{multi_scale_pca_down.5} parent=39 // pred_region
        %p190 = scmp.lt.s32.totalorder %s18, 1
        %s191 = scalar_select %p190, %s18, 1
        %s192 = scalar_lea.vmem %s1, %s191
      $region44: #{multi_scale_pca_down.5} parent=39 // pred_fallthru
        _
    $region40: #{multi_scale_pca_down.5} parent=5 // pred_fallthru
      _
  $region6: #{multi_scale_pca_down.5} parent=0 // loop_footer
    %s11 = sadd.s32 1, %s7
  $region7: #{multi_scale_pca_down.5} parent=0 // loop_footer_branch
    %6 = sbr.rel target = $region3
  $region8: #{multi_scale_pca_down.5} parent=0 // loop_exit
    _

// kernel: multi_scale_pca_down.4
$region0: #{multi_scale_pca_down.4}
  #allocation0 [shape = 'u32[]', space=smem, size = 0x4, offset = 0x4, fixed_abs, tag = 'smem constant byte address 0x4 - core index']
  #allocation1 [shape = 'u32[144,128]{1,0:T(1,128)}', space=vmem, size = 0x12000, scoped, tag = 'internal scratch']
  #allocation2 [shape = 'f32[1,4]{1,0:T(1,128)}', space=vmem, size = 0x200, scoped, tag = 'scratch operand']
  %s0 = inlined_call_operand.vmem [shape: f32[2,64,4], index: 0, kind: input, shape index: {}]
  %s1 = inlined_call_operand.vmem [shape: f32[2,1,4], index: 1, kind: output, shape index: {}]
  %s2 = sld [smem:[#allocation0]]
  $region45: #{multi_scale_pca_down.4} parent=0
    _
  %s4 = ssub.s32 1, %s2
  %s5 = scalar_select 0, %s4, %s2
  loop: start=0, step=1, limit=6
  $region2: #{multi_scale_pca_down.4} parent=0 // loop_pre_header
    _
  $region3: #{multi_scale_pca_down.4} parent=0 // loop_header
    %s7 = sphi 0, %s11
    %p8 = scmp.ge.s32.totalorder %s7, 6
    %s14 = sphi 0, %s26
    %s15 = sphi 0, %s22
    %s16 = sphi 0, %s14
    %s17 = sphi 0, %s15
    %s18 = sphi 0, %s16
    %s19 = sphi 0, %s17
    %s31 = sphi 0, %s33
    %s34 = sphi 0, %s31
    %s35 = sphi 0, %s34
    %s51 = sphi 0, %s35
    %s57 = sphi 0, %s59
    %s60 = sphi 0, %s57
    %s61 = sphi 0, %s60
    %s77 = sphi 0, %s61
  $region4: #{multi_scale_pca_down.4} parent=0 // loop_header_branch
    %10 = sbr.rel (%p8) target = $region8
  $region5: #{multi_scale_pca_down.4} parent=0 // loop_body
    %s12 = ssub.s32 %s7, 1
    %s13 = ssub.s32 %s7, 2
    %s20 = sadd.s32 1, %s15
    %p21 = scmp.ge.s32.totalorder %s20, 2
    %s22 = scalar_select %p21, 0, %s20
    %s23 = sadd.s32 1, %s14
    %s24 = scalar_select %p21, %s23, %s14
    %p25 = scmp.ge.s32.totalorder %s24, 2
    %s26 = scalar_select %p25, 0, %s24
    %s27 = ssub.s32 %s14, %s26
    %s28 = ssub.s32 %s15, %s22
    %s29 = sor.u32 %s27, %s28
    %p30 = scmp.eq.s32.totalorder %s29, 0
    %s32 = sadd.s32 %s31, 1
    %s33 = scalar_select %p30, %s31, %s32
    %p36 = pneg %p30
    %p37 = scmp.eq.s32.totalorder %s7, 3
    %p38 = por %p36, %p37
    %p39 = scmp.ne.s32.totalorder %s31, %s34
    %p40 = scmp.eq.s32.totalorder %s7, 0
    %p41 = por %p39, %p40
    %p42 = scmp.ne.s32.totalorder %s31, %s34
    %p43 = scmp.eq.s32.totalorder %s12, 3
    %p44 = por %p42, %p43
    %p45 = scmp.ne.s32.totalorder %s34, %s35
    %p46 = scmp.eq.s32.totalorder %s12, 0
    %p47 = por %p45, %p46
    %p48 = scmp.ne.s32.totalorder %s34, %s35
    %p49 = scmp.eq.s32.totalorder %s13, 3
    %p50 = por %p48, %p49
    %p52 = scmp.ne.s32.totalorder %s35, %s51
    %p53 = scmp.eq.s32.totalorder %s13, 0
    %p54 = por %p52, %p53
    %s55 = ssub.s32 %s14, %s26
    %p56 = scmp.eq.s32.totalorder %s55, 0
    %s58 = sadd.s32 %s57, 1
    %s59 = scalar_select %p56, %s57, %s58
    %p62 = pneg %p56
    %p63 = scmp.eq.s32.totalorder %s7, 3
    %p64 = por %p62, %p63
    %p65 = scmp.ne.s32.totalorder %s57, %s60
    %p66 = scmp.eq.s32.totalorder %s7, 0
    %p67 = por %p65, %p66
    %p68 = scmp.ne.s32.totalorder %s57, %s60
    %p69 = scmp.eq.s32.totalorder %s12, 3
    %p70 = por %p68, %p69
    %p71 = scmp.ne.s32.totalorder %s60, %s61
    %p72 = scmp.eq.s32.totalorder %s12, 0
    %p73 = por %p71, %p72
    %p74 = scmp.ne.s32.totalorder %s60, %s61
    %p75 = scmp.eq.s32.totalorder %s13, 3
    %p76 = por %p74, %p75
    %p78 = scmp.ne.s32.totalorder %s61, %s77
    %p79 = scmp.eq.s32.totalorder %s13, 0
    %p80 = por %p78, %p79
    %p81 = scmp.le.s32.totalorder 1, %s7
    %p82 = scmp.lt.s32.totalorder %s7, 5
    %p83 = pnand %p81, %p82
    %p84 = pneg %p83
    // Predicated region
    $region9: #{multi_scale_pca_down.4} parent=5 // pred_check
      _
    $region10: #{multi_scale_pca_down.4} parent=5 // pred_check_branch
      %86 = sbr.rel (%p83) target = $region12
    $region11: #{multi_scale_pca_down.4} parent=5 // pred_region
      %s87 = ssub.s32 %s7, 1
    $region12: #{multi_scale_pca_down.4} parent=5 // pred_fallthru
      _
    %p88 = scmp.lt.s32.totalorder %s7, 4
    // Predicated region
    $region13: #{multi_scale_pca_down.4} parent=5 // pred_check
      %p89 = pneg %p88
    $region14: #{multi_scale_pca_down.4} parent=5 // pred_check_branch
      %91 = sbr.rel (%p89) target = $region16
    $region15: #{multi_scale_pca_down.4} parent=5 // pred_region
      // Predicated region
      $region17: #{multi_scale_pca_down.4} parent=15 // pred_check
        %p92 = pneg %p41
      $region18: #{multi_scale_pca_down.4} parent=15 // pred_check_branch
        %94 = sbr.rel (%p92) target = $region20
      $region19: #{multi_scale_pca_down.4} parent=15 // pred_region
        %s95 = smul.u32 4, %s15
        %p96 = scmp.lt.s32.totalorder %s14, 1
        %s97 = scalar_select %p96, %s14, 1
        %p98 = scmp.lt.s32.totalorder %s95, 7
        %s99 = scalar_select %p98, %s95, 7
        %s100 = smul.addr %s97, 8
        %s101 = sadd.s32 %s99, %s100
        %s102 = smul.addr %s101, 8
        %s103 = scalar_lea.vmem %s0, %s102
        %s104 = smul.u32 4, %s15
      $region20: #{multi_scale_pca_down.4} parent=15 // pred_fallthru
        _
    $region16: #{multi_scale_pca_down.4} parent=5 // pred_fallthru
      _
    %p105 = scmp.le.s32.totalorder 1, %s7
    %p106 = scmp.lt.s32.totalorder %s7, 5
    %p107 = pnand %p105, %p106
    %p108 = pneg %p107
    // Predicated region
    $region21: #{multi_scale_pca_down.4} parent=5 // pred_check
      _
    $region22: #{multi_scale_pca_down.4} parent=5 // pred_check_branch
      %110 = sbr.rel (%p107) target = $region24
    $region23: #{multi_scale_pca_down.4} parent=5 // pred_region
      %s111 = ssub.s32 %s7, 1
      %s112 = smul.u32 4, %s17
      %p113 = scmp.lt.s32.totalorder %s16, 1
      %s114 = scalar_select %p113, %s16, 1
      %p115 = scmp.lt.s32.totalorder %s112, 7
      %s116 = scalar_select %p115, %s112, 7
      %s117 = smul.addr %s114, 8
      %s118 = sadd.s32 %s116, %s117
      %s119 = smul.addr %s118, 8
      %s120 = scalar_lea.vmem %s0, %s119
      %p121 = pneg %p47
      %p122 = pneg %p44
      %p123 = pneg %p73
      %p124 = pneg %p70
      %p125 = scmp.lt.s32.totalorder %s16, 1
      %s126 = scalar_select %p125, %s16, 1
      %s127 = scalar_lea.vmem %s1, %s126
      %s128 = smul.u32 4, %s17
      %p129 = scmp.lt.s32.totalorder %s16, 1
      %s130 = scalar_select %p129, %s16, 1
      %p131 = scmp.lt.s32.totalorder %s128, 7
      %s132 = scalar_select %p131, %s128, 7
      %s133 = smul.addr %s130, 8
      %s134 = sadd.s32 %s132, %s133
      %s135 = smul.addr %s134, 8
      %s136 = scalar_lea.vmem %s0, %s135
      %s137 = smul.u32 4, %s17
      %p138 = scmp.lt.s32.totalorder %s16, 1
      %s139 = scalar_select %p138, %s16, 1
      %s140 = scalar_lea.vmem %s1, %s139
      %p141 = scmp.eq.s32.totalorder %s17, 0
      // Predicated region
      $region25: #{multi_scale_pca_down.4} parent=23 // pred_check
        %p142 = pneg %p141
      $region26: #{multi_scale_pca_down.4} parent=23 // pred_check_branch
        %144 = sbr.rel (%p142) target = $region28
      $region27: #{multi_scale_pca_down.4} parent=23 // pred_region
        %vm145 = vcmask 24576
        %146 = vst.msk [vmem:[#allocation2] sm:$0x1] %vm145, 0.0
      $region28: #{multi_scale_pca_down.4} parent=23 // pred_fallthru
        _
      %v147 = vld [vmem:[#allocation2] sm:$0x1]
      %v148 = vld [vmem:[%s136] sm:$0xff]
      %v149 = vld [vmem:[%s136 + $0x8] sm:$0xff]
      %v150 = vld [vmem:[%s136 + $0x10] sm:$0xff]
      %v151 = vld [vmem:[%s136 + $0x18] sm:$0xff]
      %vm152 = vcmask 31744
      %v153 = vsel %vm152, %v148, 0.0
      %v154 = vsel %vm152, %v149, 0.0
      %v155 = vadd.f32 %v153, %v154
      %v156 = vsel %vm152, %v150, 0.0
      %v157 = vadd.f32 %v155, %v156
      %v158 = vsel %vm152, %v151, 0.0
      %v159 = vadd.f32 %v157, %v158
      %v160 = vrot.slane %v159, 4
      %v161 = vadd.f32 %v159, %v160
      %v162 = vrot.slane %v161, 2
      %v163 = vadd.f32 %v161, %v162
      %v164 = vrot.slane %v163, 1
      %v165 = vadd.f32 %v163, %v164
      %v166 = vadd.f32 %v147, %v165
      %vm167 = vcmask 24576
      %168 = vst.msk [vmem:[#allocation2] sm:$0x1] %vm167, %v166
      %p169 = scmp.eq.s32.totalorder %s17, 1
      // Predicated region
      $region29: #{multi_scale_pca_down.4} parent=23 // pred_check
        %p170 = pneg %p169
      $region30: #{multi_scale_pca_down.4} parent=23 // pred_check_branch
        %172 = sbr.rel (%p170) target = $region32
      $region31: #{multi_scale_pca_down.4} parent=23 // pred_region
        %v173 = vld [vmem:[#allocation2] sm:$0x1]
        %v174 = vmul.f32 %v173, 0.015625
        %175 = vst.msk [vmem:[%s140] sm:$0x1] %vm167, %v174
      $region32: #{multi_scale_pca_down.4} parent=23 // pred_fallthru
        _
      %p176 = scmp.lt.s32.totalorder %s16, 1
      %s177 = scalar_select %p176, %s16, 1
      %s178 = scalar_lea.vmem %s1, %s177
      // Predicated region
      $region33: #{multi_scale_pca_down.4} parent=23 // pred_check
        %p179 = pneg %p70
      $region34: #{multi_scale_pca_down.4} parent=23 // pred_check_branch
        %181 = sbr.rel (%p179) target = $region36
      $region35: #{multi_scale_pca_down.4} parent=23 // pred_region
        _
      $region36: #{multi_scale_pca_down.4} parent=23 // pred_fallthru
        _
    $region24: #{multi_scale_pca_down.4} parent=5 // pred_fallthru
      _
    %p182 = scmp.le.s32.totalorder 2, %s7
    // Predicated region
    $region37: #{multi_scale_pca_down.4} parent=5 // pred_check
      %p183 = pneg %p182
    $region38: #{multi_scale_pca_down.4} parent=5 // pred_check_branch
      %185 = sbr.rel (%p183) target = $region40
    $region39: #{multi_scale_pca_down.4} parent=5 // pred_region
      %s186 = ssub.s32 %s7, 2
      // Predicated region
      $region41: #{multi_scale_pca_down.4} parent=39 // pred_check
        %p187 = pneg %p76
      $region42: #{multi_scale_pca_down.4} parent=39 // pred_check_branch
        %189 = sbr.rel (%p187) target = $region44
      $region43: #{multi_scale_pca_down.4} parent=39 // pred_region
        %p190 = scmp.lt.s32.totalorder %s18, 1
        %s191 = scalar_select %p190, %s18, 1
        %s192 = scalar_lea.vmem %s1, %s191
      $region44: #{multi_scale_pca_down.4} parent=39 // pred_fallthru
        _
    $region40: #{multi_scale_pca_down.4} parent=5 // pred_fallthru
      _
  $region6: #{multi_scale_pca_down.4} parent=0 // loop_footer
    %s11 = sadd.s32 1, %s7
  $region7: #{multi_scale_pca_down.4} parent=0 // loop_footer_branch
    %6 = sbr.rel target = $region3
  $region8: #{multi_scale_pca_down.4} parent=0 // loop_exit
    _

// kernel: multi_scale_pca_down.6
$region0: #{multi_scale_pca_down.6}
  #allocation0 [shape = 'u32[]', space=smem, size = 0x4, offset = 0x4, fixed_abs, tag = 'smem constant byte address 0x4 - core index']
  #allocation1 [shape = 'u32[144,128]{1,0:T(1,128)}', space=vmem, size = 0x12000, scoped, tag = 'internal scratch']
  %s0 = inlined_call_operand.vmem [shape: f32[2,4], index: 0, kind: input, shape index: {}]
  %s1 = inlined_call_operand.vmem [shape: f32[2,8], index: 1, kind: input, shape index: {}]
  %s2 = inlined_call_operand.vmem [shape: f32[4,12], index: 2, kind: input, shape index: {}]
  %s3 = inlined_call_operand.vmem [shape: f32[8,12], index: 3, kind: input, shape index: {}]
  %s4 = inlined_call_operand.vmem [shape: f32[2,12], index: 4, kind: output, shape index: {}]
  %s5 = sld [smem:[#allocation0]]
  $region26: #{multi_scale_pca_down.6} parent=0
    _
  %s7 = ssub.s32 1, %s5
  %s8 = scalar_select 0, %s7, %s5
  // Predicated region
  $region2: #{multi_scale_pca_down.6} parent=0 // pred_check
    _
  $region3: #{multi_scale_pca_down.6} parent=0 // pred_check_branch
    %10 = sbr.rel (0) target = $region5
  $region4: #{multi_scale_pca_down.6} parent=0 // pred_region
    _
  $region5: #{multi_scale_pca_down.6} parent=0 // pred_fallthru
    _
  // Predicated region
  $region6: #{multi_scale_pca_down.6} parent=0 // pred_check
    _
  $region7: #{multi_scale_pca_down.6} parent=0 // pred_check_branch
    %12 = sbr.rel (0) target = $region9
  $region8: #{multi_scale_pca_down.6} parent=0 // pred_region
    _
  $region9: #{multi_scale_pca_down.6} parent=0 // pred_fallthru
    _
  // Predicated region
  $region10: #{multi_scale_pca_down.6} parent=0 // pred_check
    _
  $region11: #{multi_scale_pca_down.6} parent=0 // pred_check_branch
    %14 = sbr.rel (0) target = $region13
  $region12: #{multi_scale_pca_down.6} parent=0 // pred_region
    _
  $region13: #{multi_scale_pca_down.6} parent=0 // pred_fallthru
    _
  // Predicated region
  $region14: #{multi_scale_pca_down.6} parent=0 // pred_check
    _
  $region15: #{multi_scale_pca_down.6} parent=0 // pred_check_branch
    %16 = sbr.rel (0) target = $region17
  $region16: #{multi_scale_pca_down.6} parent=0 // pred_region
    _
  $region17: #{multi_scale_pca_down.6} parent=0 // pred_fallthru
    _
  %v17 = vld [vmem:[%s0] sm:$0x3]
  %v18 = vld [vmem:[%s2] sm:$0xf]
  %v19 = vld [vmem:[%s1] sm:$0x3]
  %v20 = vld [vmem:[%s3] sm:$0xff]
  %vm21 = vcmask 64512
  %v23 = vsel %vm21, %v19, 0
  %25 = vmatprep.subr.mxu0 0.0
  %26 = vmatpush1.msra.mxu0 0.0
  %27 = vmatprep.subr.mxu0 0.0
  %28 = vmatpush1.msra.mxu0 0.0
  %29 = vmatprep.subr.mxu0 0.0
  %30 = vmatpush1.msra.mxu0 0.0
  %31 = vmatprep.subr.mxu0 0.0
  %32 = vmatpush1.msra.mxu0 0.0
  %33 = vmatprep.subr.mxu0 0.0
  %34 = vmatpush1.msra.mxu0 0.0
  %35 = vmatprep.subr.mxu0 0.0
  %36 = vmatpush1.msra.mxu0 0.0
  %37 = vmatprep.subr.mxu0 0.0
  %38 = vmatpush1.msra.mxu0 0.0
  %39 = vmatprep.subr.mxu0 0.0
  %40 = vmatpush1.msra.mxu0 0.0
  %41 = vmatprep.subr.mxu0 0.0
  %42 = vmatpush1.msra.mxu0 0.0
  %43 = vmatprep.subr.mxu0 0.0
  %44 = vmatpush1.msra.mxu0 0.0
  %45 = vmatprep.subr.mxu0 0.0
  %46 = vmatpush1.msra.mxu0 0.0
  %47 = vmatprep.subr.mxu0 0.0
  %48 = vmatpush1.msra.mxu0 0.0
  %49 = vmatprep.subr.mxu0 0.0
  %50 = vmatpush1.msra.mxu0 0.0
  %51 = vmatprep.subr.mxu0 0.0
  %52 = vmatpush1.msra.mxu0 0.0
  %53 = vmatprep.subr.mxu0 0.0
  %54 = vmatpush1.msra.mxu0 0.0
  %55 = vmatprep.subr.mxu0 0.0
  %56 = vmatpush1.msra.mxu0 %v20
  %57 = vmatprep.subr.mxu0 0.0
  %58 = vmatpush2.msra.mxu0 0.0
  %59 = vmatprep.subr.mxu0 0.0
  %60 = vmatpush2.msra.mxu0 0.0
  %61 = vmatprep.subr.mxu0 0.0
  %62 = vmatpush2.msra.mxu0 0.0
  %63 = vmatprep.subr.mxu0 0.0
  %64 = vmatpush2.msra.mxu0 0.0
  %65 = vmatprep.subr.mxu0 0.0
  %66 = vmatpush2.msra.mxu0 0.0
  %67 = vmatprep.subr.mxu0 0.0
  %68 = vmatpush2.msra.mxu0 0.0
  %69 = vmatprep.subr.mxu0 0.0
  %70 = vmatpush2.msra.mxu0 0.0
  %71 = vmatprep.subr.mxu0 0.0
  %72 = vmatpush2.msra.mxu0 0.0
  %73 = vmatprep.subr.mxu0 0.0
  %74 = vmatpush2.msra.mxu0 0.0
  %75 = vmatprep.subr.mxu0 0.0
  %76 = vmatpush2.msra.mxu0 0.0
  %77 = vmatprep.subr.mxu0 0.0
  %78 = vmatpush2.msra.mxu0 0.0
  %79 = vmatprep.subr.mxu0 0.0
  %80 = vmatpush2.msra.mxu0 0.0
  %81 = vmatprep.subr.mxu0 0.0
  %82 = vmatpush2.msra.mxu0 0.0
  %83 = vmatprep.subr.mxu0 0.0
  %84 = vmatpush2.msra.mxu0 0.0
  %85 = vmatprep.subr.mxu0 0.0
  %86 = vmatpush2.msra.mxu0 0.0
  %87 = vmatprep.subr.mxu0 0.0
  %88 = vmatpush2.msra.mxu0 0.0
  %89 = vmatprep.mubr.f32.mxu0 0.0
  %90 = vmatmul.mubr.f32.gmra.mxu0 %v23
  %v91 = vpop.f32.mrf.mxu0
  %v92 = vadd.f32 0.0, %v91
  %v93 = vpop.f32.mrf.mxu0
  %94 = vdwg.mxu0
  %vm95 = vcmask 31744
  %v97 = vsel %vm95, %v17, 0
  %vm99 = vcmask 1043456
  %v101 = vsel %vm99, %v18, 0
  %103 = vmatprep.subr.mxu0 0.0
  %104 = vmatpush1.msra.mxu0 0.0
  %105 = vmatprep.subr.mxu0 0.0
  %106 = vmatpush1.msra.mxu0 0.0
  %107 = vmatprep.subr.mxu0 0.0
  %108 = vmatpush1.msra.mxu0 0.0
  %109 = vmatprep.subr.mxu0 0.0
  %110 = vmatpush1.msra.mxu0 0.0
  %111 = vmatprep.subr.mxu0 0.0
  %112 = vmatpush1.msra.mxu0 0.0
  %113 = vmatprep.subr.mxu0 0.0
  %114 = vmatpush1.msra.mxu0 0.0
  %115 = vmatprep.subr.mxu0 0.0
  %116 = vmatpush1.msra.mxu0 0.0
  %117 = vmatprep.subr.mxu0 0.0
  %118 = vmatpush1.msra.mxu0 0.0
  %119 = vmatprep.subr.mxu0 0.0
  %120 = vmatpush1.msra.mxu0 0.0
  %121 = vmatprep.subr.mxu0 0.0
  %122 = vmatpush1.msra.mxu0 0.0
  %123 = vmatprep.subr.mxu0 0.0
  %124 = vmatpush1.msra.mxu0 0.0
  %125 = vmatprep.subr.mxu0 0.0
  %126 = vmatpush1.msra.mxu0 0.0
  %127 = vmatprep.subr.mxu0 0.0
  %128 = vmatpush1.msra.mxu0 0.0
  %129 = vmatprep.subr.mxu0 0.0
  %130 = vmatpush1.msra.mxu0 0.0
  %131 = vmatprep.subr.mxu0 0.0
  %132 = vmatpush1.msra.mxu0 0.0
  %133 = vmatprep.subr.mxu0 0.0
  %134 = vmatpush1.msra.mxu0 %v101
  %135 = vmatprep.subr.mxu0 0.0
  %136 = vmatpush2.msra.mxu0 0.0
  %137 = vmatprep.subr.mxu0 0.0
  %138 = vmatpush2.msra.mxu0 0.0
  %139 = vmatprep.subr.mxu0 0.0
  %140 = vmatpush2.msra.mxu0 0.0
  %141 = vmatprep.subr.mxu0 0.0
  %142 = vmatpush2.msra.mxu0 0.0
  %143 = vmatprep.subr.mxu0 0.0
  %144 = vmatpush2.msra.mxu0 0.0
  %145 = vmatprep.subr.mxu0 0.0
  %146 = vmatpush2.msra.mxu0 0.0
  %147 = vmatprep.subr.mxu0 0.0
  %148 = vmatpush2.msra.mxu0 0.0
  %149 = vmatprep.subr.mxu0 0.0
  %150 = vmatpush2.msra.mxu0 0.0
  %151 = vmatprep.subr.mxu0 0.0
  %152 = vmatpush2.msra.mxu0 0.0
  %153 = vmatprep.subr.mxu0 0.0
  %154 = vmatpush2.msra.mxu0 0.0
  %155 = vmatprep.subr.mxu0 0.0
  %156 = vmatpush2.msra.mxu0 0.0
  %157 = vmatprep.subr.mxu0 0.0
  %158 = vmatpush2.msra.mxu0 0.0
  %159 = vmatprep.subr.mxu0 0.0
  %160 = vmatpush2.msra.mxu0 0.0
  %161 = vmatprep.subr.mxu0 0.0
  %162 = vmatpush2.msra.mxu0 0.0
  %163 = vmatprep.subr.mxu0 0.0
  %164 = vmatpush2.msra.mxu0 0.0
  %165 = vmatprep.subr.mxu0 0.0
  %166 = vmatpush2.msra.mxu0 0.0
  %167 = vmatprep.mubr.f32.mxu0 0.0
  %168 = vmatmul.mubr.f32.gmra.mxu0 %v97
  %v169 = vpop.f32.mrf.mxu0
  %v170 = vadd.f32 %v92, %v169
  %v171 = vpop.f32.mrf.mxu0
  %172 = vdwg.mxu0
  %v173 = vxor.u32 %v170, 2147483648
  %v174 = vmul.f32 %v173, 1.442695
  %v175 = vpow.pop %v174
  %v176 = vadd.f32 %v175, 1.0
  %v177 = vrcp.pop %v176
  %v178 = vmul.f32 1.0, %v177
  %vm179 = vcmask 91136
  %180 = vst.msk [vmem:[%s4] sm:$0x3] %vm179, %v178
  // Predicated region
  $region18: #{multi_scale_pca_down.6} parent=0 // pred_check
    _
  $region19: #{multi_scale_pca_down.6} parent=0 // pred_check_branch
    %182 = sbr.rel (0) target = $region21
  $region20: #{multi_scale_pca_down.6} parent=0 // pred_region
    _
  $region21: #{multi_scale_pca_down.6} parent=0 // pred_fallthru
    _
  // Predicated region
  $region22: #{multi_scale_pca_down.6} parent=0 // pred_check
    _
  $region23: #{multi_scale_pca_down.6} parent=0 // pred_check_branch
    %184 = sbr.rel (0) target = $region25
  $region24: #{multi_scale_pca_down.6} parent=0 // pred_region
    _
  $region25: #{multi_scale_pca_down.6} parent=0 // pred_fallthru
    _

// kernel: multi_scale_pca_down.7
$region0: #{multi_scale_pca_down.7}
  #allocation0 [shape = 'u32[]', space=smem, size = 0x4, offset = 0x4, fixed_abs, tag = 'smem constant byte address 0x4 - core index']
  #allocation1 [shape = 'u32[144,128]{1,0:T(1,128)}', space=vmem, size = 0x12000, scoped, tag = 'internal scratch']
  %s0 = inlined_call_operand.vmem [shape: f32[2,64,4], index: 0, kind: input, shape index: {}]
  %s1 = inlined_call_operand.vmem [shape: f32[2,4,8,8,8], index: 1, kind: input, shape index: {}, may-alias: {1,2}]
  %s2 = inlined_call_operand.vmem [shape: f32[2,4,8,8,8], index: 2, kind: input, shape index: {}, may-alias: {1,2}]
  %s3 = inlined_call_operand.vmem [shape: f32[2,8,9,8], index: 3, kind: input, shape index: {}]
  %s4 = inlined_call_operand.vmem [shape: f32[2,8,8,8], index: 4, kind: input, shape index: {}]
  %s5 = inlined_call_operand.vmem [shape: f32[2,8,9,8], index: 5, kind: input, shape index: {}]
  %s6 = inlined_call_operand.vmem [shape: f32[2,8,9,8], index: 6, kind: input, shape index: {}]
  %s7 = inlined_call_operand.vmem [shape: f32[2,1,4], index: 7, kind: input, shape index: {}]
  %s8 = inlined_call_operand.vmem [shape: f32[2,8,1], index: 8, kind: input, shape index: {}]
  %s9 = inlined_call_operand.vmem [shape: f32[9,8,4], index: 9, kind: input, shape index: {}]
  %s10 = inlined_call_operand.vmem [shape: f32[1,4], index: 10, kind: input, shape index: {}]
  %s11 = inlined_call_operand.vmem [shape: f32[2,64,4], index: 11, kind: output, shape index: {}]
  %s12 = sld [smem:[#allocation0]]
  $region77: #{multi_scale_pca_down.7} parent=0
    _
  %s14 = ssub.s32 1, %s12
  %s15 = scalar_select 0, %s14, %s12
  loop: start=0, step=1, limit=6
  $region2: #{multi_scale_pca_down.7} parent=0 // loop_pre_header
    _
  $region3: #{multi_scale_pca_down.7} parent=0 // loop_header
    %s17 = sphi 0, %s21
    %p18 = scmp.ge.s32.totalorder %s17, 6
    %s24 = sphi 0, %s36
    %s25 = sphi 0, %s32
    %s26 = sphi 0, %s24
    %s27 = sphi 0, %s25
    %s28 = sphi 0, %s26
    %s29 = sphi 0, %s27
    %s41 = sphi 0, %s43
    %s44 = sphi 0, %s41
    %s45 = sphi 0, %s44
    %s61 = sphi 0, %s45
    %s69 = sphi 0, %s71
    %s72 = sphi 0, %s69
    %s73 = sphi 0, %s72
    %s89 = sphi 0, %s73
    %s97 = sphi 0, %s99
    %s100 = sphi 0, %s97
    %s101 = sphi 0, %s100
    %s117 = sphi 0, %s101
    %s125 = sphi 0, %s127
    %s128 = sphi 0, %s125
    %s129 = sphi 0, %s128
    %s145 = sphi 0, %s129
    %s153 = sphi 0, %s155
    %s156 = sphi 0, %s153
    %s157 = sphi 0, %s156
    %s173 = sphi 0, %s157
    %s181 = sphi 0, %s183
    %s184 = sphi 0, %s181
    %s185 = sphi 0, %s184
    %s201 = sphi 0, %s185
    %s209 = sphi 0, %s211
    %s212 = sphi 0, %s209
    %s213 = sphi 0, %s212
    %s229 = sphi 0, %s213
    %s235 = sphi 0, %s237
    %s238 = sphi 0, %s235
    %s239 = sphi 0, %s238
    %s255 = sphi 0, %s239
    %s261 = sphi 0, %s263
    %s264 = sphi 0, %s261
    %s265 = sphi 0, %s264
    %s281 = sphi 0, %s265
    %s285 = sphi 0, %s285
    %s287 = sphi 0, %s285
    %s288 = sphi 0, %s287
    %s302 = sphi 0, %s288
    %s306 = sphi 0, %s306
    %s308 = sphi 0, %s306
    %s309 = sphi 0, %s308
    %s323 = sphi 0, %s309
    %s331 = sphi 0, %s333
    %s334 = sphi 0, %s331
    %s335 = sphi 0, %s334
    %s351 = sphi 0, %s335
  $region4: #{multi_scale_pca_down.7} parent=0 // loop_header_branch
    %20 = sbr.rel (%p18) target = $region8
  $region5: #{multi_scale_pca_down.7} parent=0 // loop_body
    %s22 = ssub.s32 %s17, 1
    %s23 = ssub.s32 %s17, 2
    %s30 = sadd.s32 1, %s25
    %p31 = scmp.ge.s32.totalorder %s30, 2
    %s32 = scalar_select %p31, 0, %s30
    %s33 = sadd.s32 1, %s24
    %s34 = scalar_select %p31, %s33, %s24
    %p35 = scmp.ge.s32.totalorder %s34, 2
    %s36 = scalar_select %p35, 0, %s34
    %s37 = ssub.s32 %s24, %s36
    %s38 = ssub.s32 %s25, %s32
    %s39 = sor.u32 %s37, %s38
    %p40 = scmp.eq.s32.totalorder %s39, 0
    %s42 = sadd.s32 %s41, 1
    %s43 = scalar_select %p40, %s41, %s42
    %p46 = pneg %p40
    %p47 = scmp.eq.s32.totalorder %s17, 3
    %p48 = por %p46, %p47
    %p49 = scmp.ne.s32.totalorder %s41, %s44
    %p50 = scmp.eq.s32.totalorder %s17, 0
    %p51 = por %p49, %p50
    %p52 = scmp.ne.s32.totalorder %s41, %s44
    %p53 = scmp.eq.s32.totalorder %s22, 3
    %p54 = por %p52, %p53
    %p55 = scmp.ne.s32.totalorder %s44, %s45
    %p56 = scmp.eq.s32.totalorder %s22, 0
    %p57 = por %p55, %p56
    %p58 = scmp.ne.s32.totalorder %s44, %s45
    %p59 = scmp.eq.s32.totalorder %s23, 3
    %p60 = por %p58, %p59
    %p62 = scmp.ne.s32.totalorder %s45, %s61
    %p63 = scmp.eq.s32.totalorder %s23, 0
    %p64 = por %p62, %p63
    %s65 = ssub.s32 %s24, %s36
    %s66 = ssub.s32 %s25, %s32
    %s67 = sor.u32 %s65, %s66
    %p68 = scmp.eq.s32.totalorder %s67, 0
    %s70 = sadd.s32 %s69, 1
    %s71 = scalar_select %p68, %s69, %s70
    %p74 = pneg %p68
    %p75 = scmp.eq.s32.totalorder %s17, 3
    %p76 = por %p74, %p75
    %p77 = scmp.ne.s32.totalorder %s69, %s72
    %p78 = scmp.eq.s32.totalorder %s17, 0
    %p79 = por %p77, %p78
    %p80 = scmp.ne.s32.totalorder %s69, %s72
    %p81 = scmp.eq.s32.totalorder %s22, 3
    %p82 = por %p80, %p81
    %p83 = scmp.ne.s32.totalorder %s72, %s73
    %p84 = scmp.eq.s32.totalorder %s22, 0
    %p85 = por %p83, %p84
    %p86 = scmp.ne.s32.totalorder %s72, %s73
    %p87 = scmp.eq.s32.totalorder %s23, 3
    %p88 = por %p86, %p87
    %p90 = scmp.ne.s32.totalorder %s73, %s89
    %p91 = scmp.eq.s32.totalorder %s23, 0
    %p92 = por %p90, %p91
    %s93 = ssub.s32 %s24, %s36
    %s94 = ssub.s32 %s25, %s32
    %s95 = sor.u32 %s93, %s94
    %p96 = scmp.eq.s32.totalorder %s95, 0
    %s98 = sadd.s32 %s97, 1
    %s99 = scalar_select %p96, %s97, %s98
    %p102 = pneg %p96
    %p103 = scmp.eq.s32.totalorder %s17, 3
    %p104 = por %p102, %p103
    %p105 = scmp.ne.s32.totalorder %s97, %s100
    %p106 = scmp.eq.s32.totalorder %s17, 0
    %p107 = por %p105, %p106
    %p108 = scmp.ne.s32.totalorder %s97, %s100
    %p109 = scmp.eq.s32.totalorder %s22, 3
    %p110 = por %p108, %p109
    %p111 = scmp.ne.s32.totalorder %s100, %s101
    %p112 = scmp.eq.s32.totalorder %s22, 0
    %p113 = por %p111, %p112
    %p114 = scmp.ne.s32.totalorder %s100, %s101
    %p115 = scmp.eq.s32.totalorder %s23, 3
    %p116 = por %p114, %p115
    %p118 = scmp.ne.s32.totalorder %s101, %s117
    %p119 = scmp.eq.s32.totalorder %s23, 0
    %p120 = por %p118, %p119
    %s121 = ssub.s32 %s24, %s36
    %s122 = ssub.s32 %s25, %s32
    %s123 = sor.u32 %s121, %s122
    %p124 = scmp.eq.s32.totalorder %s123, 0
    %s126 = sadd.s32 %s125, 1
    %s127 = scalar_select %p124, %s125, %s126
    %p130 = pneg %p124
    %p131 = scmp.eq.s32.totalorder %s17, 3
    %p132 = por %p130, %p131
    %p133 = scmp.ne.s32.totalorder %s125, %s128
    %p134 = scmp.eq.s32.totalorder %s17, 0
    %p135 = por %p133, %p134
    %p136 = scmp.ne.s32.totalorder %s125, %s128
    %p137 = scmp.eq.s32.totalorder %s22, 3
    %p138 = por %p136, %p137
    %p139 = scmp.ne.s32.totalorder %s128, %s129
    %p140 = scmp.eq.s32.totalorder %s22, 0
    %p141 = por %p139, %p140
    %p142 = scmp.ne.s32.totalorder %s128, %s129
    %p143 = scmp.eq.s32.totalorder %s23, 3
    %p144 = por %p142, %p143
    %p146 = scmp.ne.s32.totalorder %s129, %s145
    %p147 = scmp.eq.s32.totalorder %s23, 0
    %p148 = por %p146, %p147
    %s149 = ssub.s32 %s24, %s36
    %s150 = ssub.s32 %s25, %s32
    %s151 = sor.u32 %s149, %s150
    %p152 = scmp.eq.s32.totalorder %s151, 0
    %s154 = sadd.s32 %s153, 1
    %s155 = scalar_select %p152, %s153, %s154
    %p158 = pneg %p152
    %p159 = scmp.eq.s32.totalorder %s17, 3
    %p160 = por %p158, %p159
    %p161 = scmp.ne.s32.totalorder %s153, %s156
    %p162 = scmp.eq.s32.totalorder %s17, 0
    %p163 = por %p161, %p162
    %p164 = scmp.ne.s32.totalorder %s153, %s156
    %p165 = scmp.eq.s32.totalorder %s22, 3
    %p166 = por %p164, %p165
    %p167 = scmp.ne.s32.totalorder %s156, %s157
    %p168 = scmp.eq.s32.totalorder %s22, 0
    %p169 = por %p167, %p168
    %p170 = scmp.ne.s32.totalorder %s156, %s157
    %p171 = scmp.eq.s32.totalorder %s23, 3
    %p172 = por %p170, %p171
    %p174 = scmp.ne.s32.totalorder %s157, %s173
    %p175 = scmp.eq.s32.totalorder %s23, 0
    %p176 = por %p174, %p175
    %s177 = ssub.s32 %s24, %s36
    %s178 = ssub.s32 %s25, %s32
    %s179 = sor.u32 %s177, %s178
    %p180 = scmp.eq.s32.totalorder %s179, 0
    %s182 = sadd.s32 %s181, 1
    %s183 = scalar_select %p180, %s181, %s182
    %p186 = pneg %p180
    %p187 = scmp.eq.s32.totalorder %s17, 3
    %p188 = por %p186, %p187
    %p189 = scmp.ne.s32.totalorder %s181, %s184
    %p190 = scmp.eq.s32.totalorder %s17, 0
    %p191 = por %p189, %p190
    %p192 = scmp.ne.s32.totalorder %s181, %s184
    %p193 = scmp.eq.s32.totalorder %s22, 3
    %p194 = por %p192, %p193
    %p195 = scmp.ne.s32.totalorder %s184, %s185
    %p196 = scmp.eq.s32.totalorder %s22, 0
    %p197 = por %p195, %p196
    %p198 = scmp.ne.s32.totalorder %s184, %s185
    %p199 = scmp.eq.s32.totalorder %s23, 3
    %p200 = por %p198, %p199
    %p202 = scmp.ne.s32.totalorder %s185, %s201
    %p203 = scmp.eq.s32.totalorder %s23, 0
    %p204 = por %p202, %p203
    %s205 = ssub.s32 %s24, %s36
    %s206 = ssub.s32 %s25, %s32
    %s207 = sor.u32 %s205, %s206
    %p208 = scmp.eq.s32.totalorder %s207, 0
    %s210 = sadd.s32 %s209, 1
    %s211 = scalar_select %p208, %s209, %s210
    %p214 = pneg %p208
    %p215 = scmp.eq.s32.totalorder %s17, 3
    %p216 = por %p214, %p215
    %p217 = scmp.ne.s32.totalorder %s209, %s212
    %p218 = scmp.eq.s32.totalorder %s17, 0
    %p219 = por %p217, %p218
    %p220 = scmp.ne.s32.totalorder %s209, %s212
    %p221 = scmp.eq.s32.totalorder %s22, 3
    %p222 = por %p220, %p221
    %p223 = scmp.ne.s32.totalorder %s212, %s213
    %p224 = scmp.eq.s32.totalorder %s22, 0
    %p225 = por %p223, %p224
    %p226 = scmp.ne.s32.totalorder %s212, %s213
    %p227 = scmp.eq.s32.totalorder %s23, 3
    %p228 = por %p226, %p227
    %p230 = scmp.ne.s32.totalorder %s213, %s229
    %p231 = scmp.eq.s32.totalorder %s23, 0
    %p232 = por %p230, %p231
    %s233 = ssub.s32 %s24, %s36
    %p234 = scmp.eq.s32.totalorder %s233, 0
    %s236 = sadd.s32 %s235, 1
    %s237 = scalar_select %p234, %s235, %s236
    %p240 = pneg %p234
    %p241 = scmp.eq.s32.totalorder %s17, 3
    %p242 = por %p240, %p241
    %p243 = scmp.ne.s32.totalorder %s235, %s238
    %p244 = scmp.eq.s32.totalorder %s17, 0
    %p245 = por %p243, %p244
    %p246 = scmp.ne.s32.totalorder %s235, %s238
    %p247 = scmp.eq.s32.totalorder %s22, 3
    %p248 = por %p246, %p247
    %p249 = scmp.ne.s32.totalorder %s238, %s239
    %p250 = scmp.eq.s32.totalorder %s22, 0
    %p251 = por %p249, %p250
    %p252 = scmp.ne.s32.totalorder %s238, %s239
    %p253 = scmp.eq.s32.totalorder %s23, 3
    %p254 = por %p252, %p253
    %p256 = scmp.ne.s32.totalorder %s239, %s255
    %p257 = scmp.eq.s32.totalorder %s23, 0
    %p258 = por %p256, %p257
    %s259 = ssub.s32 %s24, %s36
    %p260 = scmp.eq.s32.totalorder %s259, 0
    %s262 = sadd.s32 %s261, 1
    %s263 = scalar_select %p260, %s261, %s262
    %p266 = pneg %p260
    %p267 = scmp.eq.s32.totalorder %s17, 3
    %p268 = por %p266, %p267
    %p269 = scmp.ne.s32.totalorder %s261, %s264
    %p270 = scmp.eq.s32.totalorder %s17, 0
    %p271 = por %p269, %p270
    %p272 = scmp.ne.s32.totalorder %s261, %s264
    %p273 = scmp.eq.s32.totalorder %s22, 3
    %p274 = por %p272, %p273
    %p275 = scmp.ne.s32.totalorder %s264, %s265
    %p276 = scmp.eq.s32.totalorder %s22, 0
    %p277 = por %p275, %p276
    %p278 = scmp.ne.s32.totalorder %s264, %s265
    %p279 = scmp.eq.s32.totalorder %s23, 3
    %p280 = por %p278, %p279
    %p282 = scmp.ne.s32.totalorder %s265, %s281
    %p283 = scmp.eq.s32.totalorder %s23, 0
    %p284 = por %p282, %p283
    %s286 = sadd.s32 %s285, 1
    %p289 = scmp.eq.s32.totalorder %s17, 3
    %p290 = scmp.ne.s32.totalorder %s285, %s287
    %p291 = scmp.eq.s32.totalorder %s17, 0
    %p292 = por %p290, %p291
    %p293 = scmp.ne.s32.totalorder %s285, %s287
    %p294 = scmp.eq.s32.totalorder %s22, 3
    %p295 = por %p293, %p294
    %p296 = scmp.ne.s32.totalorder %s287, %s288
    %p297 = scmp.eq.s32.totalorder %s22, 0
    %p298 = por %p296, %p297
    %p299 = scmp.ne.s32.totalorder %s287, %s288
    %p300 = scmp.eq.s32.totalorder %s23, 3
    %p301 = por %p299, %p300
    %p303 = scmp.ne.s32.totalorder %s288, %s302
    %p304 = scmp.eq.s32.totalorder %s23, 0
    %p305 = por %p303, %p304
    %s307 = sadd.s32 %s306, 1
    %p310 = scmp.eq.s32.totalorder %s17, 3
    %p311 = scmp.ne.s32.totalorder %s306, %s308
    %p312 = scmp.eq.s32.totalorder %s17, 0
    %p313 = por %p311, %p312
    %p314 = scmp.ne.s32.totalorder %s306, %s308
    %p315 = scmp.eq.s32.totalorder %s22, 3
    %p316 = por %p314, %p315
    %p317 = scmp.ne.s32.totalorder %s308, %s309
    %p318 = scmp.eq.s32.totalorder %s22, 0
    %p319 = por %p317, %p318
    %p320 = scmp.ne.s32.totalorder %s308, %s309
    %p321 = scmp.eq.s32.totalorder %s23, 3
    %p322 = por %p320, %p321
    %p324 = scmp.ne.s32.totalorder %s309, %s323
    %p325 = scmp.eq.s32.totalorder %s23, 0
    %p326 = por %p324, %p325
    %s327 = ssub.s32 %s24, %s36
    %s328 = ssub.s32 %s25, %s32
    %s329 = sor.u32 %s327, %s328
    %p330 = scmp.eq.s32.totalorder %s329, 0
    %s332 = sadd.s32 %s331, 1
    %s333 = scalar_select %p330, %s331, %s332
    %p336 = pneg %p330
    %p337 = scmp.eq.s32.totalorder %s17, 3
    %p338 = por %p336, %p337
    %p339 = scmp.ne.s32.totalorder %s331, %s334
    %p340 = scmp.eq.s32.totalorder %s17, 0
    %p341 = por %p339, %p340
    %p342 = scmp.ne.s32.totalorder %s331, %s334
    %p343 = scmp.eq.s32.totalorder %s22, 3
    %p344 = por %p342, %p343
    %p345 = scmp.ne.s32.totalorder %s334, %s335
    %p346 = scmp.eq.s32.totalorder %s22, 0
    %p347 = por %p345, %p346
    %p348 = scmp.ne.s32.totalorder %s334, %s335
    %p349 = scmp.eq.s32.totalorder %s23, 3
    %p350 = por %p348, %p349
    %p352 = scmp.ne.s32.totalorder %s335, %s351
    %p353 = scmp.eq.s32.totalorder %s23, 0
    %p354 = por %p352, %p353
    %p355 = scmp.le.s32.totalorder 1, %s17
    %p356 = scmp.lt.s32.totalorder %s17, 5
    %p357 = pnand %p355, %p356
    %p358 = pneg %p357
    // Predicated region
    $region9: #{multi_scale_pca_down.7} parent=5 // pred_check
      _
    $region10: #{multi_scale_pca_down.7} parent=5 // pred_check_branch
      %360 = sbr.rel (%p357) target = $region12
    $region11: #{multi_scale_pca_down.7} parent=5 // pred_region
      %s361 = ssub.s32 %s17, 1
      // Predicated region
      $region13: #{multi_scale_pca_down.7} parent=11 // pred_check
        %p362 = pneg %p298
      $region14: #{multi_scale_pca_down.7} parent=11 // pred_check_branch
        %364 = sbr.rel (%p362) target = $region16
      $region15: #{multi_scale_pca_down.7} parent=11 // pred_region
        _
      $region16: #{multi_scale_pca_down.7} parent=11 // pred_fallthru
        _
      // Predicated region
      $region17: #{multi_scale_pca_down.7} parent=11 // pred_check
        %p365 = pneg %p319
      $region18: #{multi_scale_pca_down.7} parent=11 // pred_check_branch
        %367 = sbr.rel (%p365) target = $region20
      $region19: #{multi_scale_pca_down.7} parent=11 // pred_region
        _
      $region20: #{multi_scale_pca_down.7} parent=11 // pred_fallthru
        _
    $region12: #{multi_scale_pca_down.7} parent=5 // pred_fallthru
      _
    %p368 = scmp.lt.s32.totalorder %s17, 4
    // Predicated region
    $region21: #{multi_scale_pca_down.7} parent=5 // pred_check
      %p369 = pneg %p368
    $region22: #{multi_scale_pca_down.7} parent=5 // pred_check_branch
      %371 = sbr.rel (%p369) target = $region24
    $region23: #{multi_scale_pca_down.7} parent=5 // pred_region
      // Predicated region
      $region25: #{multi_scale_pca_down.7} parent=23 // pred_check
        %p372 = pneg %p51
      $region26: #{multi_scale_pca_down.7} parent=23 // pred_check_branch
        %374 = sbr.rel (%p372) target = $region28
      $region27: #{multi_scale_pca_down.7} parent=23 // pred_region
        %s375 = smul.u32 4, %s25
        %p376 = scmp.lt.s32.totalorder %s24, 1
        %s377 = scalar_select %p376, %s24, 1
        %p378 = scmp.lt.s32.totalorder %s375, 7
        %s379 = scalar_select %p378, %s375, 7
        %s380 = smul.addr %s377, 8
        %s381 = sadd.s32 %s379, %s380
        %s382 = smul.addr %s381, 8
        %s383 = scalar_lea.vmem %s0, %s382
        %s384 = smul.u32 4, %s25
      $region28: #{multi_scale_pca_down.7} parent=23 // pred_fallthru
        _
      // Predicated region
      $region29: #{multi_scale_pca_down.7} parent=23 // pred_check
        %p385 = pneg %p79
      $region30: #{multi_scale_pca_down.7} parent=23 // pred_check_branch
        %387 = sbr.rel (%p385) target = $region32
      $region31: #{multi_scale_pca_down.7} parent=23 // pred_region
        %s388 = smul.u32 4, %s25
        %p389 = scmp.lt.s32.totalorder %s24, 1
        %s390 = scalar_select %p389, %s24, 1
        %p391 = scmp.lt.s32.totalorder %s388, 7
        %s392 = scalar_select %p391, %s388, 7
        %s393 = smul.addr %s390, 32
        %s394 = sadd.s32 %s392, %s393
        %s395 = smul.addr %s394, 8
        %s396 = scalar_lea.vmem %s1, %s395
        %s397 = smul.u32 4, %s25
      $region32: #{multi_scale_pca_down.7} parent=23 // pred_fallthru
        _
      // Predicated region
      $region33: #{multi_scale_pca_down.7} parent=23 // pred_check
        %p398 = pneg %p107
      $region34: #{multi_scale_pca_down.7} parent=23 // pred_check_branch
        %400 = sbr.rel (%p398) target = $region36
      $region35: #{multi_scale_pca_down.7} parent=23 // pred_region
        %s401 = smul.u32 4, %s25
        %p402 = scmp.lt.s32.totalorder %s24, 1
        %s403 = scalar_select %p402, %s24, 1
        %p404 = scmp.lt.s32.totalorder %s401, 7
        %s405 = scalar_select %p404, %s401, 7
        %s406 = sadd.s32 %s405, 16
        %s407 = smul.addr %s403, 32
        %s408 = sadd.s32 %s406, %s407
        %s409 = smul.addr %s408, 8
        %s410 = scalar_lea.vmem %s2, %s409
        %s411 = smul.u32 4, %s25
      $region36: #{multi_scale_pca_down.7} parent=23 // pred_fallthru
        _
      // Predicated region
      $region37: #{multi_scale_pca_down.7} parent=23 // pred_check
        %p412 = pneg %p135
      $region38: #{multi_scale_pca_down.7} parent=23 // pred_check_branch
        %414 = sbr.rel (%p412) target = $region40
      $region39: #{multi_scale_pca_down.7} parent=23 // pred_region
        %s415 = smul.u32 4, %s25
        %p416 = scmp.lt.s32.totalorder %s24, 1
        %s417 = scalar_select %p416, %s24, 1
        %p418 = scmp.lt.s32.totalorder %s415, 7
        %s419 = scalar_select %p418, %s415, 7
        %s420 = smul.addr %s419, 2
        %s421 = smul.addr %s417, 16
        %s422 = sadd.s32 %s420, %s421
        %s423 = smul.addr %s422, 8
        %s424 = scalar_lea.vmem %s3, %s423
        %s425 = smul.u32 4, %s25
      $region40: #{multi_scale_pca_down.7} parent=23 // pred_fallthru
        _
      // Predicated region
      $region41: #{multi_scale_pca_down.7} parent=23 // pred_check
        %p426 = pneg %p163
      $region42: #{multi_scale_pca_down.7} parent=23 // pred_check_branch
        %428 = sbr.rel (%p426) target = $region44
      $region43: #{multi_scale_pca_down.7} parent=23 // pred_region
        %s429 = smul.u32 4, %s25
        %p430 = scmp.lt.s32.totalorder %s24, 1
        %s431 = scalar_select %p430, %s24, 1
        %p432 = scmp.lt.s32.totalorder %s429, 7
        %s433 = scalar_select %p432, %s429, 7
        %s434 = smul.addr %s431, 8
        %s435 = sadd.s32 %s433, %s434
        %s436 = smul.addr %s435, 8
        %s437 = scalar_lea.vmem %s4, %s436
        %s438 = smul.u32 4, %s25
      $region44: #{multi_scale_pca_down.7} parent=23 // pred_fallthru
        _
      // Predicated region
      $region45: #{multi_scale_pca_down.7} parent=23 // pred_check
        %p439 = pneg %p191
      $region46: #{multi_scale_pca_down.7} parent=23 // pred_check_branch
        %441 = sbr.rel (%p439) target = $region48
      $region47: #{multi_scale_pca_down.7} parent=23 // pred_region
        %s442 = smul.u32 4, %s25
        %p443 = scmp.lt.s32.totalorder %s24, 1
        %s444 = scalar_select %p443, %s24, 1
        %p445 = scmp.lt.s32.totalorder %s442, 7
        %s446 = scalar_select %p445, %s442, 7
        %s447 = smul.addr %s446, 2
        %s448 = smul.addr %s444, 16
        %s449 = sadd.s32 %s447, %s448
        %s450 = smul.addr %s449, 8
        %s451 = scalar_lea.vmem %s5, %s450
        %s452 = smul.u32 4, %s25
      $region48: #{multi_scale_pca_down.7} parent=23 // pred_fallthru
        _
      // Predicated region
      $region49: #{multi_scale_pca_down.7} parent=23 // pred_check
        %p453 = pneg %p219
      $region50: #{multi_scale_pca_down.7} parent=23 // pred_check_branch
        %455 = sbr.rel (%p453) target = $region52
      $region51: #{multi_scale_pca_down.7} parent=23 // pred_region
        %s456 = smul.u32 4, %s25
        %p457 = scmp.lt.s32.totalorder %s24, 1
        %s458 = scalar_select %p457, %s24, 1
        %p459 = scmp.lt.s32.totalorder %s456, 7
        %s460 = scalar_select %p459, %s456, 7
        %s461 = smul.addr %s460, 2
        %s462 = smul.addr %s458, 16
        %s463 = sadd.s32 %s461, %s462
        %s464 = smul.addr %s463, 8
        %s465 = scalar_lea.vmem %s6, %s464
        %s466 = smul.u32 4, %s25
      $region52: #{multi_scale_pca_down.7} parent=23 // pred_fallthru
        _
      // Predicated region
      $region53: #{multi_scale_pca_down.7} parent=23 // pred_check
        %p467 = pneg %p245
      $region54: #{multi_scale_pca_down.7} parent=23 // pred_check_branch
        %469 = sbr.rel (%p467) target = $region56
      $region55: #{multi_scale_pca_down.7} parent=23 // pred_region
        %p470 = scmp.lt.s32.totalorder %s24, 1
        %s471 = scalar_select %p470, %s24, 1
        %s472 = scalar_lea.vmem %s7, %s471
      $region56: #{multi_scale_pca_down.7} parent=23 // pred_fallthru
        _
      // Predicated region
      $region57: #{multi_scale_pca_down.7} parent=23 // pred_check
        %p473 = pneg %p271
      $region58: #{multi_scale_pca_down.7} parent=23 // pred_check_branch
        %475 = sbr.rel (%p473) target = $region60
      $region59: #{multi_scale_pca_down.7} parent=23 // pred_region
        %p476 = scmp.lt.s32.totalorder %s24, 1
        %s477 = scalar_select %p476, %s24, 1
        %s478 = smul.addr %s477, 8
        %s479 = scalar_lea.vmem %s8, %s478
      $region60: #{multi_scale_pca_down.7} parent=23 // pred_fallthru
        _
    $region24: #{multi_scale_pca_down.7} parent=5 // pred_fallthru
      _
    %p480 = scmp.le.s32.totalorder 1, %s17
    %p481 = scmp.lt.s32.totalorder %s17, 5
    %p482 = pnand %p480, %p481
    %p483 = pneg %p482
    // Predicated region
    $region61: #{multi_scale_pca_down.7} parent=5 // pred_check
      _
    $region62: #{multi_scale_pca_down.7} parent=5 // pred_check_branch
      %485 = sbr.rel (%p482) target = $region64
    $region63: #{multi_scale_pca_down.7} parent=5 // pred_region
      %s486 = ssub.s32 %s17, 1
      %s487 = smul.u32 4, %s27
      %p488 = scmp.lt.s32.totalorder %s26, 1
      %s489 = scalar_select %p488, %s26, 1
      %p490 = scmp.lt.s32.totalorder %s487, 7
      %s491 = scalar_select %p490, %s487, 7
      %s492 = smul.addr %s489, 8
      %s493 = sadd.s32 %s491, %s492
      %s494 = smul.addr %s493, 8
      %s495 = scalar_lea.vmem %s0, %s494
      %p496 = pneg %p57
      %p497 = pneg %p54
      %s498 = smul.u32 4, %s27
      %p499 = scmp.lt.s32.totalorder %s26, 1
      %s500 = scalar_select %p499, %s26, 1
      %p501 = scmp.lt.s32.totalorder %s498, 7
      %s502 = scalar_select %p501, %s498, 7
      %s503 = smul.addr %s500, 32
      %s504 = sadd.s32 %s502, %s503
      %s505 = smul.addr %s504, 8
      %s506 = scalar_lea.vmem %s1, %s505
      %p507 = pneg %p85
      %p508 = pneg %p82
      %s509 = smul.u32 4, %s27
      %p510 = scmp.lt.s32.totalorder %s26, 1
      %s511 = scalar_select %p510, %s26, 1
      %p512 = scmp.lt.s32.totalorder %s509, 7
      %s513 = scalar_select %p512, %s509, 7
      %s514 = sadd.s32 %s513, 16
      %s515 = smul.addr %s511, 32
      %s516 = sadd.s32 %s514, %s515
      %s517 = smul.addr %s516, 8
      %s518 = scalar_lea.vmem %s2, %s517
      %p519 = pneg %p113
      %p520 = pneg %p110
      %s521 = smul.u32 4, %s27
      %p522 = scmp.lt.s32.totalorder %s26, 1
      %s523 = scalar_select %p522, %s26, 1
      %p524 = scmp.lt.s32.totalorder %s521, 7
      %s525 = scalar_select %p524, %s521, 7
      %s526 = smul.addr %s525, 2
      %s527 = smul.addr %s523, 16
      %s528 = sadd.s32 %s526, %s527
      %s529 = smul.addr %s528, 8
      %s530 = scalar_lea.vmem %s3, %s529
      %p531 = pneg %p141
      %p532 = pneg %p138
      %s533 = smul.u32 4, %s27
      %p534 = scmp.lt.s32.totalorder %s26, 1
      %s535 = scalar_select %p534, %s26, 1
      %p536 = scmp.lt.s32.totalorder %s533, 7
      %s537 = scalar_select %p536, %s533, 7
      %s538 = smul.addr %s535, 8
      %s539 = sadd.s32 %s537, %s538
      %s540 = smul.addr %s539, 8
      %s541 = scalar_lea.vmem %s4, %s540
      %p542 = pneg %p169
      %p543 = pneg %p166
      %s544 = smul.u32 4, %s27
      %p545 = scmp.lt.s32.totalorder %s26, 1
      %s546 = scalar_select %p545, %s26, 1
      %p547 = scmp.lt.s32.totalorder %s544, 7
      %s548 = scalar_select %p547, %s544, 7
      %s549 = smul.addr %s548, 2
      %s550 = smul.addr %s546, 16
      %s551 = sadd.s32 %s549, %s550
      %s552 = smul.addr %s551, 8
      %s553 = scalar_lea.vmem %s5, %s552
      %p554 = pneg %p197
      %p555 = pneg %p194
      %s556 = smul.u32 4, %s27
      %p557 = scmp.lt.s32.totalorder %s26, 1
      %s558 = scalar_select %p557, %s26, 1
      %p559 = scmp.lt.s32.totalorder %s556, 7
      %s560 = scalar_select %p559, %s556, 7
      %s561 = smul.addr %s560, 2
      %s562 = smul.addr %s558, 16
      %s563 = sadd.s32 %s561, %s562
      %s564 = smul.addr %s563, 8
      %s565 = scalar_lea.vmem %s6, %s564
      %p566 = pneg %p225
      %p567 = pneg %p222
      %p568 = scmp.lt.s32.totalorder %s26, 1
      %s569 = scalar_select %p568, %s26, 1
      %s570 = scalar_lea.vmem %s7, %s569
      %p571 = pneg %p251
      %p572 = pneg %p248
      %p573 = scmp.lt.s32.totalorder %s26, 1
      %s574 = scalar_select %p573, %s26, 1
      %s575 = smul.addr %s574, 8
      %s576 = scalar_lea.vmem %s8, %s575
      %p577 = pneg %p277
      %p578 = pneg %p274
      %p579 = pneg %p298
      %p580 = pneg %p295
      %p581 = pneg %p319
      %p582 = pneg %p316
      %p583 = pneg %p347
      %p584 = pneg %p344
      %s585 = smul.u32 4, %s27
      %p586 = scmp.lt.s32.totalorder %s26, 1
      %s587 = scalar_select %p586, %s26, 1
      %p588 = scmp.lt.s32.totalorder %s585, 7
      %s589 = scalar_select %p588, %s585, 7
      %s590 = smul.addr %s587, 8
      %s591 = sadd.s32 %s589, %s590
      %s592 = smul.addr %s591, 8
      %s593 = scalar_lea.vmem %s11, %s592
      %s594 = smul.u32 4, %s27
      %p595 = scmp.lt.s32.totalorder %s26, 1
      %s596 = scalar_select %p595, %s26, 1
      %p597 = scmp.lt.s32.totalorder %s594, 7
      %s598 = scalar_select %p597, %s594, 7
      %s599 = smul.addr %s596, 8
      %s600 = sadd.s32 %s598, %s599
      %s601 = smul.addr %s600, 8
      %s602 = scalar_lea.vmem %s0, %s601
      %s603 = smul.u32 4, %s27
      %s604 = smul.u32 4, %s27
      %p605 = scmp.lt.s32.totalorder %s26, 1
      %s606 = scalar_select %p605, %s26, 1
      %p607 = scmp.lt.s32.totalorder %s604, 7
      %s608 = scalar_select %p607, %s604, 7
      %s609 = smul.addr %s606, 32
      %s610 = sadd.s32 %s608, %s609
      %s611 = smul.addr %s610, 8
      %s612 = scalar_lea.vmem %s1, %s611
      %s613 = smul.u32 4, %s27
      %s614 = smul.u32 4, %s27
      %p615 = scmp.lt.s32.totalorder %s26, 1
      %s616 = scalar_select %p615, %s26, 1
      %p617 = scmp.lt.s32.totalorder %s614, 7
      %s618 = scalar_select %p617, %s614, 7
      %s619 = sadd.s32 %s618, 16
      %s620 = smul.addr %s616, 32
      %s621 = sadd.s32 %s619, %s620
      %s622 = smul.addr %s621, 8
      %s623 = scalar_lea.vmem %s2, %s622
      %s624 = smul.u32 4, %s27
      %s625 = smul.u32 4, %s27
      %p626 = scmp.lt.s32.totalorder %s26, 1
      %s627 = scalar_select %p626, %s26, 1
      %p628 = scmp.lt.s32.totalorder %s625, 7
      %s629 = scalar_select %p628, %s625, 7
      %s630 = smul.addr %s629, 2
      %s631 = smul.addr %s627, 16
      %s632 = sadd.s32 %s630, %s631
      %s633 = smul.addr %s632, 8
      %s634 = scalar_lea.vmem %s3, %s633
      %s635 = smul.u32 4, %s27
      %s636 = smul.u32 4, %s27
      %p637 = scmp.lt.s32.totalorder %s26, 1
      %s638 = scalar_select %p637, %s26, 1
      %p639 = scmp.lt.s32.totalorder %s636, 7
      %s640 = scalar_select %p639, %s636, 7
      %s641 = smul.addr %s638, 8
      %s642 = sadd.s32 %s640, %s641
      %s643 = smul.addr %s642, 8
      %s644 = scalar_lea.vmem %s4, %s643
      %s645 = smul.u32 4, %s27
      %s646 = smul.u32 4, %s27
      %p647 = scmp.lt.s32.totalorder %s26, 1
      %s648 = scalar_select %p647, %s26, 1
      %p649 = scmp.lt.s32.totalorder %s646, 7
      %s650 = scalar_select %p649, %s646, 7
      %s651 = smul.addr %s650, 2
      %s652 = smul.addr %s648, 16
      %s653 = sadd.s32 %s651, %s652
      %s654 = smul.addr %s653, 8
      %s655 = scalar_lea.vmem %s5, %s654
      %s656 = smul.u32 4, %s27
      %s657 = smul.u32 4, %s27
      %p658 = scmp.lt.s32.totalorder %s26, 1
      %s659 = scalar_select %p658, %s26, 1
      %p660 = scmp.lt.s32.totalorder %s657, 7
      %s661 = scalar_select %p660, %s657, 7
      %s662 = smul.addr %s661, 2
      %s663 = smul.addr %s659, 16
      %s664 = sadd.s32 %s662, %s663
      %s665 = smul.addr %s664, 8
      %s666 = scalar_lea.vmem %s6, %s665
      %s667 = smul.u32 4, %s27
      %p668 = scmp.lt.s32.totalorder %s26, 1
      %s669 = scalar_select %p668, %s26, 1
      %s670 = scalar_lea.vmem %s7, %s669
      %p671 = scmp.lt.s32.totalorder %s26, 1
      %s672 = scalar_select %p671, %s26, 1
      %s673 = smul.addr %s672, 8
      %s674 = scalar_lea.vmem %s8, %s673
      %s675 = smul.u32 4, %s27
      %p676 = scmp.lt.s32.totalorder %s26, 1
      %s677 = scalar_select %p676, %s26, 1
      %p678 = scmp.lt.s32.totalorder %s675, 7
      %s679 = scalar_select %p678, %s675, 7
      %s680 = smul.addr %s677, 8
      %s681 = sadd.s32 %s679, %s680
      %s682 = smul.addr %s681, 8
      %s683 = scalar_lea.vmem %s11, %s682
      %s684 = smul.u32 4, %s27
      %v685 = vld [vmem:[%s670] sm:$0x1]
      %v686 = vld [vmem:[%s674] sm:$0xff]
      %v687 = vld [vmem:[%s602] sm:$0xff]
      %v688 = vld [vmem:[%s602 + $0x8] sm:$0xff]
      %v689 = vld [vmem:[%s602 + $0x10] sm:$0xff]
      %v690 = vld [vmem:[%s602 + $0x18] sm:$0xff]
      %v692 = vlaneseq
      %v693 = vshrl.u32 %v692, 7
      %v694 = vsub.s32 0, %v693
      %v695 = vrot.slane %v685, %v694
      %v697 = vmul.f32 %v687, %v695
      %v698 = vmul.f32 %v688, %v695
      %v699 = vmul.f32 %v689, %v695
      %v700 = vmul.f32 %v690, %v695
      %v701 = vld [vmem:[%s10] sm:$0x1]
      %v703 = vlaneseq
      %v704 = vshrl.u32 %v703, 7
      %v705 = vsub.s32 0, %v704
      %v706 = vrot.slane %v701, %v705
      %v708 = vadd.f32 %v697, %v706
      %v709 = vadd.f32 %v698, %v706
      %v710 = vadd.f32 %v699, %v706
      %v711 = vadd.f32 %v700, %v706
      %vm712 = vcmask 31744
      %713 = vst.msk [vmem:[%s683] sm:$0xff] %vm712, %v708
      %714 = vst.msk [vmem:[%s683 + $0x8] sm:$0xff] %vm712, %v709
      %715 = vst.msk [vmem:[%s683 + $0x10] sm:$0xff] %vm712, %v710
      %716 = vst.msk [vmem:[%s683 + $0x18] sm:$0xff] %vm712, %v711
      %v717 = vld [vmem:[%s683] sm:$0xff]
      %v718 = vld [vmem:[%s683 + $0x8] sm:$0xff]
      %v719 = vld [vmem:[%s683 + $0x10] sm:$0xff]
      %v720 = vld [vmem:[%s683 + $0x18] sm:$0xff]
      %v721 = vld [vmem:[%s612] sm:$0xff]
      %v722 = vld [vmem:[%s612 + $0x8] sm:$0xff]
      %v723 = vld [vmem:[%s612 + $0x10] sm:$0xff]
      %v724 = vld [vmem:[%s612 + $0x18] sm:$0xff]
      %s725 = scalar_lea.vmem %s9, 32
      %v726 = vld [vmem:[%s725] sm:$0xff]
      %728 = vset.pattern.permute.xlu0 0
      %729 = vperm.xlu0 %728, %v686
      %v730 = vpop.permute.xlu0 %729
      %v732 = vmul.f32 %v726, %v730
      %vm733 = vcmask 64512
      %v735 = vsel %vm733, %v721, 0
      %v738 = vsel %vm733, %v722, 0
      %v741 = vsel %vm733, %v723, 0
      %v744 = vsel %vm733, %v724, 0
      %746 = vmatprep.subr.mxu0 0.0
      %747 = vmatpush1.msra.mxu0 0.0
      %748 = vmatprep.subr.mxu0 0.0
      %749 = vmatpush1.msra.mxu0 0.0
      %750 = vmatprep.subr.mxu0 0.0
      %751 = vmatpush1.msra.mxu0 0.0
      %752 = vmatprep.subr.mxu0 0.0
      %753 = vmatpush1.msra.mxu0 0.0
      %754 = vmatprep.subr.mxu0 0.0
      %755 = vmatpush1.msra.mxu0 0.0
      %756 = vmatprep.subr.mxu0 0.0
      %757 = vmatpush1.msra.mxu0 0.0
      %758 = vmatprep.subr.mxu0 0.0
      %759 = vmatpush1.msra.mxu0 0.0
      %760 = vmatprep.subr.mxu0 0.0
      %761 = vmatpush1.msra.mxu0 0.0
      %762 = vmatprep.subr.mxu0 0.0
      %763 = vmatpush1.msra.mxu0 0.0
      %764 = vmatprep.subr.mxu0 0.0
      %765 = vmatpush1.msra.mxu0 0.0
      %766 = vmatprep.subr.mxu0 0.0
      %767 = vmatpush1.msra.mxu0 0.0
      %768 = vmatprep.subr.mxu0 0.0
      %769 = vmatpush1.msra.mxu0 0.0
      %770 = vmatprep.subr.mxu0 0.0
      %771 = vmatpush1.msra.mxu0 0.0
      %772 = vmatprep.subr.mxu0 0.0
      %773 = vmatpush1.msra.mxu0 0.0
      %774 = vmatprep.subr.mxu0 0.0
      %775 = vmatpush1.msra.mxu0 0.0
      %776 = vmatprep.subr.mxu0 0.0
      %777 = vmatpush1.msra.mxu0 %v732
      %778 = vmatprep.subr.mxu0 0.0
      %779 = vmatpush2.msra.mxu0 0.0
      %780 = vmatprep.subr.mxu0 0.0
      %781 = vmatpush2.msra.mxu0 0.0
      %782 = vmatprep.subr.mxu0 0.0
      %783 = vmatpush2.msra.mxu0 0.0
      %784 = vmatprep.subr.mxu0 0.0
      %785 = vmatpush2.msra.mxu0 0.0
      %786 = vmatprep.subr.mxu0 0.0
      %787 = vmatpush2.msra.mxu0 0.0
      %788 = vmatprep.subr.mxu0 0.0
      %789 = vmatpush2.msra.mxu0 0.0
      %790 = vmatprep.subr.mxu0 0.0
      %791 = vmatpush2.msra.mxu0 0.0
      %792 = vmatprep.subr.mxu0 0.0
      %793 = vmatpush2.msra.mxu0 0.0
      %794 = vmatprep.subr.mxu0 0.0
      %795 = vmatpush2.msra.mxu0 0.0
      %796 = vmatprep.subr.mxu0 0.0
      %797 = vmatpush2.msra.mxu0 0.0
      %798 = vmatprep.subr.mxu0 0.0
      %799 = vmatpush2.msra.mxu0 0.0
      %800 = vmatprep.subr.mxu0 0.0
      %801 = vmatpush2.msra.mxu0 0.0
      %802 = vmatprep.subr.mxu0 0.0
      %803 = vmatpush2.msra.mxu0 0.0
      %804 = vmatprep.subr.mxu0 0.0
      %805 = vmatpush2.msra.mxu0 0.0
      %806 = vmatprep.subr.mxu0 0.0
      %807 = vmatpush2.msra.mxu0 0.0
      %808 = vmatprep.subr.mxu0 0.0
      %809 = vmatpush2.msra.mxu0 0.0
      %810 = vmatprep.mubr.f32.mxu0 0.0
      %811 = vmatmul.mubr.f32.gmra.mxu0 %v735
      %v812 = vpop.f32.mrf.mxu0
      %v813 = vadd.f32 0.0, %v812
      %v814 = vpop.f32.mrf.mxu0
      %815 = vmatprep.mubr.f32.mxu0 0.0
      %816 = vmatmul.mubr.f32.gmra.mxu0 %v738
      %v817 = vpop.f32.mrf.mxu0
      %v818 = vadd.f32 0.0, %v817
      %v819 = vpop.f32.mrf.mxu0
      %820 = vmatprep.mubr.f32.mxu0 0.0
      %821 = vmatmul.mubr.f32.gmra.mxu0 %v741
      %v822 = vpop.f32.mrf.mxu0
      %v823 = vadd.f32 0.0, %v822
      %v824 = vpop.f32.mrf.mxu0
      %825 = vmatprep.mubr.f32.mxu0 0.0
      %826 = vmatmul.mubr.f32.gmra.mxu0 %v744
      %v827 = vpop.f32.mrf.mxu0
      %v828 = vadd.f32 0.0, %v827
      %v829 = vpop.f32.mrf.mxu0
      %830 = vdwg.mxu0
      %v831 = vadd.f32 %v717, %v813
      %v832 = vadd.f32 %v718, %v818
      %v833 = vadd.f32 %v719, %v823
      %v834 = vadd.f32 %v720, %v828
      %835 = vst.msk [vmem:[%s683] sm:$0xff] %vm712, %v831
      %836 = vst.msk [vmem:[%s683 + $0x8] sm:$0xff] %vm712, %v832
      %837 = vst.msk [vmem:[%s683 + $0x10] sm:$0xff] %vm712, %v833
      %838 = vst.msk [vmem:[%s683 + $0x18] sm:$0xff] %vm712, %v834
      %v839 = vld [vmem:[%s683] sm:$0xff]
      %v840 = vld [vmem:[%s683 + $0x8] sm:$0xff]
      %v841 = vld [vmem:[%s683 + $0x10] sm:$0xff]
      %v842 = vld [vmem:[%s683 + $0x18] sm:$0xff]
      %v843 = vld [vmem:[%s623] sm:$0xff]
      %v844 = vld [vmem:[%s623 + $0x8] sm:$0xff]
      %v845 = vld [vmem:[%s623 + $0x10] sm:$0xff]
      %v846 = vld [vmem:[%s623 + $0x18] sm:$0xff]
      %s847 = scalar_lea.vmem %s9, 56
      %v848 = vld [vmem:[%s847] sm:$0xff]
      %v849 = vmul.f32 %v848, %v730
      %v851 = vsel %vm733, %v843, 0
      %v854 = vsel %vm733, %v844, 0
      %v857 = vsel %vm733, %v845, 0
      %v860 = vsel %vm733, %v846, 0
      %862 = vmatprep.subr.mxu0 0.0
      %863 = vmatpush1.msra.mxu0 0.0
      %864 = vmatprep.subr.mxu0 0.0
      %865 = vmatpush1.msra.mxu0 0.0
      %866 = vmatprep.subr.mxu0 0.0
      %867 = vmatpush1.msra.mxu0 0.0
      %868 = vmatprep.subr.mxu0 0.0
      %869 = vmatpush1.msra.mxu0 0.0
      %870 = vmatprep.subr.mxu0 0.0
      %871 = vmatpush1.msra.mxu0 0.0
      %872 = vmatprep.subr.mxu0 0.0
      %873 = vmatpush1.msra.mxu0 0.0
      %874 = vmatprep.subr.mxu0 0.0
      %875 = vmatpush1.msra.mxu0 0.0
      %876 = vmatprep.subr.mxu0 0.0
      %877 = vmatpush1.msra.mxu0 0.0
      %878 = vmatprep.subr.mxu0 0.0
      %879 = vmatpush1.msra.mxu0 0.0
      %880 = vmatprep.subr.mxu0 0.0
      %881 = vmatpush1.msra.mxu0 0.0
      %882 = vmatprep.subr.mxu0 0.0
      %883 = vmatpush1.msra.mxu0 0.0
      %884 = vmatprep.subr.mxu0 0.0
      %885 = vmatpush1.msra.mxu0 0.0
      %886 = vmatprep.subr.mxu0 0.0
      %887 = vmatpush1.msra.mxu0 0.0
      %888 = vmatprep.subr.mxu0 0.0
      %889 = vmatpush1.msra.mxu0 0.0
      %890 = vmatprep.subr.mxu0 0.0
      %891 = vmatpush1.msra.mxu0 0.0
      %892 = vmatprep.subr.mxu0 0.0
      %893 = vmatpush1.msra.mxu0 %v849
      %894 = vmatprep.subr.mxu0 0.0
      %895 = vmatpush2.msra.mxu0 0.0
      %896 = vmatprep.subr.mxu0 0.0
      %897 = vmatpush2.msra.mxu0 0.0
      %898 = vmatprep.subr.mxu0 0.0
      %899 = vmatpush2.msra.mxu0 0.0
      %900 = vmatprep.subr.mxu0 0.0
      %901 = vmatpush2.msra.mxu0 0.0
      %902 = vmatprep.subr.mxu0 0.0
      %903 = vmatpush2.msra.mxu0 0.0
      %904 = vmatprep.subr.mxu0 0.0
      %905 = vmatpush2.msra.mxu0 0.0
      %906 = vmatprep.subr.mxu0 0.0
      %907 = vmatpush2.msra.mxu0 0.0
      %908 = vmatprep.subr.mxu0 0.0
      %909 = vmatpush2.msra.mxu0 0.0
      %910 = vmatprep.subr.mxu0 0.0
      %911 = vmatpush2.msra.mxu0 0.0
      %912 = vmatprep.subr.mxu0 0.0
      %913 = vmatpush2.msra.mxu0 0.0
      %914 = vmatprep.subr.mxu0 0.0
      %915 = vmatpush2.msra.mxu0 0.0
      %916 = vmatprep.subr.mxu0 0.0
      %917 = vmatpush2.msra.mxu0 0.0
      %918 = vmatprep.subr.mxu0 0.0
      %919 = vmatpush2.msra.mxu0 0.0
      %920 = vmatprep.subr.mxu0 0.0
      %921 = vmatpush2.msra.mxu0 0.0
      %922 = vmatprep.subr.mxu0 0.0
      %923 = vmatpush2.msra.mxu0 0.0
      %924 = vmatprep.subr.mxu0 0.0
      %925 = vmatpush2.msra.mxu0 0.0
      %926 = vmatprep.mubr.f32.mxu0 0.0
      %927 = vmatmul.mubr.f32.gmra.mxu0 %v851
      %v928 = vpop.f32.mrf.mxu0
      %v929 = vadd.f32 0.0, %v928
      %v930 = vpop.f32.mrf.mxu0
      %931 = vmatprep.mubr.f32.mxu0 0.0
      %932 = vmatmul.mubr.f32.gmra.mxu0 %v854
      %v933 = vpop.f32.mrf.mxu0
      %v934 = vadd.f32 0.0, %v933
      %v935 = vpop.f32.mrf.mxu0
      %936 = vmatprep.mubr.f32.mxu0 0.0
      %937 = vmatmul.mubr.f32.gmra.mxu0 %v857
      %v938 = vpop.f32.mrf.mxu0
      %v939 = vadd.f32 0.0, %v938
      %v940 = vpop.f32.mrf.mxu0
      %941 = vmatprep.mubr.f32.mxu0 0.0
      %942 = vmatmul.mubr.f32.gmra.mxu0 %v860
      %v943 = vpop.f32.mrf.mxu0
      %v944 = vadd.f32 0.0, %v943
      %v945 = vpop.f32.mrf.mxu0
      %946 = vdwg.mxu0
      %v947 = vadd.f32 %v839, %v929
      %v948 = vadd.f32 %v840, %v934
      %v949 = vadd.f32 %v841, %v939
      %v950 = vadd.f32 %v842, %v944
      %951 = vst.msk [vmem:[%s683] sm:$0xff] %vm712, %v947
      %952 = vst.msk [vmem:[%s683 + $0x8] sm:$0xff] %vm712, %v948
      %953 = vst.msk [vmem:[%s683 + $0x10] sm:$0xff] %vm712, %v949
      %954 = vst.msk [vmem:[%s683 + $0x18] sm:$0xff] %vm712, %v950
      %v955 = vld [vmem:[%s683] sm:$0xff]
      %v956 = vld [vmem:[%s683 + $0x8] sm:$0xff]
      %v957 = vld [vmem:[%s683 + $0x10] sm:$0xff]
      %v958 = vld [vmem:[%s683 + $0x18] sm:$0xff]
      %v959 = vld [vmem:[%s634] sm:$0xff]
      %v960 = vld [vmem:[%s634 + $0x10] sm:$0xff]
      %v961 = vld [vmem:[%s634 + $0x20] sm:$0xff]
      %v962 = vld [vmem:[%s634 + $0x30] sm:$0xff]
      %s963 = scalar_lea.vmem %s9, 24
      %v964 = vld [vmem:[%s963] sm:$0xff]
      %v965 = vmul.f32 %v964, %v730
      %v967 = vsel %vm733, %v959, 0
      %v970 = vsel %vm733, %v960, 0
      %v973 = vsel %vm733, %v961, 0
      %v976 = vsel %vm733, %v962, 0
      %978 = vmatprep.subr.mxu0 0.0
      %979 = vmatpush1.msra.mxu0 0.0
      %980 = vmatprep.subr.mxu0 0.0
      %981 = vmatpush1.msra.mxu0 0.0
      %982 = vmatprep.subr.mxu0 0.0
      %983 = vmatpush1.msra.mxu0 0.0
      %984 = vmatprep.subr.mxu0 0.0
      %985 = vmatpush1.msra.mxu0 0.0
      %986 = vmatprep.subr.mxu0 0.0
      %987 = vmatpush1.msra.mxu0 0.0
      %988 = vmatprep.subr.mxu0 0.0
      %989 = vmatpush1.msra.mxu0 0.0
      %990 = vmatprep.subr.mxu0 0.0
      %991 = vmatpush1.msra.mxu0 0.0
      %992 = vmatprep.subr.mxu0 0.0
      %993 = vmatpush1.msra.mxu0 0.0
      %994 = vmatprep.subr.mxu0 0.0
      %995 = vmatpush1.msra.mxu0 0.0
      %996 = vmatprep.subr.mxu0 0.0
      %997 = vmatpush1.msra.mxu0 0.0
      %998 = vmatprep.subr.mxu0 0.0
      %999 = vmatpush1.msra.mxu0 0.0
      %1000 = vmatprep.subr.mxu0 0.0
      %1001 = vmatpush1.msra.mxu0 0.0
      %1002 = vmatprep.subr.mxu0 0.0
      %1003 = vmatpush1.msra.mxu0 0.0
      %1004 = vmatprep.subr.mxu0 0.0
      %1005 = vmatpush1.msra.mxu0 0.0
      %1006 = vmatprep.subr.mxu0 0.0
      %1007 = vmatpush1.msra.mxu0 0.0
      %1008 = vmatprep.subr.mxu0 0.0
      %1009 = vmatpush1.msra.mxu0 %v965
      %1010 = vmatprep.subr.mxu0 0.0
      %1011 = vmatpush2.msra.mxu0 0.0
      %1012 = vmatprep.subr.mxu0 0.0
      %1013 = vmatpush2.msra.mxu0 0.0
      %1014 = vmatprep.subr.mxu0 0.0
      %1015 = vmatpush2.msra.mxu0 0.0
      %1016 = vmatprep.subr.mxu0 0.0
      %1017 = vmatpush2.msra.mxu0 0.0
      %1018 = vmatprep.subr.mxu0 0.0
      %1019 = vmatpush2.msra.mxu0 0.0
      %1020 = vmatprep.subr.mxu0 0.0
      %1021 = vmatpush2.msra.mxu0 0.0
      %1022 = vmatprep.subr.mxu0 0.0
      %1023 = vmatpush2.msra.mxu0 0.0
      %1024 = vmatprep.subr.mxu0 0.0
      %1025 = vmatpush2.msra.mxu0 0.0
      %1026 = vmatprep.subr.mxu0 0.0
      %1027 = vmatpush2.msra.mxu0 0.0
      %1028 = vmatprep.subr.mxu0 0.0
      %1029 = vmatpush2.msra.mxu0 0.0
      %1030 = vmatprep.subr.mxu0 0.0
      %1031 = vmatpush2.msra.mxu0 0.0
      %1032 = vmatprep.subr.mxu0 0.0
      %1033 = vmatpush2.msra.mxu0 0.0
      %1034 = vmatprep.subr.mxu0 0.0
      %1035 = vmatpush2.msra.mxu0 0.0
      %1036 = vmatprep.subr.mxu0 0.0
      %1037 = vmatpush2.msra.mxu0 0.0
      %1038 = vmatprep.subr.mxu0 0.0
      %1039 = vmatpush2.msra.mxu0 0.0
      %1040 = vmatprep.subr.mxu0 0.0
      %1041 = vmatpush2.msra.mxu0 0.0
      %1042 = vmatprep.mubr.f32.mxu0 0.0
      %1043 = vmatmul.mubr.f32.gmra.mxu0 %v967
      %v1044 = vpop.f32.mrf.mxu0
      %v1045 = vadd.f32 0.0, %v1044
      %v1046 = vpop.f32.mrf.mxu0
      %1047 = vmatprep.mubr.f32.mxu0 0.0
      %1048 = vmatmul.mubr.f32.gmra.mxu0 %v970
      %v1049 = vpop.f32.mrf.mxu0
      %v1050 = vadd.f32 0.0, %v1049
      %v1051 = vpop.f32.mrf.mxu0
      %1052 = vmatprep.mubr.f32.mxu0 0.0
      %1053 = vmatmul.mubr.f32.gmra.mxu0 %v973
      %v1054 = vpop.f32.mrf.mxu0
      %v1055 = vadd.f32 0.0, %v1054
      %v1056 = vpop.f32.mrf.mxu0
      %1057 = vmatprep.mubr.f32.mxu0 0.0
      %1058 = vmatmul.mubr.f32.gmra.mxu0 %v976
      %v1059 = vpop.f32.mrf.mxu0
      %v1060 = vadd.f32 0.0, %v1059
      %v1061 = vpop.f32.mrf.mxu0
      %1062 = vdwg.mxu0
      %v1063 = vadd.f32 %v955, %v1045
      %v1064 = vadd.f32 %v956, %v1050
      %v1065 = vadd.f32 %v957, %v1055
      %v1066 = vadd.f32 %v958, %v1060
      %1067 = vst.msk [vmem:[%s683] sm:$0xff] %vm712, %v1063
      %1068 = vst.msk [vmem:[%s683 + $0x8] sm:$0xff] %vm712, %v1064
      %1069 = vst.msk [vmem:[%s683 + $0x10] sm:$0xff] %vm712, %v1065
      %1070 = vst.msk [vmem:[%s683 + $0x18] sm:$0xff] %vm712, %v1066
      %v1071 = vld [vmem:[%s683] sm:$0xff]
      %v1072 = vld [vmem:[%s683 + $0x8] sm:$0xff]
      %v1073 = vld [vmem:[%s683 + $0x10] sm:$0xff]
      %v1074 = vld [vmem:[%s683 + $0x18] sm:$0xff]
      %v1075 = vld [vmem:[%s634 + $0x1] sm:$0xff]
      %v1076 = vld [vmem:[%s634 + $0x11] sm:$0xff]
      %v1077 = vld [vmem:[%s634 + $0x21] sm:$0xff]
      %v1078 = vld [vmem:[%s634 + $0x31] sm:$0xff]
      %s1079 = scalar_lea.vmem %s9, 40
      %v1080 = vld [vmem:[%s1079] sm:$0xff]
      %v1081 = vmul.f32 %v1080, %v730
      %v1083 = vsel %vm733, %v1075, 0
      %v1086 = vsel %vm733, %v1076, 0
      %v1089 = vsel %vm733, %v1077, 0
      %v1092 = vsel %vm733, %v1078, 0
      %1094 = vmatprep.subr.mxu0 0.0
      %1095 = vmatpush1.msra.mxu0 0.0
      %1096 = vmatprep.subr.mxu0 0.0
      %1097 = vmatpush1.msra.mxu0 0.0
      %1098 = vmatprep.subr.mxu0 0.0
      %1099 = vmatpush1.msra.mxu0 0.0
      %1100 = vmatprep.subr.mxu0 0.0
      %1101 = vmatpush1.msra.mxu0 0.0
      %1102 = vmatprep.subr.mxu0 0.0
      %1103 = vmatpush1.msra.mxu0 0.0
      %1104 = vmatprep.subr.mxu0 0.0
      %1105 = vmatpush1.msra.mxu0 0.0
      %1106 = vmatprep.subr.mxu0 0.0
      %1107 = vmatpush1.msra.mxu0 0.0
      %1108 = vmatprep.subr.mxu0 0.0
      %1109 = vmatpush1.msra.mxu0 0.0
      %1110 = vmatprep.subr.mxu0 0.0
      %1111 = vmatpush1.msra.mxu0 0.0
      %1112 = vmatprep.subr.mxu0 0.0
      %1113 = vmatpush1.msra.mxu0 0.0
      %1114 = vmatprep.subr.mxu0 0.0
      %1115 = vmatpush1.msra.mxu0 0.0
      %1116 = vmatprep.subr.mxu0 0.0
      %1117 = vmatpush1.msra.mxu0 0.0
      %1118 = vmatprep.subr.mxu0 0.0
      %1119 = vmatpush1.msra.mxu0 0.0
      %1120 = vmatprep.subr.mxu0 0.0
      %1121 = vmatpush1.msra.mxu0 0.0
      %1122 = vmatprep.subr.mxu0 0.0
      %1123 = vmatpush1.msra.mxu0 0.0
      %1124 = vmatprep.subr.mxu0 0.0
      %1125 = vmatpush1.msra.mxu0 %v1081
      %1126 = vmatprep.subr.mxu0 0.0
      %1127 = vmatpush2.msra.mxu0 0.0
      %1128 = vmatprep.subr.mxu0 0.0
      %1129 = vmatpush2.msra.mxu0 0.0
      %1130 = vmatprep.subr.mxu0 0.0
      %1131 = vmatpush2.msra.mxu0 0.0
      %1132 = vmatprep.subr.mxu0 0.0
      %1133 = vmatpush2.msra.mxu0 0.0
      %1134 = vmatprep.subr.mxu0 0.0
      %1135 = vmatpush2.msra.mxu0 0.0
      %1136 = vmatprep.subr.mxu0 0.0
      %1137 = vmatpush2.msra.mxu0 0.0
      %1138 = vmatprep.subr.mxu0 0.0
      %1139 = vmatpush2.msra.mxu0 0.0
      %1140 = vmatprep.subr.mxu0 0.0
      %1141 = vmatpush2.msra.mxu0 0.0
      %1142 = vmatprep.subr.mxu0 0.0
      %1143 = vmatpush2.msra.mxu0 0.0
      %1144 = vmatprep.subr.mxu0 0.0
      %1145 = vmatpush2.msra.mxu0 0.0
      %1146 = vmatprep.subr.mxu0 0.0
      %1147 = vmatpush2.msra.mxu0 0.0
      %1148 = vmatprep.subr.mxu0 0.0
      %1149 = vmatpush2.msra.mxu0 0.0
      %1150 = vmatprep.subr.mxu0 0.0
      %1151 = vmatpush2.msra.mxu0 0.0
      %1152 = vmatprep.subr.mxu0 0.0
      %1153 = vmatpush2.msra.mxu0 0.0
      %1154 = vmatprep.subr.mxu0 0.0
      %1155 = vmatpush2.msra.mxu0 0.0
      %1156 = vmatprep.subr.mxu0 0.0
      %1157 = vmatpush2.msra.mxu0 0.0
      %1158 = vmatprep.mubr.f32.mxu0 0.0
      %1159 = vmatmul.mubr.f32.gmra.mxu0 %v1083
      %v1160 = vpop.f32.mrf.mxu0
      %v1161 = vadd.f32 0.0, %v1160
      %v1162 = vpop.f32.mrf.mxu0
      %1163 = vmatprep.mubr.f32.mxu0 0.0
      %1164 = vmatmul.mubr.f32.gmra.mxu0 %v1086
      %v1165 = vpop.f32.mrf.mxu0
      %v1166 = vadd.f32 0.0, %v1165
      %v1167 = vpop.f32.mrf.mxu0
      %1168 = vmatprep.mubr.f32.mxu0 0.0
      %1169 = vmatmul.mubr.f32.gmra.mxu0 %v1089
      %v1170 = vpop.f32.mrf.mxu0
      %v1171 = vadd.f32 0.0, %v1170
      %v1172 = vpop.f32.mrf.mxu0
      %1173 = vmatprep.mubr.f32.mxu0 0.0
      %1174 = vmatmul.mubr.f32.gmra.mxu0 %v1092
      %v1175 = vpop.f32.mrf.mxu0
      %v1176 = vadd.f32 0.0, %v1175
      %v1177 = vpop.f32.mrf.mxu0
      %1178 = vdwg.mxu0
      %v1179 = vadd.f32 %v1071, %v1161
      %v1180 = vadd.f32 %v1072, %v1166
      %v1181 = vadd.f32 %v1073, %v1171
      %v1182 = vadd.f32 %v1074, %v1176
      %1183 = vst.msk [vmem:[%s683] sm:$0xff] %vm712, %v1179
      %1184 = vst.msk [vmem:[%s683 + $0x8] sm:$0xff] %vm712, %v1180
      %1185 = vst.msk [vmem:[%s683 + $0x10] sm:$0xff] %vm712, %v1181
      %1186 = vst.msk [vmem:[%s683 + $0x18] sm:$0xff] %vm712, %v1182
      %v1187 = vld [vmem:[%s683] sm:$0xff]
      %v1188 = vld [vmem:[%s683 + $0x8] sm:$0xff]
      %v1189 = vld [vmem:[%s683 + $0x10] sm:$0xff]
      %v1190 = vld [vmem:[%s683 + $0x18] sm:$0xff]
      %v1191 = vld [vmem:[%s644] sm:$0xff]
      %v1192 = vld [vmem:[%s644 + $0x8] sm:$0xff]
      %v1193 = vld [vmem:[%s644 + $0x10] sm:$0xff]
      %v1194 = vld [vmem:[%s644 + $0x18] sm:$0xff]
      %s1195 = scalar_lea.vmem %s9, 8
      %v1196 = vld [vmem:[%s1195] sm:$0xff]
      %v1197 = vmul.f32 %v1196, %v730
      %v1199 = vsel %vm733, %v1191, 0
      %v1202 = vsel %vm733, %v1192, 0
      %v1205 = vsel %vm733, %v1193, 0
      %v1208 = vsel %vm733, %v1194, 0
      %1210 = vmatprep.subr.mxu0 0.0
      %1211 = vmatpush1.msra.mxu0 0.0
      %1212 = vmatprep.subr.mxu0 0.0
      %1213 = vmatpush1.msra.mxu0 0.0
      %1214 = vmatprep.subr.mxu0 0.0
      %1215 = vmatpush1.msra.mxu0 0.0
      %1216 = vmatprep.subr.mxu0 0.0
      %1217 = vmatpush1.msra.mxu0 0.0
      %1218 = vmatprep.subr.mxu0 0.0
      %1219 = vmatpush1.msra.mxu0 0.0
      %1220 = vmatprep.subr.mxu0 0.0
      %1221 = vmatpush1.msra.mxu0 0.0
      %1222 = vmatprep.subr.mxu0 0.0
      %1223 = vmatpush1.msra.mxu0 0.0
      %1224 = vmatprep.subr.mxu0 0.0
      %1225 = vmatpush1.msra.mxu0 0.0
      %1226 = vmatprep.subr.mxu0 0.0
      %1227 = vmatpush1.msra.mxu0 0.0
      %1228 = vmatprep.subr.mxu0 0.0
      %1229 = vmatpush1.msra.mxu0 0.0
      %1230 = vmatprep.subr.mxu0 0.0
      %1231 = vmatpush1.msra.mxu0 0.0
      %1232 = vmatprep.subr.mxu0 0.0
      %1233 = vmatpush1.msra.mxu0 0.0
      %1234 = vmatprep.subr.mxu0 0.0
      %1235 = vmatpush1.msra.mxu0 0.0
      %1236 = vmatprep.subr.mxu0 0.0
      %1237 = vmatpush1.msra.mxu0 0.0
      %1238 = vmatprep.subr.mxu0 0.0
      %1239 = vmatpush1.msra.mxu0 0.0
      %1240 = vmatprep.subr.mxu0 0.0
      %1241 = vmatpush1.msra.mxu0 %v1197
      %1242 = vmatprep.subr.mxu0 0.0
      %1243 = vmatpush2.msra.mxu0 0.0
      %1244 = vmatprep.subr.mxu0 0.0
      %1245 = vmatpush2.msra.mxu0 0.0
      %1246 = vmatprep.subr.mxu0 0.0
      %1247 = vmatpush2.msra.mxu0 0.0
      %1248 = vmatprep.subr.mxu0 0.0
      %1249 = vmatpush2.msra.mxu0 0.0
      %1250 = vmatprep.subr.mxu0 0.0
      %1251 = vmatpush2.msra.mxu0 0.0
      %1252 = vmatprep.subr.mxu0 0.0
      %1253 = vmatpush2.msra.mxu0 0.0
      %1254 = vmatprep.subr.mxu0 0.0
      %1255 = vmatpush2.msra.mxu0 0.0
      %1256 = vmatprep.subr.mxu0 0.0
      %1257 = vmatpush2.msra.mxu0 0.0
      %1258 = vmatprep.subr.mxu0 0.0
      %1259 = vmatpush2.msra.mxu0 0.0
      %1260 = vmatprep.subr.mxu0 0.0
      %1261 = vmatpush2.msra.mxu0 0.0
      %1262 = vmatprep.subr.mxu0 0.0
      %1263 = vmatpush2.msra.mxu0 0.0
      %1264 = vmatprep.subr.mxu0 0.0
      %1265 = vmatpush2.msra.mxu0 0.0
      %1266 = vmatprep.subr.mxu0 0.0
      %1267 = vmatpush2.msra.mxu0 0.0
      %1268 = vmatprep.subr.mxu0 0.0
      %1269 = vmatpush2.msra.mxu0 0.0
      %1270 = vmatprep.subr.mxu0 0.0
      %1271 = vmatpush2.msra.mxu0 0.0
      %1272 = vmatprep.subr.mxu0 0.0
      %1273 = vmatpush2.msra.mxu0 0.0
      %1274 = vmatprep.mubr.f32.mxu0 0.0
      %1275 = vmatmul.mubr.f32.gmra.mxu0 %v1199
      %v1276 = vpop.f32.mrf.mxu0
      %v1277 = vadd.f32 0.0, %v1276
      %v1278 = vpop.f32.mrf.mxu0
      %1279 = vmatprep.mubr.f32.mxu0 0.0
      %1280 = vmatmul.mubr.f32.gmra.mxu0 %v1202
      %v1281 = vpop.f32.mrf.mxu0
      %v1282 = vadd.f32 0.0, %v1281
      %v1283 = vpop.f32.mrf.mxu0
      %1284 = vmatprep.mubr.f32.mxu0 0.0
      %1285 = vmatmul.mubr.f32.gmra.mxu0 %v1205
      %v1286 = vpop.f32.mrf.mxu0
      %v1287 = vadd.f32 0.0, %v1286
      %v1288 = vpop.f32.mrf.mxu0
      %1289 = vmatprep.mubr.f32.mxu0 0.0
      %1290 = vmatmul.mubr.f32.gmra.mxu0 %v1208
      %v1291 = vpop.f32.mrf.mxu0
      %v1292 = vadd.f32 0.0, %v1291
      %v1293 = vpop.f32.mrf.mxu0
      %1294 = vdwg.mxu0
      %v1295 = vadd.f32 %v1187, %v1277
      %v1296 = vadd.f32 %v1188, %v1282
      %v1297 = vadd.f32 %v1189, %v1287
      %v1298 = vadd.f32 %v1190, %v1292
      %1299 = vst.msk [vmem:[%s683] sm:$0xff] %vm712, %v1295
      %1300 = vst.msk [vmem:[%s683 + $0x8] sm:$0xff] %vm712, %v1296
      %1301 = vst.msk [vmem:[%s683 + $0x10] sm:$0xff] %vm712, %v1297
      %1302 = vst.msk [vmem:[%s683 + $0x18] sm:$0xff] %vm712, %v1298
      %v1303 = vld [vmem:[%s683] sm:$0xff]
      %v1304 = vld [vmem:[%s683 + $0x8] sm:$0xff]
      %v1305 = vld [vmem:[%s683 + $0x10] sm:$0xff]
      %v1306 = vld [vmem:[%s683 + $0x18] sm:$0xff]
      %v1307 = vld [vmem:[%s666] sm:$0xff]
      %v1308 = vld [vmem:[%s666 + $0x10] sm:$0xff]
      %v1309 = vld [vmem:[%s666 + $0x20] sm:$0xff]
      %v1310 = vld [vmem:[%s666 + $0x30] sm:$0xff]
      %v1311 = vld [vmem:[%s9] sm:$0xff]
      %v1312 = vmul.f32 %v1311, %v730
      %v1314 = vsel %vm733, %v1307, 0
      %v1317 = vsel %vm733, %v1308, 0
      %v1320 = vsel %vm733, %v1309, 0
      %v1323 = vsel %vm733, %v1310, 0
      %1325 = vmatprep.subr.mxu0 0.0
      %1326 = vmatpush1.msra.mxu0 0.0
      %1327 = vmatprep.subr.mxu0 0.0
      %1328 = vmatpush1.msra.mxu0 0.0
      %1329 = vmatprep.subr.mxu0 0.0
      %1330 = vmatpush1.msra.mxu0 0.0
      %1331 = vmatprep.subr.mxu0 0.0
      %1332 = vmatpush1.msra.mxu0 0.0
      %1333 = vmatprep.subr.mxu0 0.0
      %1334 = vmatpush1.msra.mxu0 0.0
      %1335 = vmatprep.subr.mxu0 0.0
      %1336 = vmatpush1.msra.mxu0 0.0
      %1337 = vmatprep.subr.mxu0 0.0
      %1338 = vmatpush1.msra.mxu0 0.0
      %1339 = vmatprep.subr.mxu0 0.0
      %1340 = vmatpush1.msra.mxu0 0.0
      %1341 = vmatprep.subr.mxu0 0.0
      %1342 = vmatpush1.msra.mxu0 0.0
      %1343 = vmatprep.subr.mxu0 0.0
      %1344 = vmatpush1.msra.mxu0 0.0
      %1345 = vmatprep.subr.mxu0 0.0
      %1346 = vmatpush1.msra.mxu0 0.0
      %1347 = vmatprep.subr.mxu0 0.0
      %1348 = vmatpush1.msra.mxu0 0.0
      %1349 = vmatprep.subr.mxu0 0.0
      %1350 = vmatpush1.msra.mxu0 0.0
      %1351 = vmatprep.subr.mxu0 0.0
      %1352 = vmatpush1.msra.mxu0 0.0
      %1353 = vmatprep.subr.mxu0 0.0
      %1354 = vmatpush1.msra.mxu0 0.0
      %1355 = vmatprep.subr.mxu0 0.0
      %1356 = vmatpush1.msra.mxu0 %v1312
      %1357 = vmatprep.subr.mxu0 0.0
      %1358 = vmatpush2.msra.mxu0 0.0
      %1359 = vmatprep.subr.mxu0 0.0
      %1360 = vmatpush2.msra.mxu0 0.0
      %1361 = vmatprep.subr.mxu0 0.0
      %1362 = vmatpush2.msra.mxu0 0.0
      %1363 = vmatprep.subr.mxu0 0.0
      %1364 = vmatpush2.msra.mxu0 0.0
      %1365 = vmatprep.subr.mxu0 0.0
      %1366 = vmatpush2.msra.mxu0 0.0
      %1367 = vmatprep.subr.mxu0 0.0
      %1368 = vmatpush2.msra.mxu0 0.0
      %1369 = vmatprep.subr.mxu0 0.0
      %1370 = vmatpush2.msra.mxu0 0.0
      %1371 = vmatprep.subr.mxu0 0.0
      %1372 = vmatpush2.msra.mxu0 0.0
      %1373 = vmatprep.subr.mxu0 0.0
      %1374 = vmatpush2.msra.mxu0 0.0
      %1375 = vmatprep.subr.mxu0 0.0
      %1376 = vmatpush2.msra.mxu0 0.0
      %1377 = vmatprep.subr.mxu0 0.0
      %1378 = vmatpush2.msra.mxu0 0.0
      %1379 = vmatprep.subr.mxu0 0.0
      %1380 = vmatpush2.msra.mxu0 0.0
      %1381 = vmatprep.subr.mxu0 0.0
      %1382 = vmatpush2.msra.mxu0 0.0
      %1383 = vmatprep.subr.mxu0 0.0
      %1384 = vmatpush2.msra.mxu0 0.0
      %1385 = vmatprep.subr.mxu0 0.0
      %1386 = vmatpush2.msra.mxu0 0.0
      %1387 = vmatprep.subr.mxu0 0.0
      %1388 = vmatpush2.msra.mxu0 0.0
      %1389 = vmatprep.mubr.f32.mxu0 0.0
      %1390 = vmatmul.mubr.f32.gmra.mxu0 %v1314
      %v1391 = vpop.f32.mrf.mxu0
      %v1392 = vadd.f32 0.0, %v1391
      %v1393 = vpop.f32.mrf.mxu0
      %1394 = vmatprep.mubr.f32.mxu0 0.0
      %1395 = vmatmul.mubr.f32.gmra.mxu0 %v1317
      %v1396 = vpop.f32.mrf.mxu0
      %v1397 = vadd.f32 0.0, %v1396
      %v1398 = vpop.f32.mrf.mxu0
      %1399 = vmatprep.mubr.f32.mxu0 0.0
      %1400 = vmatmul.mubr.f32.gmra.mxu0 %v1320
      %v1401 = vpop.f32.mrf.mxu0
      %v1402 = vadd.f32 0.0, %v1401
      %v1403 = vpop.f32.mrf.mxu0
      %1404 = vmatprep.mubr.f32.mxu0 0.0
      %1405 = vmatmul.mubr.f32.gmra.mxu0 %v1323
      %v1406 = vpop.f32.mrf.mxu0
      %v1407 = vadd.f32 0.0, %v1406
      %v1408 = vpop.f32.mrf.mxu0
      %1409 = vdwg.mxu0
      %v1410 = vadd.f32 %v1303, %v1392
      %v1411 = vadd.f32 %v1304, %v1397
      %v1412 = vadd.f32 %v1305, %v1402
      %v1413 = vadd.f32 %v1306, %v1407
      %1414 = vst.msk [vmem:[%s683] sm:$0xff] %vm712, %v1410
      %1415 = vst.msk [vmem:[%s683 + $0x8] sm:$0xff] %vm712, %v1411
      %1416 = vst.msk [vmem:[%s683 + $0x10] sm:$0xff] %vm712, %v1412
      %1417 = vst.msk [vmem:[%s683 + $0x18] sm:$0xff] %vm712, %v1413
      %v1418 = vld [vmem:[%s683] sm:$0xff]
      %v1419 = vld [vmem:[%s683 + $0x8] sm:$0xff]
      %v1420 = vld [vmem:[%s683 + $0x10] sm:$0xff]
      %v1421 = vld [vmem:[%s683 + $0x18] sm:$0xff]
      %v1422 = vld [vmem:[%s666 + $0x1] sm:$0xff]
      %v1423 = vld [vmem:[%s666 + $0x11] sm:$0xff]
      %v1424 = vld [vmem:[%s666 + $0x21] sm:$0xff]
      %v1425 = vld [vmem:[%s666 + $0x31] sm:$0xff]
      %s1426 = scalar_lea.vmem %s9, 16
      %v1427 = vld [vmem:[%s1426] sm:$0xff]
      %v1428 = vmul.f32 %v1427, %v730
      %v1430 = vsel %vm733, %v1422, 0
      %v1433 = vsel %vm733, %v1423, 0
      %v1436 = vsel %vm733, %v1424, 0
      %v1439 = vsel %vm733, %v1425, 0
      %1441 = vmatprep.subr.mxu0 0.0
      %1442 = vmatpush1.msra.mxu0 0.0
      %1443 = vmatprep.subr.mxu0 0.0
      %1444 = vmatpush1.msra.mxu0 0.0
      %1445 = vmatprep.subr.mxu0 0.0
      %1446 = vmatpush1.msra.mxu0 0.0
      %1447 = vmatprep.subr.mxu0 0.0
      %1448 = vmatpush1.msra.mxu0 0.0
      %1449 = vmatprep.subr.mxu0 0.0
      %1450 = vmatpush1.msra.mxu0 0.0
      %1451 = vmatprep.subr.mxu0 0.0
      %1452 = vmatpush1.msra.mxu0 0.0
      %1453 = vmatprep.subr.mxu0 0.0
      %1454 = vmatpush1.msra.mxu0 0.0
      %1455 = vmatprep.subr.mxu0 0.0
      %1456 = vmatpush1.msra.mxu0 0.0
      %1457 = vmatprep.subr.mxu0 0.0
      %1458 = vmatpush1.msra.mxu0 0.0
      %1459 = vmatprep.subr.mxu0 0.0
      %1460 = vmatpush1.msra.mxu0 0.0
      %1461 = vmatprep.subr.mxu0 0.0
      %1462 = vmatpush1.msra.mxu0 0.0
      %1463 = vmatprep.subr.mxu0 0.0
      %1464 = vmatpush1.msra.mxu0 0.0
      %1465 = vmatprep.subr.mxu0 0.0
      %1466 = vmatpush1.msra.mxu0 0.0
      %1467 = vmatprep.subr.mxu0 0.0
      %1468 = vmatpush1.msra.mxu0 0.0
      %1469 = vmatprep.subr.mxu0 0.0
      %1470 = vmatpush1.msra.mxu0 0.0
      %1471 = vmatprep.subr.mxu0 0.0
      %1472 = vmatpush1.msra.mxu0 %v1428
      %1473 = vmatprep.subr.mxu0 0.0
      %1474 = vmatpush2.msra.mxu0 0.0
      %1475 = vmatprep.subr.mxu0 0.0
      %1476 = vmatpush2.msra.mxu0 0.0
      %1477 = vmatprep.subr.mxu0 0.0
      %1478 = vmatpush2.msra.mxu0 0.0
      %1479 = vmatprep.subr.mxu0 0.0
      %1480 = vmatpush2.msra.mxu0 0.0
      %1481 = vmatprep.subr.mxu0 0.0
      %1482 = vmatpush2.msra.mxu0 0.0
      %1483 = vmatprep.subr.mxu0 0.0
      %1484 = vmatpush2.msra.mxu0 0.0
      %1485 = vmatprep.subr.mxu0 0.0
      %1486 = vmatpush2.msra.mxu0 0.0
      %1487 = vmatprep.subr.mxu0 0.0
      %1488 = vmatpush2.msra.mxu0 0.0
      %1489 = vmatprep.subr.mxu0 0.0
      %1490 = vmatpush2.msra.mxu0 0.0
      %1491 = vmatprep.subr.mxu0 0.0
      %1492 = vmatpush2.msra.mxu0 0.0
      %1493 = vmatprep.subr.mxu0 0.0
      %1494 = vmatpush2.msra.mxu0 0.0
      %1495 = vmatprep.subr.mxu0 0.0
      %1496 = vmatpush2.msra.mxu0 0.0
      %1497 = vmatprep.subr.mxu0 0.0
      %1498 = vmatpush2.msra.mxu0 0.0
      %1499 = vmatprep.subr.mxu0 0.0
      %1500 = vmatpush2.msra.mxu0 0.0
      %1501 = vmatprep.subr.mxu0 0.0
      %1502 = vmatpush2.msra.mxu0 0.0
      %1503 = vmatprep.subr.mxu0 0.0
      %1504 = vmatpush2.msra.mxu0 0.0
      %1505 = vmatprep.mubr.f32.mxu0 0.0
      %1506 = vmatmul.mubr.f32.gmra.mxu0 %v1430
      %v1507 = vpop.f32.mrf.mxu0
      %v1508 = vadd.f32 0.0, %v1507
      %v1509 = vpop.f32.mrf.mxu0
      %1510 = vmatprep.mubr.f32.mxu0 0.0
      %1511 = vmatmul.mubr.f32.gmra.mxu0 %v1433
      %v1512 = vpop.f32.mrf.mxu0
      %v1513 = vadd.f32 0.0, %v1512
      %v1514 = vpop.f32.mrf.mxu0
      %1515 = vmatprep.mubr.f32.mxu0 0.0
      %1516 = vmatmul.mubr.f32.gmra.mxu0 %v1436
      %v1517 = vpop.f32.mrf.mxu0
      %v1518 = vadd.f32 0.0, %v1517
      %v1519 = vpop.f32.mrf.mxu0
      %1520 = vmatprep.mubr.f32.mxu0 0.0
      %1521 = vmatmul.mubr.f32.gmra.mxu0 %v1439
      %v1522 = vpop.f32.mrf.mxu0
      %v1523 = vadd.f32 0.0, %v1522
      %v1524 = vpop.f32.mrf.mxu0
      %1525 = vdwg.mxu0
      %v1526 = vadd.f32 %v1418, %v1508
      %v1527 = vadd.f32 %v1419, %v1513
      %v1528 = vadd.f32 %v1420, %v1518
      %v1529 = vadd.f32 %v1421, %v1523
      %1530 = vst.msk [vmem:[%s683] sm:$0xff] %vm712, %v1526
      %1531 = vst.msk [vmem:[%s683 + $0x8] sm:$0xff] %vm712, %v1527
      %1532 = vst.msk [vmem:[%s683 + $0x10] sm:$0xff] %vm712, %v1528
      %1533 = vst.msk [vmem:[%s683 + $0x18] sm:$0xff] %vm712, %v1529
      %v1534 = vld [vmem:[%s683] sm:$0xff]
      %v1535 = vld [vmem:[%s683 + $0x8] sm:$0xff]
      %v1536 = vld [vmem:[%s683 + $0x10] sm:$0xff]
      %v1537 = vld [vmem:[%s683 + $0x18] sm:$0xff]
      %v1538 = vld [vmem:[%s655] sm:$0xff]
      %v1539 = vld [vmem:[%s655 + $0x10] sm:$0xff]
      %v1540 = vld [vmem:[%s655 + $0x20] sm:$0xff]
      %v1541 = vld [vmem:[%s655 + $0x30] sm:$0xff]
      %s1542 = scalar_lea.vmem %s9, 48
      %v1543 = vld [vmem:[%s1542] sm:$0xff]
      %v1544 = vmul.f32 %v1543, %v730
      %v1546 = vsel %vm733, %v1538, 0
      %v1549 = vsel %vm733, %v1539, 0
      %v1552 = vsel %vm733, %v1540, 0
      %v1555 = vsel %vm733, %v1541, 0
      %1557 = vmatprep.subr.mxu0 0.0
      %1558 = vmatpush1.msra.mxu0 0.0
      %1559 = vmatprep.subr.mxu0 0.0
      %1560 = vmatpush1.msra.mxu0 0.0
      %1561 = vmatprep.subr.mxu0 0.0
      %1562 = vmatpush1.msra.mxu0 0.0
      %1563 = vmatprep.subr.mxu0 0.0
      %1564 = vmatpush1.msra.mxu0 0.0
      %1565 = vmatprep.subr.mxu0 0.0
      %1566 = vmatpush1.msra.mxu0 0.0
      %1567 = vmatprep.subr.mxu0 0.0
      %1568 = vmatpush1.msra.mxu0 0.0
      %1569 = vmatprep.subr.mxu0 0.0
      %1570 = vmatpush1.msra.mxu0 0.0
      %1571 = vmatprep.subr.mxu0 0.0
      %1572 = vmatpush1.msra.mxu0 0.0
      %1573 = vmatprep.subr.mxu0 0.0
      %1574 = vmatpush1.msra.mxu0 0.0
      %1575 = vmatprep.subr.mxu0 0.0
      %1576 = vmatpush1.msra.mxu0 0.0
      %1577 = vmatprep.subr.mxu0 0.0
      %1578 = vmatpush1.msra.mxu0 0.0
      %1579 = vmatprep.subr.mxu0 0.0
      %1580 = vmatpush1.msra.mxu0 0.0
      %1581 = vmatprep.subr.mxu0 0.0
      %1582 = vmatpush1.msra.mxu0 0.0
      %1583 = vmatprep.subr.mxu0 0.0
      %1584 = vmatpush1.msra.mxu0 0.0
      %1585 = vmatprep.subr.mxu0 0.0
      %1586 = vmatpush1.msra.mxu0 0.0
      %1587 = vmatprep.subr.mxu0 0.0
      %1588 = vmatpush1.msra.mxu0 %v1544
      %1589 = vmatprep.subr.mxu0 0.0
      %1590 = vmatpush2.msra.mxu0 0.0
      %1591 = vmatprep.subr.mxu0 0.0
      %1592 = vmatpush2.msra.mxu0 0.0
      %1593 = vmatprep.subr.mxu0 0.0
      %1594 = vmatpush2.msra.mxu0 0.0
      %1595 = vmatprep.subr.mxu0 0.0
      %1596 = vmatpush2.msra.mxu0 0.0
      %1597 = vmatprep.subr.mxu0 0.0
      %1598 = vmatpush2.msra.mxu0 0.0
      %1599 = vmatprep.subr.mxu0 0.0
      %1600 = vmatpush2.msra.mxu0 0.0
      %1601 = vmatprep.subr.mxu0 0.0
      %1602 = vmatpush2.msra.mxu0 0.0
      %1603 = vmatprep.subr.mxu0 0.0
      %1604 = vmatpush2.msra.mxu0 0.0
      %1605 = vmatprep.subr.mxu0 0.0
      %1606 = vmatpush2.msra.mxu0 0.0
      %1607 = vmatprep.subr.mxu0 0.0
      %1608 = vmatpush2.msra.mxu0 0.0
      %1609 = vmatprep.subr.mxu0 0.0
      %1610 = vmatpush2.msra.mxu0 0.0
      %1611 = vmatprep.subr.mxu0 0.0
      %1612 = vmatpush2.msra.mxu0 0.0
      %1613 = vmatprep.subr.mxu0 0.0
      %1614 = vmatpush2.msra.mxu0 0.0
      %1615 = vmatprep.subr.mxu0 0.0
      %1616 = vmatpush2.msra.mxu0 0.0
      %1617 = vmatprep.subr.mxu0 0.0
      %1618 = vmatpush2.msra.mxu0 0.0
      %1619 = vmatprep.subr.mxu0 0.0
      %1620 = vmatpush2.msra.mxu0 0.0
      %1621 = vmatprep.mubr.f32.mxu0 0.0
      %1622 = vmatmul.mubr.f32.gmra.mxu0 %v1546
      %v1623 = vpop.f32.mrf.mxu0
      %v1624 = vadd.f32 0.0, %v1623
      %v1625 = vpop.f32.mrf.mxu0
      %1626 = vmatprep.mubr.f32.mxu0 0.0
      %1627 = vmatmul.mubr.f32.gmra.mxu0 %v1549
      %v1628 = vpop.f32.mrf.mxu0
      %v1629 = vadd.f32 0.0, %v1628
      %v1630 = vpop.f32.mrf.mxu0
      %1631 = vmatprep.mubr.f32.mxu0 0.0
      %1632 = vmatmul.mubr.f32.gmra.mxu0 %v1552
      %v1633 = vpop.f32.mrf.mxu0
      %v1634 = vadd.f32 0.0, %v1633
      %v1635 = vpop.f32.mrf.mxu0
      %1636 = vmatprep.mubr.f32.mxu0 0.0
      %1637 = vmatmul.mubr.f32.gmra.mxu0 %v1555
      %v1638 = vpop.f32.mrf.mxu0
      %v1639 = vadd.f32 0.0, %v1638
      %v1640 = vpop.f32.mrf.mxu0
      %1641 = vdwg.mxu0
      %v1642 = vadd.f32 %v1534, %v1624
      %v1643 = vadd.f32 %v1535, %v1629
      %v1644 = vadd.f32 %v1536, %v1634
      %v1645 = vadd.f32 %v1537, %v1639
      %1646 = vst.msk [vmem:[%s683] sm:$0xff] %vm712, %v1642
      %1647 = vst.msk [vmem:[%s683 + $0x8] sm:$0xff] %vm712, %v1643
      %1648 = vst.msk [vmem:[%s683 + $0x10] sm:$0xff] %vm712, %v1644
      %1649 = vst.msk [vmem:[%s683 + $0x18] sm:$0xff] %vm712, %v1645
      %v1650 = vld [vmem:[%s683] sm:$0xff]
      %v1651 = vld [vmem:[%s683 + $0x8] sm:$0xff]
      %v1652 = vld [vmem:[%s683 + $0x10] sm:$0xff]
      %v1653 = vld [vmem:[%s683 + $0x18] sm:$0xff]
      %v1654 = vld [vmem:[%s655 + $0x1] sm:$0xff]
      %v1655 = vld [vmem:[%s655 + $0x11] sm:$0xff]
      %v1656 = vld [vmem:[%s655 + $0x21] sm:$0xff]
      %v1657 = vld [vmem:[%s655 + $0x31] sm:$0xff]
      %s1658 = scalar_lea.vmem %s9, 64
      %v1659 = vld [vmem:[%s1658] sm:$0xff]
      %v1660 = vmul.f32 %v1659, %v730
      %v1662 = vsel %vm733, %v1654, 0
      %v1665 = vsel %vm733, %v1655, 0
      %v1668 = vsel %vm733, %v1656, 0
      %v1671 = vsel %vm733, %v1657, 0
      %1673 = vmatprep.subr.mxu0 0.0
      %1674 = vmatpush1.msra.mxu0 0.0
      %1675 = vmatprep.subr.mxu0 0.0
      %1676 = vmatpush1.msra.mxu0 0.0
      %1677 = vmatprep.subr.mxu0 0.0
      %1678 = vmatpush1.msra.mxu0 0.0
      %1679 = vmatprep.subr.mxu0 0.0
      %1680 = vmatpush1.msra.mxu0 0.0
      %1681 = vmatprep.subr.mxu0 0.0
      %1682 = vmatpush1.msra.mxu0 0.0
      %1683 = vmatprep.subr.mxu0 0.0
      %1684 = vmatpush1.msra.mxu0 0.0
      %1685 = vmatprep.subr.mxu0 0.0
      %1686 = vmatpush1.msra.mxu0 0.0
      %1687 = vmatprep.subr.mxu0 0.0
      %1688 = vmatpush1.msra.mxu0 0.0
      %1689 = vmatprep.subr.mxu0 0.0
      %1690 = vmatpush1.msra.mxu0 0.0
      %1691 = vmatprep.subr.mxu0 0.0
      %1692 = vmatpush1.msra.mxu0 0.0
      %1693 = vmatprep.subr.mxu0 0.0
      %1694 = vmatpush1.msra.mxu0 0.0
      %1695 = vmatprep.subr.mxu0 0.0
      %1696 = vmatpush1.msra.mxu0 0.0
      %1697 = vmatprep.subr.mxu0 0.0
      %1698 = vmatpush1.msra.mxu0 0.0
      %1699 = vmatprep.subr.mxu0 0.0
      %1700 = vmatpush1.msra.mxu0 0.0
      %1701 = vmatprep.subr.mxu0 0.0
      %1702 = vmatpush1.msra.mxu0 0.0
      %1703 = vmatprep.subr.mxu0 0.0
      %1704 = vmatpush1.msra.mxu0 %v1660
      %1705 = vmatprep.subr.mxu0 0.0
      %1706 = vmatpush2.msra.mxu0 0.0
      %1707 = vmatprep.subr.mxu0 0.0
      %1708 = vmatpush2.msra.mxu0 0.0
      %1709 = vmatprep.subr.mxu0 0.0
      %1710 = vmatpush2.msra.mxu0 0.0
      %1711 = vmatprep.subr.mxu0 0.0
      %1712 = vmatpush2.msra.mxu0 0.0
      %1713 = vmatprep.subr.mxu0 0.0
      %1714 = vmatpush2.msra.mxu0 0.0
      %1715 = vmatprep.subr.mxu0 0.0
      %1716 = vmatpush2.msra.mxu0 0.0
      %1717 = vmatprep.subr.mxu0 0.0
      %1718 = vmatpush2.msra.mxu0 0.0
      %1719 = vmatprep.subr.mxu0 0.0
      %1720 = vmatpush2.msra.mxu0 0.0
      %1721 = vmatprep.subr.mxu0 0.0
      %1722 = vmatpush2.msra.mxu0 0.0
      %1723 = vmatprep.subr.mxu0 0.0
      %1724 = vmatpush2.msra.mxu0 0.0
      %1725 = vmatprep.subr.mxu0 0.0
      %1726 = vmatpush2.msra.mxu0 0.0
      %1727 = vmatprep.subr.mxu0 0.0
      %1728 = vmatpush2.msra.mxu0 0.0
      %1729 = vmatprep.subr.mxu0 0.0
      %1730 = vmatpush2.msra.mxu0 0.0
      %1731 = vmatprep.subr.mxu0 0.0
      %1732 = vmatpush2.msra.mxu0 0.0
      %1733 = vmatprep.subr.mxu0 0.0
      %1734 = vmatpush2.msra.mxu0 0.0
      %1735 = vmatprep.subr.mxu0 0.0
      %1736 = vmatpush2.msra.mxu0 0.0
      %1737 = vmatprep.mubr.f32.mxu0 0.0
      %1738 = vmatmul.mubr.f32.gmra.mxu0 %v1662
      %v1739 = vpop.f32.mrf.mxu0
      %v1740 = vadd.f32 0.0, %v1739
      %v1741 = vpop.f32.mrf.mxu0
      %1742 = vmatprep.mubr.f32.mxu0 0.0
      %1743 = vmatmul.mubr.f32.gmra.mxu0 %v1665
      %v1744 = vpop.f32.mrf.mxu0
      %v1745 = vadd.f32 0.0, %v1744
      %v1746 = vpop.f32.mrf.mxu0
      %1747 = vmatprep.mubr.f32.mxu0 0.0
      %1748 = vmatmul.mubr.f32.gmra.mxu0 %v1668
      %v1749 = vpop.f32.mrf.mxu0
      %v1750 = vadd.f32 0.0, %v1749
      %v1751 = vpop.f32.mrf.mxu0
      %1752 = vmatprep.mubr.f32.mxu0 0.0
      %1753 = vmatmul.mubr.f32.gmra.mxu0 %v1671
      %v1754 = vpop.f32.mrf.mxu0
      %v1755 = vadd.f32 0.0, %v1754
      %v1756 = vpop.f32.mrf.mxu0
      %1757 = vdwg.mxu0
      %v1758 = vadd.f32 %v1650, %v1740
      %v1759 = vadd.f32 %v1651, %v1745
      %v1760 = vadd.f32 %v1652, %v1750
      %v1761 = vadd.f32 %v1653, %v1755
      %1762 = vst.msk [vmem:[%s683] sm:$0xff] %vm712, %v1758
      %1763 = vst.msk [vmem:[%s683 + $0x8] sm:$0xff] %vm712, %v1759
      %1764 = vst.msk [vmem:[%s683 + $0x10] sm:$0xff] %vm712, %v1760
      %1765 = vst.msk [vmem:[%s683 + $0x18] sm:$0xff] %vm712, %v1761
      %s1766 = smul.u32 4, %s27
      %p1767 = scmp.lt.s32.totalorder %s26, 1
      %s1768 = scalar_select %p1767, %s26, 1
      %p1769 = scmp.lt.s32.totalorder %s1766, 7
      %s1770 = scalar_select %p1769, %s1766, 7
      %s1771 = smul.addr %s1768, 8
      %s1772 = sadd.s32 %s1770, %s1771
      %s1773 = smul.addr %s1772, 8
      %s1774 = scalar_lea.vmem %s11, %s1773
      // Predicated region
      $region65: #{multi_scale_pca_down.7} parent=63 // pred_check
        %p1775 = pneg %p344
      $region66: #{multi_scale_pca_down.7} parent=63 // pred_check_branch
        %1777 = sbr.rel (%p1775) target = $region68
      $region67: #{multi_scale_pca_down.7} parent=63 // pred_region
        %s1778 = smul.u32 4, %s27
      $region68: #{multi_scale_pca_down.7} parent=63 // pred_fallthru
        _
    $region64: #{multi_scale_pca_down.7} parent=5 // pred_fallthru
      _
    %p1779 = scmp.le.s32.totalorder 2, %s17
    // Predicated region
    $region69: #{multi_scale_pca_down.7} parent=5 // pred_check
      %p1780 = pneg %p1779
    $region70: #{multi_scale_pca_down.7} parent=5 // pred_check_branch
      %1782 = sbr.rel (%p1780) target = $region72
    $region71: #{multi_scale_pca_down.7} parent=5 // pred_region
      %s1783 = ssub.s32 %s17, 2
      // Predicated region
      $region73: #{multi_scale_pca_down.7} parent=71 // pred_check
        %p1784 = pneg %p350
      $region74: #{multi_scale_pca_down.7} parent=71 // pred_check_branch
        %1786 = sbr.rel (%p1784) target = $region76
      $region75: #{multi_scale_pca_down.7} parent=71 // pred_region
        %s1787 = smul.u32 4, %s29
        %p1788 = scmp.lt.s32.totalorder %s28, 1
        %s1789 = scalar_select %p1788, %s28, 1
        %p1790 = scmp.lt.s32.totalorder %s1787, 7
        %s1791 = scalar_select %p1790, %s1787, 7
        %s1792 = smul.addr %s1789, 8
        %s1793 = sadd.s32 %s1791, %s1792
        %s1794 = smul.addr %s1793, 8
        %s1795 = scalar_lea.vmem %s11, %s1794
      $region76: #{multi_scale_pca_down.7} parent=71 // pred_fallthru
        _
    $region72: #{multi_scale_pca_down.7} parent=5 // pred_fallthru
      _
  $region6: #{multi_scale_pca_down.7} parent=0 // loop_footer
    %s21 = sadd.s32 1, %s17
  $region7: #{multi_scale_pca_down.7} parent=0 // loop_footer_branch
    %16 = sbr.rel target = $region3
  $region8: #{multi_scale_pca_down.7} parent=0 // loop_exit
    _

</llo_original>
